<compile_context>
chip_gen: v7x
topology: tpu7x:2x2x1
jax: 0.10.0
libtpu: 0.0.40
codegen_flags: <defaults>
</compile_context>

<pallas_src>
import numpy as np
import jax
import jax.numpy as jnp
from jax import lax
from jax.experimental import pallas as pl
from jax.experimental.pallas import tpu as pltpu

D_IN = 169                        # 42 + 42 + 42 + 43
HEAD_DIMS = (42, 42, 42, 43)
HEAD_SPLITS = (0, 42, 84, 126, 169)
H1 = 2 * D_IN                     # MLP hidden 1 (outputdim1)
H2 = 3 * D_IN                     # MLP hidden 2 (outputdim2); outputdim3 unused by MLP
QKV_SLOT = 256                    # lane-aligned slot width for each of Q/K/V
LN_EPS = 1e-5
SCALE = np.float32(1.0 / np.sqrt(D_IN))     # PyTorch divides by d_in ** 0.5
NEG = np.float32(-1e30)


def _layernorm(x, gamma, beta):
    # PyTorch LayerNorm: biased variance, eps inside rsqrt.
    mean = jnp.mean(x, axis=-1, keepdims=True)
    var = jnp.mean(jnp.square(x - mean), axis=-1, keepdims=True)
    return (x - mean) * lax.rsqrt(var + LN_EPS) * gamma + beta


def _gelu(x):
    # nn.GELU() default (approximate='none'): 0.5 * x * (1 + erf(x / sqrt(2)))
    return 0.5 * x * (1.0 + lax.erf(x * np.float32(1.0 / np.sqrt(2.0))))


def _attn_mask():
    """(169,169) additive mask built in-kernel: 0 inside each head's block,
    -1e30 elsewhere.  Added to the full Q^T K score matrix it makes the single
    169-wide softmax identical to the four per-head softmaxes, and the single
    V @ P matmul identical to the concatenated per-head context vectors."""
    r = lax.broadcasted_iota(jnp.int32, (D_IN, D_IN), 0)
    c = lax.broadcasted_iota(jnp.int32, (D_IN, D_IN), 1)

    def head_of(i):
        return ((i >= HEAD_SPLITS[1]).astype(jnp.int32)
                + (i >= HEAD_SPLITS[2]).astype(jnp.int32)
                + (i >= HEAD_SPLITS[3]).astype(jnp.int32))

    return jnp.where(head_of(r) == head_of(c), 0.0, NEG).astype(jnp.float32)


# ----------------------------------------------------------------------------- kernel
def model_kernel(x_ref, wqkv_ref, w1_ref, b1_ref, w2_ref, b2_ref,
                 w3_ref, b3_ref, gamma_ref, beta_ref, out_ref):
    bt, n, d = x_ref.shape
    m = bt * n
    gamma = gamma_ref[...]                      # (1, D) f32
    beta = beta_ref[...]                        # (1, D) f32

    x3 = x_ref[...]                             # (bt, N, D) f32
    # Layout-trivial merge: bt > 1 is only chosen when N % 8 == 0.
    x2 = x3.reshape(m, d)                       # (bt*N, D) f32
    xb = x2.astype(jnp.bfloat16)

    # Fused Q/K/V projection for all four heads: one MXU pass, heads packed
    # into 256-lane-aligned slots; bf16 operands, f32 accumulation.
    qkv = jnp.dot(xb, wqkv_ref[...], preferred_element_type=jnp.float32)
    qkvb = qkv.astype(jnp.bfloat16).reshape(bt, n, 3 * QKV_SLOT)
    qb = qkvb[..., 0:D_IN]                              # lane-aligned slices
    kb = qkvb[..., QKV_SLOT:QKV_SLOT + D_IN]
    vb = qkvb[..., 2 * QKV_SLOT:2 * QKV_SLOT + D_IN]

    # Batched feature-attention: scores[b, i, j] = sum_seq q[b, :, i] * k[b, :, j]
    sc = jnp.einsum('bnd,bne->bde', qb, kb, preferred_element_type=jnp.float32)
    sc = sc * SCALE + _attn_mask()              # block-diag mask == per-head softmax
    sc = sc - jnp.max(sc, axis=-1, keepdims=True)
    p = jnp.exp(sc)
    p = p * pl.reciprocal(jnp.sum(p, axis=-1, keepdims=True), approx=True)
    ctx = jnp.einsum('bnd,bde->bne', vb, p.astype(jnp.bfloat16),
                     preferred_element_type=jnp.float32)    # (bt, N, D)

    h = _layernorm(ctx.reshape(m, d) + x2, gamma, beta)     # shared LayerNorm (1st use)

    # MLP: Linear(169->338) GELU Linear(338->507) GELU Linear(507->169).
    z = _gelu(jnp.dot(h.astype(jnp.bfloat16), w1_ref[...],
                      preferred_element_type=jnp.float32) + b1_ref[...])
    z = _gelu(jnp.dot(z.astype(jnp.bfloat16), w2_ref[...],
                      preferred_element_type=jnp.float32) + b2_ref[...])
    z = jnp.dot(z.astype(jnp.bfloat16), w3_ref[...],
                preferred_element_type=jnp.float32) + b3_ref[...]

    out = _layernorm(z + h, gamma, beta)        # shared LayerNorm (2nd use)
    out_ref[...] = out.reshape(bt, n, d)


# ----------------------------------------------------------------------------- wrapper
def _pick_batch_block(B, N):
    """Batch elements per grid step.

    Targets bt*N ~ 256 MXU rows per step (full 256-row MXU on v6e/v7x), allows
    a single grid step for small workloads (overhead-bound), requires N % 8 == 0
    for bt > 1 so the in-kernel (bt,N,D)<->(bt*N,D) reshapes are layout no-ops,
    and caps bt so the (bt,169,169) f32 score buffer stays under ~6 MiB.
    """
    if B <= 1 or N % 8 != 0:
        return 1
    bt = min(B, max(1, pl.cdiv(256, N)))
    return min(bt, 32)


def _two_tensorcores():
    devs = jax.devices()
    return bool(devs) and "v7" in devs[0].device_kind.lower()


def _const_spec(shape):
    zeros = (0,) * len(shape)
    # Block index never changes across the grid -> Pallas skips re-DMA.
    return pl.BlockSpec(shape, lambda b, _z=zeros: _z)


def _build_call(B, N, bt):
    return pl.pallas_call(
        model_kernel,
        out_shape=jax.ShapeDtypeStruct((B, N, D_IN), jnp.float32),
        grid_spec=pltpu.PrefetchScalarGridSpec(
            num_scalar_prefetch=0,
            grid=(B // bt,),
            in_specs=[
                pl.BlockSpec((bt, N, D_IN), lambda b: (b, 0, 0)),   # x block
                _const_spec((D_IN, 3 * QKV_SLOT)),                  # fused Wq|Wk|Wv (bf16)
                _const_spec((D_IN, H1)), _const_spec((1, H1)),      # MLP linear 1
                _const_spec((H1, H2)), _const_spec((1, H2)),        # MLP linear 2
                _const_spec((H2, D_IN)), _const_spec((1, D_IN)),    # MLP linear 3
                _const_spec((1, D_IN)), _const_spec((1, D_IN)),     # LayerNorm gamma/beta
            ],
            out_specs=pl.BlockSpec((bt, N, D_IN), lambda b: (b, 0, 0)),
        ),
        compiler_params=pltpu.CompilerParams(
            dimension_semantics=("parallel",),
            # Realistic cap: per-step working set is a few MiB; leaves headroom
            # on v7x's 64 MiB physical VMEM and lifts v5e's 16 MiB default.
            vmem_limit_bytes=32 * 1024 * 1024,
        ),
    )


def model_self_attention(x, params, *, block_b=None):
    """x: (B, N, 169) float32 -> (B, N, 169) float32."""
    B, N, D = x.shape
    assert D == D_IN
    (wq, wk, wv, w1, b1, w2, b2, w3, b3, gamma, beta) = params

    # Fuse Q/K/V weights into 256-lane-aligned slots (one projection matmul,
    # lane-aligned slices in-kernel); bf16 weights for the MXU.  Biases/LN f32.
    wqkv = jnp.zeros((D_IN, 3 * QKV_SLOT), jnp.bfloat16)
    wqkv = wqkv.at[:, 0:D_IN].set(wq.astype(jnp.bfloat16))
    wqkv = wqkv.at[:, QKV_SLOT:QKV_SLOT + D_IN].set(wk.astype(jnp.bfloat16))
    wqkv = wqkv.at[:, 2 * QKV_SLOT:2 * QKV_SLOT + D_IN].set(wv.astype(jnp.bfloat16))
    w1b, w2b, w3b = (w.astype(jnp.bfloat16) for w in (w1, w2, w3))

    bt = _pick_batch_block(B, N) if block_b is None else block_b
    steps = pl.cdiv(B, bt)
    if steps > 1 and steps % 2 == 1 and _two_tensorcores():
        steps += 1           # even step count -> both v7x TensorCores stay busy
    b_pad = steps * bt
    x_in = x if b_pad == B else jnp.pad(x, ((0, b_pad - B), (0, 0), (0, 0)))

    out = _build_call(b_pad, N, bt)(
        x_in, wqkv, w1b, b1, w2b, b2, w3b, b3, gamma, beta)
    return out if b_pad == B else out[:B]


# ----------------------------------------------------------------------------- params / reference
def init_params(key):
    ks = jax.random.split(key, 16)
    rn = lambda k, shape, s: jax.random.normal(k, shape, jnp.float32) * jnp.float32(s)
    # SelfAttention weights: randn(d_in, d_out) / sqrt(d_out), concatenated over heads.
    wq = jnp.concatenate([rn(ks[i],     (D_IN, d), 1.0 / np.sqrt(d)) for i, d in enumerate(HEAD_DIMS)], -1)
    wk = jnp.concatenate([rn(ks[4 + i], (D_IN, d), 1.0 / np.sqrt(d)) for i, d in enumerate(HEAD_DIMS)], -1)
    wv = jnp.concatenate([rn(ks[8 + i], (D_IN, d), 1.0 / np.sqrt(d)) for i, d in enumerate(HEAD_DIMS)], -1)
    # MLP linears, (in, out) layout; deterministic small-scale init.
    w1 = rn(ks[12], (D_IN, H1), 1.0 / np.sqrt(D_IN)); b1 = jnp.zeros((1, H1), jnp.float32)
    w2 = rn(ks[13], (H1, H2),   1.0 / np.sqrt(H1));   b2 = jnp.zeros((1, H2), jnp.float32)
    w3 = rn(ks[14], (H2, D_IN), 1.0 / np.sqrt(H2));   b3 = jnp.zeros((1, D_IN), jnp.float32)
    # Shared LayerNorm params (PyTorch default init: weight=1, bias=0).
    gamma = jnp.ones((1, D_IN), jnp.float32)
    beta = jnp.zeros((1, D_IN), jnp.float32)
    return (wq, wk, wv, w1, b1, w2, b2, w3, b3, gamma, beta)


def reference(x, params, matmul_dtype=jnp.float32):
    """Pure-JAX mirror of the PyTorch forward (per-head attention loop).

    matmul_dtype=float32  -> numerically faithful to the PyTorch module.
    matmul_dtype=bfloat16 -> same operand precision as the Pallas kernel
                             (bf16 MXU inputs, f32 accumulation everywhere).
    """
    (wq, wk, wv, w1, b1, w2, b2, w3, b3, gamma, beta) = params
    c = lambda t: t.astype(matmul_dtype)
    mm = lambda eq, a, b: jnp.einsum(eq, c(a), c(b), preferred_element_type=jnp.float32)
    ln = lambda t: _layernorm(t, gamma, beta)

    q = mm('bnd,de->bne', x, wq)
    k = mm('bnd,de->bne', x, wk)
    v = mm('bnd,de->bne', x, wv)
    parts = []
    for s, e in zip(HEAD_SPLITS[:-1], HEAD_SPLITS[1:]):
        sc = mm('bnd,bne->bde', q[..., s:e], k[..., s:e]) * (1.0 / np.sqrt(D_IN))
        p = jax.nn.softmax(sc, axis=-1)
        parts.append(mm('bnd,bde->bne', v[..., s:e], p))
    h = ln(jnp.concatenate(parts, axis=-1) + x)
    z = _gelu(mm('bnd,dh->bnh', h, w1) + b1)
    z = _gelu(mm('bnh,hk->bnk', z, w2) + b2)
    z = mm('bnk,kd->bnd', z, w3) + b3
    return ln(z + h)


# ----------------------------------------------------------------------------- demo / checks
if __name__ == "__main__":
    key = jax.random.PRNGKey(0)
    kx, kp = jax.random.split(key)
    params = init_params(kp)

    # Small shapes consistent with the module: (batch=2, seq=8, d_in=169).
    B, N = 2, 8
    x = jax.random.normal(kx, (B, N, D_IN), jnp.float32)

    out = jax.block_until_ready(model_self_attention(x, params))
    assert out.shape == (B, N, D_IN) and out.dtype == jnp.float32

    # Tight check against a precision-matched (bf16-operand) reference: catches
    # any masking / layout / indexing bug in the fused attention rewrite.
    ref_match = reference(x, params, matmul_dtype=jnp.bfloat16)
    err_tight = float(jnp.max(jnp.abs(out - ref_match)))
    assert err_tight < 2e-2, f"precision-matched reference mismatch: {err_tight}"

    # Loose sanity check against the fully-f32, PyTorch-faithful reference
    # (difference is only the deliberate bf16-MXU precision tradeoff).
    ref_f32 = reference(x, params, matmul_dtype=jnp.float32)
    err_loose = float(jnp.max(jnp.abs(out - ref_f32)))
    assert err_loose < 0.5, f"f32 reference mismatch: {err_loose}"

    # Exercise the batched multi-step grid + batch-padding path
    # (N=8 -> bt=32, B=40 -> padded to a whole number of 32-wide steps).
    x_big = jax.random.normal(jax.random.PRNGKey(1), (40, N, D_IN), jnp.float32)
    out_big = jax.block_until_ready(model_self_attention(x_big, params))
    err_big = float(jnp.max(jnp.abs(out_big - reference(x_big, params, jnp.bfloat16))))
    assert err_big < 2e-2, f"batched-path mismatch: {err_big}"

    print("KERNEL_OK")
</pallas_src>

<mosaic_0001>
module attributes {stable_mosaic.version = 11 : i64} {
  func.func @model_kernel(%arg0: i32, %arg1: memref<2x8x169xf32, #tpu.memory_space<vmem>>, %arg2: memref<169x768xbf16, #tpu.memory_space<vmem>>, %arg3: memref<169x338xbf16, #tpu.memory_space<vmem>>, %arg4: memref<1x338xf32, #tpu.memory_space<vmem>>, %arg5: memref<338x507xbf16, #tpu.memory_space<vmem>>, %arg6: memref<1x507xf32, #tpu.memory_space<vmem>>, %arg7: memref<507x169xbf16, #tpu.memory_space<vmem>>, %arg8: memref<1x169xf32, #tpu.memory_space<vmem>>, %arg9: memref<1x169xf32, #tpu.memory_space<vmem>>, %arg10: memref<1x169xf32, #tpu.memory_space<vmem>>, %arg11: memref<2x8x169xf32, #tpu.memory_space<vmem>>) attributes {dimension_semantics = [#tpu.dimension_semantics<parallel>], iteration_bounds = array<i64: 1>, scalar_prefetch = 0 : i64, scratch_operands = 0 : i64, tpu.core_type = #tpu.core_type<tc>, window_params = [{transform_indices = @transform_0, window_bounds = array<i64: 2, 8, 169>}, {pipeline_mode = #tpu.pipeline_mode<synchronous>, transform_indices = @transform_1, window_bounds = array<i64: 169, 768>}, {pipeline_mode = #tpu.pipeline_mode<synchronous>, transform_indices = @transform_2, window_bounds = array<i64: 169, 338>}, {pipeline_mode = #tpu.pipeline_mode<synchronous>, transform_indices = @transform_3, window_bounds = array<i64: 1, 338>}, {pipeline_mode = #tpu.pipeline_mode<synchronous>, transform_indices = @transform_4, window_bounds = array<i64: 338, 507>}, {pipeline_mode = #tpu.pipeline_mode<synchronous>, transform_indices = @transform_5, window_bounds = array<i64: 1, 507>}, {pipeline_mode = #tpu.pipeline_mode<synchronous>, transform_indices = @transform_6, window_bounds = array<i64: 507, 169>}, {pipeline_mode = #tpu.pipeline_mode<synchronous>, transform_indices = @transform_7, window_bounds = array<i64: 1, 169>}, {pipeline_mode = #tpu.pipeline_mode<synchronous>, transform_indices = @transform_8, window_bounds = array<i64: 1, 169>}, {pipeline_mode = #tpu.pipeline_mode<synchronous>, transform_indices = @transform_9, window_bounds = array<i64: 1, 169>}, {transform_indices = @transform_10, window_bounds = array<i64: 2, 8, 169>}]} {
    %c0 = arith.constant 0 : index
    %c0_0 = arith.constant 0 : index
    %0 = vector.load %arg9[%c0, %c0_0] : memref<1x169xf32, #tpu.memory_space<vmem>>, vector<1x169xf32>
    %c0_1 = arith.constant 0 : index
    %c0_2 = arith.constant 0 : index
    %1 = vector.load %arg10[%c0_1, %c0_2] : memref<1x169xf32, #tpu.memory_space<vmem>>, vector<1x169xf32>
    %c0_3 = arith.constant 0 : index
    %c0_4 = arith.constant 0 : index
    %c0_5 = arith.constant 0 : index
    %2 = vector.load %arg1[%c0_3, %c0_4, %c0_5] : memref<2x8x169xf32, #tpu.memory_space<vmem>>, vector<2x8x169xf32>
    %3 = vector.shape_cast %2 : vector<2x8x169xf32> to vector<16x169xf32>
    %4 = arith.truncf %3 : vector<16x169xf32> to vector<16x169xbf16>
    %c0_6 = arith.constant 0 : index
    %c0_7 = arith.constant 0 : index
    %5 = vector.load %arg2[%c0_6, %c0_7] : memref<169x768xbf16, #tpu.memory_space<vmem>>, vector<169x768xbf16>
    %cst = arith.constant dense<0.000000e+00> : vector<16x768xf32>
    %6 = tpu.matmul %4, %5, %cst {dimension_numbers = #tpu.dot_dimension_numbers<[1], [0], [0], [1], [0, 0, 1, 1], [], []>} : vector<16x169xbf16>, vector<169x768xbf16>, vector<16x768xf32> -> vector<16x768xf32>
    %7 = arith.truncf %6 : vector<16x768xf32> to vector<16x768xbf16>
    %8 = vector.shape_cast %7 : vector<16x768xbf16> to vector<2x8x768xbf16>
    %9 = vector.extract_strided_slice %8 {offsets = [0, 0, 0], sizes = [2, 8, 169], strides = [1, 1, 1]} : vector<2x8x768xbf16> to vector<2x8x169xbf16>
    %10 = vector.extract_strided_slice %8 {offsets = [0, 0, 256], sizes = [2, 8, 169], strides = [1, 1, 1]} : vector<2x8x768xbf16> to vector<2x8x169xbf16>
    %11 = vector.extract_strided_slice %8 {offsets = [0, 0, 512], sizes = [2, 8, 169], strides = [1, 1, 1]} : vector<2x8x768xbf16> to vector<2x8x169xbf16>
    "tpu.trace_start"() <{level = 10 : i32, message = "bnd,bne->bde"}> : () -> ()
    %cst_8 = arith.constant dense<0.000000e+00> : vector<2x169x169xf32>
    %12 = tpu.matmul %9, %10, %cst_8 {dimension_numbers = #tpu.dot_dimension_numbers<[1], [1], [2], [2], [0, 0, 0, 2, 1, 2], [0], [0]>} : vector<2x8x169xbf16>, vector<2x8x169xbf16>, vector<2x169x169xf32> -> vector<2x169x169xf32>
    "tpu.trace_stop"() : () -> ()
    %cst_9 = arith.constant 0.0769230798 : f32
    %13 = vector.broadcast %cst_9 : f32 to vector<2x169x169xf32>
    %14 = arith.mulf %12, %13 : vector<2x169x169xf32>
    %15 = tpu.iota {dimensions = array<i32: 0>} : vector<169x169xi32>
    %16 = tpu.iota {dimensions = array<i32: 1>} : vector<169x169xi32>
    %c42_i32 = arith.constant 42 : i32
    %17 = vector.broadcast %c42_i32 : i32 to vector<169x169xi32>
    %18 = arith.cmpi sge, %15, %17 : vector<169x169xi32>
    %19 = arith.extui %18 : vector<169x169xi1> to vector<169x169xi32>
    %c84_i32 = arith.constant 84 : i32
    %20 = vector.broadcast %c84_i32 : i32 to vector<169x169xi32>
    %21 = arith.cmpi sge, %15, %20 : vector<169x169xi32>
    %22 = arith.extui %21 : vector<169x169xi1> to vector<169x169xi32>
    %23 = arith.addi %19, %22 : vector<169x169xi32>
    %c126_i32 = arith.constant 126 : i32
    %24 = vector.broadcast %c126_i32 : i32 to vector<169x169xi32>
    %25 = arith.cmpi sge, %15, %24 : vector<169x169xi32>
    %26 = arith.extui %25 : vector<169x169xi1> to vector<169x169xi32>
    %27 = arith.addi %23, %26 : vector<169x169xi32>
    %c42_i32_10 = arith.constant 42 : i32
    %28 = vector.broadcast %c42_i32_10 : i32 to vector<169x169xi32>
    %29 = arith.cmpi sge, %16, %28 : vector<169x169xi32>
    %30 = arith.extui %29 : vector<169x169xi1> to vector<169x169xi32>
    %c84_i32_11 = arith.constant 84 : i32
    %31 = vector.broadcast %c84_i32_11 : i32 to vector<169x169xi32>
    %32 = arith.cmpi sge, %16, %31 : vector<169x169xi32>
    %33 = arith.extui %32 : vector<169x169xi1> to vector<169x169xi32>
    %34 = arith.addi %30, %33 : vector<169x169xi32>
    %c126_i32_12 = arith.constant 126 : i32
    %35 = vector.broadcast %c126_i32_12 : i32 to vector<169x169xi32>
    %36 = arith.cmpi sge, %16, %35 : vector<169x169xi32>
    %37 = arith.extui %36 : vector<169x169xi1> to vector<169x169xi32>
    %38 = arith.addi %34, %37 : vector<169x169xi32>
    %39 = arith.cmpi eq, %27, %38 : vector<169x169xi32>
    %cst_13 = arith.constant 0.000000e+00 : f32
    %cst_14 = arith.constant -1.000000e+30 : f32
    %40 = vector.broadcast %cst_13 : f32 to vector<169x169xf32>
    %41 = vector.broadcast %cst_14 : f32 to vector<169x169xf32>
    %42 = arith.select %39, %40, %41 : vector<169x169xi1>, vector<169x169xf32>
    %43 = vector.shape_cast %42 : vector<169x169xf32> to vector<1x169x169xf32>
    %44 = vector.broadcast %43 : vector<1x169x169xf32> to vector<2x169x169xf32>
    %45 = arith.addf %14, %44 : vector<2x169x169xf32>
    %cst_15 = arith.constant dense<0xFF800000> : vector<2x169xf32>
    %46 = vector.multi_reduction <maximumf>, %45, %cst_15 [2] : vector<2x169x169xf32> to vector<2x169xf32>
    %47 = vector.shape_cast %46 : vector<2x169xf32> to vector<2x169x1xf32>
    %48 = vector.broadcast %47 : vector<2x169x1xf32> to vector<2x169x169xf32>
    %49 = arith.subf %45, %48 : vector<2x169x169xf32>
    %50 = math.exp %49 : vector<2x169x169xf32>
    %cst_16 = arith.constant dense<0.000000e+00> : vector<2x169xf32>
    %51 = vector.multi_reduction <add>, %50, %cst_16 [2] : vector<2x169x169xf32> to vector<2x169xf32>
    %52 = vector.shape_cast %51 : vector<2x169xf32> to vector<2x169x1xf32>
    %53 = tpu.reciprocal %52 {approx = true} : vector<2x169x1xf32> -> vector<2x169x1xf32>
    %54 = vector.broadcast %53 : vector<2x169x1xf32> to vector<2x169x169xf32>
    %55 = arith.mulf %50, %54 : vector<2x169x169xf32>
    %56 = arith.truncf %55 : vector<2x169x169xf32> to vector<2x169x169xbf16>
    "tpu.trace_start"() <{level = 10 : i32, message = "bnd,bde->bne"}> : () -> ()
    %cst_17 = arith.constant dense<0.000000e+00> : vector<2x8x169xf32>
    %57 = tpu.matmul %11, %56, %cst_17 {dimension_numbers = #tpu.dot_dimension_numbers<[2], [1], [1], [2], [0, 0, 0, 1, 1, 2], [0], [0]>} : vector<2x8x169xbf16>, vector<2x169x169xbf16>, vector<2x8x169xf32> -> vector<2x8x169xf32>
    "tpu.trace_stop"() : () -> ()
    %58 = vector.shape_cast %57 : vector<2x8x169xf32> to vector<16x169xf32>
    %59 = arith.addf %58, %3 : vector<16x169xf32>
    %cst_18 = arith.constant dense<0.000000e+00> : vector<16xf32>
    %60 = vector.multi_reduction <add>, %59, %cst_18 [1] : vector<16x169xf32> to vector<16xf32>
    %61 = vector.shape_cast %60 : vector<16xf32> to vector<16x1xf32>
    %cst_19 = arith.constant 1.690000e+02 : f32
    %62 = vector.broadcast %cst_19 : f32 to vector<16x1xf32>
    %63 = arith.divf %61, %62 : vector<16x1xf32>
    %64 = vector.broadcast %63 : vector<16x1xf32> to vector<16x169xf32>
    %65 = arith.subf %59, %64 : vector<16x169xf32>
    %66 = arith.mulf %65, %65 : vector<16x169xf32>
    %cst_20 = arith.constant dense<0.000000e+00> : vector<16xf32>
    %67 = vector.multi_reduction <add>, %66, %cst_20 [1] : vector<16x169xf32> to vector<16xf32>
    %68 = vector.shape_cast %67 : vector<16xf32> to vector<16x1xf32>
    %cst_21 = arith.constant 1.690000e+02 : f32
    %69 = vector.broadcast %cst_21 : f32 to vector<16x1xf32>
    %70 = arith.divf %68, %69 : vector<16x1xf32>
    %71 = vector.broadcast %63 : vector<16x1xf32> to vector<16x169xf32>
    %72 = arith.subf %59, %71 : vector<16x169xf32>
    %cst_22 = arith.constant 9.99999974E-6 : f32
    %73 = vector.broadcast %cst_22 : f32 to vector<16x1xf32>
    %74 = arith.addf %70, %73 : vector<16x1xf32>
    %75 = math.rsqrt %74 : vector<16x1xf32>
    %76 = vector.broadcast %75 : vector<16x1xf32> to vector<16x169xf32>
    %77 = arith.mulf %72, %76 : vector<16x169xf32>
    %78 = vector.broadcast %0 : vector<1x169xf32> to vector<16x169xf32>
    %79 = arith.mulf %77, %78 : vector<16x169xf32>
    %80 = vector.broadcast %1 : vector<1x169xf32> to vector<16x169xf32>
    %81 = arith.addf %79, %80 : vector<16x169xf32>
    %82 = arith.truncf %81 : vector<16x169xf32> to vector<16x169xbf16>
    %c0_23 = arith.constant 0 : index
    %c0_24 = arith.constant 0 : index
    %83 = vector.load %arg3[%c0_23, %c0_24] : memref<169x338xbf16, #tpu.memory_space<vmem>>, vector<169x338xbf16>
    %cst_25 = arith.constant dense<0.000000e+00> : vector<16x338xf32>
    %84 = tpu.matmul %82, %83, %cst_25 {dimension_numbers = #tpu.dot_dimension_numbers<[1], [0], [0], [1], [0, 0, 1, 1], [], []>} : vector<16x169xbf16>, vector<169x338xbf16>, vector<16x338xf32> -> vector<16x338xf32>
    %c0_26 = arith.constant 0 : index
    %c0_27 = arith.constant 0 : index
    %85 = vector.load %arg4[%c0_26, %c0_27] : memref<1x338xf32, #tpu.memory_space<vmem>>, vector<1x338xf32>
    %86 = vector.broadcast %85 : vector<1x338xf32> to vector<16x338xf32>
    %87 = arith.addf %84, %86 : vector<16x338xf32>
    %cst_28 = arith.constant 5.000000e-01 : f32
    %88 = vector.broadcast %cst_28 : f32 to vector<16x338xf32>
    %89 = arith.mulf %88, %87 : vector<16x338xf32>
    %cst_29 = arith.constant 0.707106769 : f32
    %90 = vector.broadcast %cst_29 : f32 to vector<16x338xf32>
    %91 = arith.mulf %87, %90 : vector<16x338xf32>
    %92 = math.erf %91 : vector<16x338xf32>
    %cst_30 = arith.constant 1.000000e+00 : f32
    %93 = vector.broadcast %cst_30 : f32 to vector<16x338xf32>
    %94 = arith.addf %93, %92 : vector<16x338xf32>
    %95 = arith.mulf %89, %94 : vector<16x338xf32>
    %96 = arith.truncf %95 : vector<16x338xf32> to vector<16x338xbf16>
    %c0_31 = arith.constant 0 : index
    %c0_32 = arith.constant 0 : index
    %97 = vector.load %arg5[%c0_31, %c0_32] : memref<338x507xbf16, #tpu.memory_space<vmem>>, vector<338x507xbf16>
    %cst_33 = arith.constant dense<0.000000e+00> : vector<16x507xf32>
    %98 = tpu.matmul %96, %97, %cst_33 {dimension_numbers = #tpu.dot_dimension_numbers<[1], [0], [0], [1], [0, 0, 1, 1], [], []>} : vector<16x338xbf16>, vector<338x507xbf16>, vector<16x507xf32> -> vector<16x507xf32>
    %c0_34 = arith.constant 0 : index
    %c0_35 = arith.constant 0 : index
    %99 = vector.load %arg6[%c0_34, %c0_35] : memref<1x507xf32, #tpu.memory_space<vmem>>, vector<1x507xf32>
    %100 = vector.broadcast %99 : vector<1x507xf32> to vector<16x507xf32>
    %101 = arith.addf %98, %100 : vector<16x507xf32>
    %cst_36 = arith.constant 5.000000e-01 : f32
    %102 = vector.broadcast %cst_36 : f32 to vector<16x507xf32>
    %103 = arith.mulf %102, %101 : vector<16x507xf32>
    %cst_37 = arith.constant 0.707106769 : f32
    %104 = vector.broadcast %cst_37 : f32 to vector<16x507xf32>
    %105 = arith.mulf %101, %104 : vector<16x507xf32>
    %106 = math.erf %105 : vector<16x507xf32>
    %cst_38 = arith.constant 1.000000e+00 : f32
    %107 = vector.broadcast %cst_38 : f32 to vector<16x507xf32>
    %108 = arith.addf %107, %106 : vector<16x507xf32>
    %109 = arith.mulf %103, %108 : vector<16x507xf32>
    %110 = arith.truncf %109 : vector<16x507xf32> to vector<16x507xbf16>
    %c0_39 = arith.constant 0 : index
    %c0_40 = arith.constant 0 : index
    %111 = vector.load %arg7[%c0_39, %c0_40] : memref<507x169xbf16, #tpu.memory_space<vmem>>, vector<507x169xbf16>
    %cst_41 = arith.constant dense<0.000000e+00> : vector<16x169xf32>
    %112 = tpu.matmul %110, %111, %cst_41 {dimension_numbers = #tpu.dot_dimension_numbers<[1], [0], [0], [1], [0, 0, 1, 1], [], []>} : vector<16x507xbf16>, vector<507x169xbf16>, vector<16x169xf32> -> vector<16x169xf32>
    %c0_42 = arith.constant 0 : index
    %c0_43 = arith.constant 0 : index
    %113 = vector.load %arg8[%c0_42, %c0_43] : memref<1x169xf32, #tpu.memory_space<vmem>>, vector<1x169xf32>
    %114 = vector.broadcast %113 : vector<1x169xf32> to vector<16x169xf32>
    %115 = arith.addf %112, %114 : vector<16x169xf32>
    %116 = arith.addf %115, %81 : vector<16x169xf32>
    %cst_44 = arith.constant dense<0.000000e+00> : vector<16xf32>
    %117 = vector.multi_reduction <add>, %116, %cst_44 [1] : vector<16x169xf32> to vector<16xf32>
    %118 = vector.shape_cast %117 : vector<16xf32> to vector<16x1xf32>
    %cst_45 = arith.constant 1.690000e+02 : f32
    %119 = vector.broadcast %cst_45 : f32 to vector<16x1xf32>
    %120 = arith.divf %118, %119 : vector<16x1xf32>
    %121 = vector.broadcast %120 : vector<16x1xf32> to vector<16x169xf32>
    %122 = arith.subf %116, %121 : vector<16x169xf32>
    %123 = arith.mulf %122, %122 : vector<16x169xf32>
    %cst_46 = arith.constant dense<0.000000e+00> : vector<16xf32>
    %124 = vector.multi_reduction <add>, %123, %cst_46 [1] : vector<16x169xf32> to vector<16xf32>
    %125 = vector.shape_cast %124 : vector<16xf32> to vector<16x1xf32>
    %cst_47 = arith.constant 1.690000e+02 : f32
    %126 = vector.broadcast %cst_47 : f32 to vector<16x1xf32>
    %127 = arith.divf %125, %126 : vector<16x1xf32>
    %128 = vector.broadcast %120 : vector<16x1xf32> to vector<16x169xf32>
    %129 = arith.subf %116, %128 : vector<16x169xf32>
    %cst_48 = arith.constant 9.99999974E-6 : f32
    %130 = vector.broadcast %cst_48 : f32 to vector<16x1xf32>
    %131 = arith.addf %127, %130 : vector<16x1xf32>
    %132 = math.rsqrt %131 : vector<16x1xf32>
    %133 = vector.broadcast %132 : vector<16x1xf32> to vector<16x169xf32>
    %134 = arith.mulf %129, %133 : vector<16x169xf32>
    %135 = vector.broadcast %0 : vector<1x169xf32> to vector<16x169xf32>
    %136 = arith.mulf %134, %135 : vector<16x169xf32>
    %137 = vector.broadcast %1 : vector<1x169xf32> to vector<16x169xf32>
    %138 = arith.addf %136, %137 : vector<16x169xf32>
    %139 = vector.shape_cast %138 : vector<16x169xf32> to vector<2x8x169xf32>
    %c0_49 = arith.constant 0 : index
    %c0_50 = arith.constant 0 : index
    %c0_51 = arith.constant 0 : index
    %140 = vector.load %arg11[%c0_49, %c0_50, %c0_51] : memref<2x8x169xf32, #tpu.memory_space<vmem>>, vector<2x8x169xf32>
    tpu.vector_store %arg11[%c0_49, %c0_50, %c0_51], %139 {strides = array<i32>} : memref<2x8x169xf32, #tpu.memory_space<vmem>>, vector<2x8x169xf32>,
    return
  }
  func.func @transform_0(%arg0: i32) -> (i32, i32, i32) {
    %c0_i32 = arith.constant 0 : i32
    %c0_i32_0 = arith.constant 0 : i32
    %c0_i32_1 = arith.constant 0 : i32
    return %arg0, %c0_i32, %c0_i32_0 : i32, i32, i32
  }
  func.func @transform_1(%arg0: i32) -> (i32, i32) {
    %c0_i32 = arith.constant 0 : i32
    %c0_i32_0 = arith.constant 0 : i32
    %c0_i32_1 = arith.constant 0 : i32
    return %c0_i32, %c0_i32_0 : i32, i32
  }
  func.func @transform_2(%arg0: i32) -> (i32, i32) {
    %c0_i32 = arith.constant 0 : i32
    %c0_i32_0 = arith.constant 0 : i32
    %c0_i32_1 = arith.constant 0 : i32
    return %c0_i32, %c0_i32_0 : i32, i32
  }
  func.func @transform_3(%arg0: i32) -> (i32, i32) {
    %c0_i32 = arith.constant 0 : i32
    %c0_i32_0 = arith.constant 0 : i32
    %c0_i32_1 = arith.constant 0 : i32
    return %c0_i32, %c0_i32_0 : i32, i32
  }
  func.func @transform_4(%arg0: i32) -> (i32, i32) {
    %c0_i32 = arith.constant 0 : i32
    %c0_i32_0 = arith.constant 0 : i32
    %c0_i32_1 = arith.constant 0 : i32
    return %c0_i32, %c0_i32_0 : i32, i32
  }
  func.func @transform_5(%arg0: i32) -> (i32, i32) {
    %c0_i32 = arith.constant 0 : i32
    %c0_i32_0 = arith.constant 0 : i32
    %c0_i32_1 = arith.constant 0 : i32
    return %c0_i32, %c0_i32_0 : i32, i32
  }
  func.func @transform_6(%arg0: i32) -> (i32, i32) {
    %c0_i32 = arith.constant 0 : i32
    %c0_i32_0 = arith.constant 0 : i32
    %c0_i32_1 = arith.constant 0 : i32
    return %c0_i32, %c0_i32_0 : i32, i32
  }
  func.func @transform_7(%arg0: i32) -> (i32, i32) {
    %c0_i32 = arith.constant 0 : i32
    %c0_i32_0 = arith.constant 0 : i32
    %c0_i32_1 = arith.constant 0 : i32
    return %c0_i32, %c0_i32_0 : i32, i32
  }
  func.func @transform_8(%arg0: i32) -> (i32, i32) {
    %c0_i32 = arith.constant 0 : i32
    %c0_i32_0 = arith.constant 0 : i32
    %c0_i32_1 = arith.constant 0 : i32
    return %c0_i32, %c0_i32_0 : i32, i32
  }
  func.func @transform_9(%arg0: i32) -> (i32, i32) {
    %c0_i32 = arith.constant 0 : i32
    %c0_i32_0 = arith.constant 0 : i32
    %c0_i32_1 = arith.constant 0 : i32
    return %c0_i32, %c0_i32_0 : i32, i32
  }
  func.func @transform_10(%arg0: i32) -> (i32, i32, i32) {
    %c0_i32 = arith.constant 0 : i32
    %c0_i32_0 = arith.constant 0 : i32
    %c0_i32_1 = arith.constant 0 : i32
    return %arg0, %c0_i32, %c0_i32_0 : i32, i32, i32
  }
}

</mosaic_0001>

<llo_original>
// kernel: tpu_custom_call.1
$region0: #{tpu_custom_call.1}
  #allocation0 [shape = 'u32[]', space=smem, size = 0x4, offset = 0x4, fixed_abs, tag = 'smem constant byte address 0x4 - core index']
  #allocation1 [shape = 'u32[144,128]{1,0:T(1,128)}', space=vmem, size = 0x12000, scoped, tag = 'internal scratch']
  %s0 = inlined_call_operand.vmem [shape: f32[2,8,169], index: 0, kind: input, shape index: {}]
  %s1 = inlined_call_operand.hbm [shape: bf16[169,768], index: 1, kind: input, shape index: {}]
  %s2 = inlined_call_operand.hbm [shape: bf16[169,338], index: 2, kind: input, shape index: {}]
  %s3 = inlined_call_operand.vmem [shape: f32[1,338], index: 3, kind: input, shape index: {}]
  %s4 = inlined_call_operand.vmem [shape: bf16[338,507], index: 4, kind: input, shape index: {}]
  %s5 = inlined_call_operand.vmem [shape: f32[1,507], index: 5, kind: input, shape index: {}]
  %s6 = inlined_call_operand.vmem [shape: bf16[507,169], index: 6, kind: input, shape index: {}]
  %s7 = inlined_call_operand.vmem [shape: f32[1,169], index: 7, kind: input, shape index: {}]
  %s8 = inlined_call_operand.vmem [shape: f32[1,169], index: 8, kind: input, shape index: {}]
  %s9 = inlined_call_operand.vmem [shape: f32[1,169], index: 9, kind: input, shape index: {}]
  %s10 = inlined_call_operand.hbm [shape: f32[2,8,169], index: 10, kind: output, shape index: {}]
  %s11 = sld [smem:[#allocation0]]
  $region58: #{tpu_custom_call.1} parent=0
    _
  %s13 = ssub.s32 1, %s11
  %s14 = scalar_select 0, %s13, %s11
  $region1: #{tpu_custom_call.1} parent=0
    #allocation2 [shape = 'u8[270336]{0}', space=vmem, size = 0x42000, scoped, tag = 'input window, operand 1, single buffered']
    #allocation3 [shape = 's32[1]{0}', space=sflag, size = 0x4, scoped, tag = 'scoped memory for tpu_custom_call.1']
    #allocation4 [shape = 's32[1]{0}', space=sflag, size = 0x4, scoped, tag = 'scoped memory for tpu_custom_call.1']
    #allocation5 [shape = 'u8[135168]{0}', space=vmem, size = 0x21000, scoped, tag = 'input window, operand 2, single buffered']
    #allocation6 [shape = 's32[1]{0}', space=sflag, size = 0x4, scoped, tag = 'scoped memory for tpu_custom_call.1']
    #allocation7 [shape = 'u8[16384]{0}', space=vmem, size = 0x4000, scoped, tag = 'output window, operand 0, single buffered']
    %15 = vsyncpa [#allocation3], 0
    %16 = vsyncpa [#allocation6], 0
    %17 = vsyncpa [#allocation4], 0
    // Predicated region
    $region2: #{tpu_custom_call.1} parent=1 // pred_check
      _
    $region3: #{tpu_custom_call.1} parent=1 // pred_check_branch
      %19 = sbr.rel (0) target = $region5
    $region4: #{tpu_custom_call.1} parent=1 // pred_region
      _
    $region5: #{tpu_custom_call.1} parent=1 // pred_fallthru
      _
    // Predicated region
    $region6: #{tpu_custom_call.1} parent=1 // pred_check
      _
    $region7: #{tpu_custom_call.1} parent=1 // pred_check_branch
      %21 = sbr.rel (0) target = $region9
    $region8: #{tpu_custom_call.1} parent=1 // pred_region
      %s23 = ssub.s32 8448, 8448
      %24 = vsyncadd [#allocation3], %s23
      %s25 = sshll.u32 [#allocation2], 4
      %s26 = int_to_ptr.vmem [resolvable:$true] %s25
      %31 = dma.hbm_to_vmem [thread:$0]  %s1, 8448, %s26, [#allocation3], 384, 384, 24
    $region9: #{tpu_custom_call.1} parent=1 // pred_fallthru
      _
    // Predicated region
    $region10: #{tpu_custom_call.1} parent=1 // pred_check
      _
    $region11: #{tpu_custom_call.1} parent=1 // pred_check_branch
      %33 = sbr.rel (0) target = $region13
    $region12: #{tpu_custom_call.1} parent=1 // pred_region
      %s35 = ssub.s32 4224, 4224
      %36 = vsyncadd [#allocation6], %s35
      %s37 = sshll.u32 [#allocation5], 4
      %s38 = int_to_ptr.vmem [resolvable:$true] %s37
      %43 = dma.hbm_to_vmem [thread:$0]  %s2, 4224, %s38, [#allocation6], 192, 192, 12
    $region13: #{tpu_custom_call.1} parent=1 // pred_fallthru
      _
    // Predicated region
    $region14: #{tpu_custom_call.1} parent=1 // pred_check
      _
    $region15: #{tpu_custom_call.1} parent=1 // pred_check_branch
      %45 = sbr.rel (0) target = $region17
    $region16: #{tpu_custom_call.1} parent=1 // pred_region
      _
    $region17: #{tpu_custom_call.1} parent=1 // pred_fallthru
      _
    // Predicated region
    $region18: #{tpu_custom_call.1} parent=1 // pred_check
      _
    $region19: #{tpu_custom_call.1} parent=1 // pred_check_branch
      %47 = sbr.rel (0) target = $region21
    $region20: #{tpu_custom_call.1} parent=1 // pred_region
      _
    $region21: #{tpu_custom_call.1} parent=1 // pred_fallthru
      _
    // Predicated region
    $region22: #{tpu_custom_call.1} parent=1 // pred_check
      _
    $region23: #{tpu_custom_call.1} parent=1 // pred_check_branch
      %49 = sbr.rel (0) target = $region25
    $region24: #{tpu_custom_call.1} parent=1 // pred_region
      _
    $region25: #{tpu_custom_call.1} parent=1 // pred_fallthru
      _
    // Predicated region
    $region26: #{tpu_custom_call.1} parent=1 // pred_check
      _
    $region27: #{tpu_custom_call.1} parent=1 // pred_check_branch
      %51 = sbr.rel (0) target = $region29
    $region28: #{tpu_custom_call.1} parent=1 // pred_region
      _
    $region29: #{tpu_custom_call.1} parent=1 // pred_fallthru
      _
    // Predicated region
    $region30: #{tpu_custom_call.1} parent=1 // pred_check
      _
    $region31: #{tpu_custom_call.1} parent=1 // pred_check_branch
      %53 = sbr.rel (0) target = $region33
    $region32: #{tpu_custom_call.1} parent=1 // pred_region
      _
    $region33: #{tpu_custom_call.1} parent=1 // pred_fallthru
      _
    // Predicated region
    $region34: #{tpu_custom_call.1} parent=1 // pred_check
      _
    $region35: #{tpu_custom_call.1} parent=1 // pred_check_branch
      %55 = sbr.rel (0) target = $region37
    $region36: #{tpu_custom_call.1} parent=1 // pred_region
      _
    $region37: #{tpu_custom_call.1} parent=1 // pred_fallthru
      _
    // Predicated region
    $region38: #{tpu_custom_call.1} parent=1 // pred_check
      _
    $region39: #{tpu_custom_call.1} parent=1 // pred_check_branch
      %57 = sbr.rel (0) target = $region41
    $region40: #{tpu_custom_call.1} parent=1 // pred_region
      _
    $region41: #{tpu_custom_call.1} parent=1 // pred_fallthru
      _
    // Predicated region
    $region42: #{tpu_custom_call.1} parent=1 // pred_check
      _
    $region43: #{tpu_custom_call.1} parent=1 // pred_check_branch
      %59 = sbr.rel (0) target = $region45
    $region44: #{tpu_custom_call.1} parent=1 // pred_region
      %60 = dma.done [#allocation3], 8448
    $region45: #{tpu_custom_call.1} parent=1 // pred_fallthru
      _
    // Predicated region
    $region46: #{tpu_custom_call.1} parent=1 // pred_check
      _
    $region47: #{tpu_custom_call.1} parent=1 // pred_check_branch
      %62 = sbr.rel (0) target = $region49
    $region48: #{tpu_custom_call.1} parent=1 // pred_region
      %63 = dma.done [#allocation6], 4224
    $region49: #{tpu_custom_call.1} parent=1 // pred_fallthru
      _
    %v65 = vld [vmem:[%s8] sm:$0x3]
    %v66 = vld [vmem:[%s9] sm:$0x3]
    %v67 = vld [vmem:[%s0] sm:$0xff]
    %v68 = vld [vmem:[%s0 + $0x8] sm:$0xff]
    %v69 = vld [vmem:[%s0 + $0x10] sm:$0xff]
    %v70 = vld [vmem:[%s0 + $0x18] sm:$0xff]
    %v71 = vpack.c.bf16 %v69, %v67
    %v72 = vpack.c.bf16 %v70, %v68
    %v73 = vld [vmem:[#allocation2] sm:$0xff]
    %v74 = vld [vmem:[#allocation2 + $0x8] sm:$0xff]
    %v75 = vld [vmem:[#allocation2 + $0x10] sm:$0xff]
    %v76 = vld [vmem:[#allocation2 + $0x18] sm:$0xff]
    %v77 = vld [vmem:[#allocation2 + $0x20] sm:$0xff]
    %v78 = vld [vmem:[#allocation2 + $0x28] sm:$0xff]
    %v79 = vld [vmem:[#allocation2 + $0x30] sm:$0xff]
    %v80 = vld [vmem:[#allocation2 + $0x38] sm:$0xff]
    %v81 = vld [vmem:[#allocation2 + $0x40] sm:$0xff]
    %v82 = vld [vmem:[#allocation2 + $0x48] sm:$0xff]
    %v83 = vld [vmem:[#allocation2 + $0x50] sm:$0xff]
    %v84 = vld [vmem:[#allocation2 + $0x58] sm:$0xff]
    %v85 = vld [vmem:[#allocation2 + $0x60] sm:$0xff]
    %v86 = vld [vmem:[#allocation2 + $0x68] sm:$0xff]
    %v87 = vld [vmem:[#allocation2 + $0x70] sm:$0xff]
    %v88 = vld [vmem:[#allocation2 + $0x78] sm:$0xff]
    %v89 = vld [vmem:[#allocation2 + $0x80] sm:$0xff]
    %v90 = vld [vmem:[#allocation2 + $0x88] sm:$0xff]
    %v91 = vld [vmem:[#allocation2 + $0x90] sm:$0xff]
    %v92 = vld [vmem:[#allocation2 + $0x98] sm:$0xff]
    %v93 = vld [vmem:[#allocation2 + $0xa0] sm:$0xff]
    %v94 = vld [vmem:[#allocation2 + $0xa8] sm:$0xff]
    %v95 = vld [vmem:[#allocation2 + $0xb0] sm:$0xff]
    %v96 = vld [vmem:[#allocation2 + $0xb8] sm:$0xff]
    %v97 = vld [vmem:[#allocation2 + $0xc0] sm:$0xff]
    %v98 = vld [vmem:[#allocation2 + $0xc8] sm:$0xff]
    %v99 = vld [vmem:[#allocation2 + $0xd0] sm:$0xff]
    %v100 = vld [vmem:[#allocation2 + $0xd8] sm:$0xff]
    %v101 = vld [vmem:[#allocation2 + $0xe0] sm:$0xff]
    %v102 = vld [vmem:[#allocation2 + $0xe8] sm:$0xff]
    %v103 = vld [vmem:[#allocation2 + $0xf0] sm:$0xff]
    %v104 = vld [vmem:[#allocation2 + $0xf8] sm:$0xff]
    %v105 = vld [vmem:[#allocation2 + $0x100] sm:$0xff]
    %v106 = vld [vmem:[#allocation2 + $0x108] sm:$0xff]
    %v107 = vld [vmem:[#allocation2 + $0x110] sm:$0xff]
    %v108 = vld [vmem:[#allocation2 + $0x118] sm:$0xff]
    %v109 = vld [vmem:[#allocation2 + $0x120] sm:$0xff]
    %v110 = vld [vmem:[#allocation2 + $0x128] sm:$0xff]
    %v111 = vld [vmem:[#allocation2 + $0x130] sm:$0xff]
    %v112 = vld [vmem:[#allocation2 + $0x138] sm:$0xff]
    %v113 = vld [vmem:[#allocation2 + $0x140] sm:$0xff]
    %v114 = vld [vmem:[#allocation2 + $0x148] sm:$0xff]
    %v115 = vld [vmem:[#allocation2 + $0x150] sm:$0xff]
    %v116 = vld [vmem:[#allocation2 + $0x158] sm:$0xff]
    %v117 = vld [vmem:[#allocation2 + $0x160] sm:$0xff]
    %v118 = vld [vmem:[#allocation2 + $0x168] sm:$0xff]
    %v119 = vld [vmem:[#allocation2 + $0x170] sm:$0xff]
    %v120 = vld [vmem:[#allocation2 + $0x178] sm:$0xff]
    %v121 = vld [vmem:[#allocation2 + $0x180] sm:$0xff]
    %v122 = vld [vmem:[#allocation2 + $0x188] sm:$0xff]
    %v123 = vld [vmem:[#allocation2 + $0x190] sm:$0xff]
    %v124 = vld [vmem:[#allocation2 + $0x198] sm:$0xff]
    %v125 = vld [vmem:[#allocation2 + $0x1a0] sm:$0xff]
    %v126 = vld [vmem:[#allocation2 + $0x1a8] sm:$0xff]
    %v127 = vld [vmem:[#allocation2 + $0x1b0] sm:$0xff]
    %v128 = vld [vmem:[#allocation2 + $0x1b8] sm:$0xff]
    %v129 = vld [vmem:[#allocation2 + $0x1c0] sm:$0xff]
    %v130 = vld [vmem:[#allocation2 + $0x1c8] sm:$0xff]
    %v131 = vld [vmem:[#allocation2 + $0x1d0] sm:$0xff]
    %v132 = vld [vmem:[#allocation2 + $0x1d8] sm:$0xff]
    %v133 = vld [vmem:[#allocation2 + $0x1e0] sm:$0xff]
    %v134 = vld [vmem:[#allocation2 + $0x1e8] sm:$0xff]
    %v135 = vld [vmem:[#allocation2 + $0x1f0] sm:$0xff]
    %v136 = vld [vmem:[#allocation2 + $0x1f8] sm:$0x11]
    %v137 = vld [vmem:[#allocation2 + $0x200] sm:$0x11]
    %v138 = vld [vmem:[#allocation2 + $0x208] sm:$0x11]
    %v205 = vunpack.c.l.b16 %v73
    %v206 = vunpack.c.h.b16 %v73
    %v207 = vunpack.c.l.b16 %v74
    %v208 = vunpack.c.h.b16 %v74
    %v209 = vunpack.c.l.b16 %v75
    %v210 = vunpack.c.h.b16 %v75
    %v211 = vunpack.c.l.b16 %v76
    %v212 = vunpack.c.h.b16 %v76
    %v213 = vunpack.c.l.b16 %v77
    %v214 = vunpack.c.h.b16 %v77
    %v215 = vunpack.c.l.b16 %v78
    %v216 = vunpack.c.h.b16 %v78
    %v217 = vunpack.c.l.b16 %v79
    %v218 = vunpack.c.h.b16 %v79
    %v219 = vunpack.c.l.b16 %v80
    %v220 = vunpack.c.h.b16 %v80
    %v221 = vunpack.c.l.b16 %v81
    %v222 = vunpack.c.h.b16 %v81
    %v223 = vunpack.c.l.b16 %v82
    %v224 = vunpack.c.h.b16 %v82
    %v225 = vunpack.c.l.b16 %v83
    %v226 = vunpack.c.h.b16 %v83
    %v227 = vunpack.c.l.b16 %v84
    %v228 = vunpack.c.h.b16 %v84
    %v229 = vunpack.c.l.b16 %v85
    %v230 = vunpack.c.h.b16 %v85
    %v231 = vunpack.c.l.b16 %v86
    %v232 = vunpack.c.h.b16 %v86
    %v233 = vunpack.c.l.b16 %v87
    %v234 = vunpack.c.h.b16 %v87
    %v235 = vunpack.c.l.b16 %v88
    %v236 = vunpack.c.h.b16 %v88
    %v237 = vunpack.c.l.b16 %v89
    %v238 = vunpack.c.h.b16 %v89
    %v239 = vunpack.c.l.b16 %v90
    %v240 = vunpack.c.h.b16 %v90
    %v241 = vunpack.c.l.b16 %v91
    %v242 = vunpack.c.h.b16 %v91
    %v243 = vunpack.c.l.b16 %v92
    %v244 = vunpack.c.h.b16 %v92
    %v245 = vunpack.c.l.b16 %v93
    %v246 = vunpack.c.h.b16 %v93
    %v247 = vunpack.c.l.b16 %v94
    %v248 = vunpack.c.h.b16 %v94
    %v249 = vunpack.c.l.b16 %v95
    %v250 = vunpack.c.h.b16 %v95
    %v251 = vunpack.c.l.b16 %v96
    %v252 = vunpack.c.h.b16 %v96
    %v253 = vunpack.c.l.b16 %v97
    %v254 = vunpack.c.h.b16 %v97
    %v255 = vunpack.c.l.b16 %v98
    %v256 = vunpack.c.h.b16 %v98
    %v257 = vunpack.c.l.b16 %v99
    %v258 = vunpack.c.h.b16 %v99
    %v259 = vunpack.c.l.b16 %v100
    %v260 = vunpack.c.h.b16 %v100
    %v261 = vunpack.c.l.b16 %v101
    %v262 = vunpack.c.h.b16 %v101
    %v263 = vunpack.c.l.b16 %v102
    %v264 = vunpack.c.h.b16 %v102
    %v265 = vunpack.c.l.b16 %v103
    %v266 = vunpack.c.h.b16 %v103
    %v267 = vunpack.c.l.b16 %v104
    %v268 = vunpack.c.h.b16 %v104
    %v269 = vunpack.c.l.b16 %v105
    %v270 = vunpack.c.h.b16 %v105
    %v271 = vunpack.c.l.b16 %v106
    %v272 = vunpack.c.h.b16 %v106
    %v273 = vunpack.c.l.b16 %v107
    %v274 = vunpack.c.h.b16 %v107
    %v275 = vunpack.c.l.b16 %v108
    %v276 = vunpack.c.h.b16 %v108
    %v277 = vunpack.c.l.b16 %v109
    %v278 = vunpack.c.h.b16 %v109
    %v279 = vunpack.c.l.b16 %v110
    %v280 = vunpack.c.h.b16 %v110
    %v281 = vunpack.c.l.b16 %v111
    %v282 = vunpack.c.h.b16 %v111
    %v283 = vunpack.c.l.b16 %v112
    %v284 = vunpack.c.h.b16 %v112
    %v285 = vunpack.c.l.b16 %v113
    %v286 = vunpack.c.h.b16 %v113
    %v287 = vunpack.c.l.b16 %v114
    %v288 = vunpack.c.h.b16 %v114
    %v289 = vunpack.c.l.b16 %v115
    %v290 = vunpack.c.h.b16 %v115
    %v291 = vunpack.c.l.b16 %v116
    %v292 = vunpack.c.h.b16 %v116
    %v293 = vunpack.c.l.b16 %v117
    %v294 = vunpack.c.h.b16 %v117
    %v295 = vunpack.c.l.b16 %v118
    %v296 = vunpack.c.h.b16 %v118
    %v297 = vunpack.c.l.b16 %v119
    %v298 = vunpack.c.h.b16 %v119
    %v299 = vunpack.c.l.b16 %v120
    %v300 = vunpack.c.h.b16 %v120
    %v301 = vunpack.c.l.b16 %v121
    %v302 = vunpack.c.h.b16 %v121
    %v303 = vunpack.c.l.b16 %v122
    %v304 = vunpack.c.h.b16 %v122
    %v305 = vunpack.c.l.b16 %v123
    %v306 = vunpack.c.h.b16 %v123
    %v307 = vunpack.c.l.b16 %v124
    %v308 = vunpack.c.h.b16 %v124
    %v309 = vunpack.c.l.b16 %v125
    %v310 = vunpack.c.h.b16 %v125
    %v311 = vunpack.c.l.b16 %v126
    %v312 = vunpack.c.h.b16 %v126
    %v313 = vunpack.c.l.b16 %v127
    %v314 = vunpack.c.h.b16 %v127
    %v315 = vunpack.c.l.b16 %v128
    %v316 = vunpack.c.h.b16 %v128
    %v317 = vunpack.c.l.b16 %v129
    %v318 = vunpack.c.h.b16 %v129
    %v319 = vunpack.c.l.b16 %v130
    %v320 = vunpack.c.h.b16 %v130
    %v321 = vunpack.c.l.b16 %v131
    %v322 = vunpack.c.h.b16 %v131
    %v323 = vunpack.c.l.b16 %v132
    %v324 = vunpack.c.h.b16 %v132
    %v325 = vunpack.c.l.b16 %v133
    %v326 = vunpack.c.h.b16 %v133
    %v327 = vunpack.c.l.b16 %v134
    %v328 = vunpack.c.h.b16 %v134
    %v329 = vunpack.c.l.b16 %v135
    %v330 = vunpack.c.h.b16 %v135
    %v331 = vunpack.c.l.b16 %v136
    %v332 = vunpack.c.h.b16 %v136
    %v333 = vunpack.c.l.b16 %v137
    %v334 = vunpack.c.h.b16 %v137
    %v335 = vunpack.c.l.b16 %v138
    %v336 = vunpack.c.h.b16 %v138
    %v337 = vpack.c.b16 %v211, %v205
    %v338 = vpack.c.b16 %v212, %v206
    %v339 = vpack.c.b16 %v213, %v207
    %v340 = vpack.c.b16 %v214, %v208
    %v341 = vpack.c.b16 %v215, %v209
    %v342 = vpack.c.b16 %v216, %v210
    %v343 = vpack.c.b16 %v223, %v217
    %v344 = vpack.c.b16 %v224, %v218
    %v345 = vpack.c.b16 %v225, %v219
    %v346 = vpack.c.b16 %v226, %v220
    %v347 = vpack.c.b16 %v227, %v221
    %v348 = vpack.c.b16 %v228, %v222
    %v349 = vpack.c.b16 %v235, %v229
    %v350 = vpack.c.b16 %v236, %v230
    %v351 = vpack.c.b16 %v237, %v231
    %v352 = vpack.c.b16 %v238, %v232
    %v353 = vpack.c.b16 %v239, %v233
    %v354 = vpack.c.b16 %v240, %v234
    %v355 = vpack.c.b16 %v247, %v241
    %v356 = vpack.c.b16 %v248, %v242
    %v357 = vpack.c.b16 %v249, %v243
    %v358 = vpack.c.b16 %v250, %v244
    %v359 = vpack.c.b16 %v251, %v245
    %v360 = vpack.c.b16 %v252, %v246
    %v361 = vpack.c.b16 %v259, %v253
    %v362 = vpack.c.b16 %v260, %v254
    %v363 = vpack.c.b16 %v261, %v255
    %v364 = vpack.c.b16 %v262, %v256
    %v365 = vpack.c.b16 %v263, %v257
    %v366 = vpack.c.b16 %v264, %v258
    %v367 = vpack.c.b16 %v271, %v265
    %v368 = vpack.c.b16 %v272, %v266
    %v369 = vpack.c.b16 %v273, %v267
    %v370 = vpack.c.b16 %v274, %v268
    %v371 = vpack.c.b16 %v275, %v269
    %v372 = vpack.c.b16 %v276, %v270
    %v373 = vpack.c.b16 %v283, %v277
    %v374 = vpack.c.b16 %v284, %v278
    %v375 = vpack.c.b16 %v285, %v279
    %v376 = vpack.c.b16 %v286, %v280
    %v377 = vpack.c.b16 %v287, %v281
    %v378 = vpack.c.b16 %v288, %v282
    %v379 = vpack.c.b16 %v295, %v289
    %v380 = vpack.c.b16 %v296, %v290
    %v381 = vpack.c.b16 %v297, %v291
    %v382 = vpack.c.b16 %v298, %v292
    %v383 = vpack.c.b16 %v299, %v293
    %v384 = vpack.c.b16 %v300, %v294
    %v385 = vpack.c.b16 %v307, %v301
    %v386 = vpack.c.b16 %v308, %v302
    %v387 = vpack.c.b16 %v309, %v303
    %v388 = vpack.c.b16 %v310, %v304
    %v389 = vpack.c.b16 %v311, %v305
    %v390 = vpack.c.b16 %v312, %v306
    %v391 = vpack.c.b16 %v319, %v313
    %v392 = vpack.c.b16 %v320, %v314
    %v393 = vpack.c.b16 %v321, %v315
    %v394 = vpack.c.b16 %v322, %v316
    %v395 = vpack.c.b16 %v323, %v317
    %v396 = vpack.c.b16 %v324, %v318
    %v397 = vpack.c.b16 %v331, %v325
    %v398 = vpack.c.b16 %v332, %v326
    %v399 = vpack.c.b16 %v333, %v327
    %v400 = vpack.c.b16 %v334, %v328
    %v401 = vpack.c.b16 %v335, %v329
    %v402 = vpack.c.b16 %v336, %v330
    %vm463 = vcmask 334848
    %v465 = vsel %vm463, %v72, 0
    %vm467 = vcmask 1043456
    %vm468 = vcmask 1044480
    %v469 = vsel %vm467, 4294967295, 65535
    %v470 = vsel %vm468, %v469, 0
    %v472 = vand.u32 %v397, %v470
    %v475 = vand.u32 %v398, %v470
    %v478 = vand.u32 %v399, %v470
    %v481 = vand.u32 %v400, %v470
    %v484 = vand.u32 %v401, %v470
    %v487 = vand.u32 %v402, %v470
    %489 = vmatprep.subr.bf16.mxu0 %v338
    %490 = vmatpush1.bf16.msra.mxu0 %v337
    %491 = vmatprep.subr.bf16.mxu0 %v344
    %492 = vmatpush1.bf16.msra.mxu0 %v343
    %493 = vmatprep.subr.bf16.mxu0 %v350
    %494 = vmatpush1.bf16.msra.mxu0 %v349
    %495 = vmatprep.subr.bf16.mxu0 %v356
    %496 = vmatpush1.bf16.msra.mxu0 %v355
    %497 = vmatprep.subr.bf16.mxu0 %v362
    %498 = vmatpush1.bf16.msra.mxu0 %v361
    %499 = vmatprep.subr.bf16.mxu0 %v368
    %500 = vmatpush1.bf16.msra.mxu0 %v367
    %501 = vmatprep.subr.bf16.mxu0 %v374
    %502 = vmatpush1.bf16.msra.mxu0 %v373
    %503 = vmatprep.subr.bf16.mxu0 %v380
    %504 = vmatpush1.bf16.msra.mxu0 %v379
    %505 = vmatprep.subr.bf16.mxu0 %v386
    %506 = vmatpush1.bf16.msra.mxu0 %v385
    %507 = vmatprep.subr.bf16.mxu0 %v392
    %508 = vmatpush1.bf16.msra.mxu0 %v391
    %509 = vmatprep.subr.bf16.mxu0 %v475
    %510 = vmatpush1.bf16.msra.mxu0 %v472
    %511 = vmatprep.subr.bf16.mxu0 0
    %512 = vmatpush1.bf16.msra.mxu0 0
    %513 = vmatprep.subr.bf16.mxu0 0
    %514 = vmatpush1.bf16.msra.mxu0 0
    %515 = vmatprep.subr.bf16.mxu0 0
    %516 = vmatpush1.bf16.msra.mxu0 0
    %517 = vmatprep.subr.bf16.mxu0 0
    %518 = vmatpush1.bf16.msra.mxu0 0
    %519 = vmatprep.subr.bf16.mxu0 0
    %520 = vmatpush1.bf16.msra.mxu0 0
    %521 = vmatprep.mubr.bf16.mxu0 %v465
    %522 = vmatmul.mubr.bf16.gmra.mrb[0].mxu0 %v71
    %v523 = vpop.f32.mrb[0].mxu0
    %v524 = vadd.f32 0.0, %v523
    %v525 = vpop.f32.mrb[0].mxu0
    %v526 = vadd.f32 0.0, %v525
    %v527 = vpop.f32.mrb[0].mxu0
    %v528 = vadd.f32 0.0, %v527
    %v529 = vpop.f32.mrb[0].mxu0
    %v530 = vadd.f32 0.0, %v529
    %531 = vdwg.mxu0
    %532 = vmatprep.subr.bf16.mxu0 %v340
    %533 = vmatpush1.bf16.msra.mxu0 %v339
    %534 = vmatprep.subr.bf16.mxu0 %v346
    %535 = vmatpush1.bf16.msra.mxu0 %v345
    %536 = vmatprep.subr.bf16.mxu0 %v352
    %537 = vmatpush1.bf16.msra.mxu0 %v351
    %538 = vmatprep.subr.bf16.mxu0 %v358
    %539 = vmatpush1.bf16.msra.mxu0 %v357
    %540 = vmatprep.subr.bf16.mxu0 %v364
    %541 = vmatpush1.bf16.msra.mxu0 %v363
    %542 = vmatprep.subr.bf16.mxu0 %v370
    %543 = vmatpush1.bf16.msra.mxu0 %v369
    %544 = vmatprep.subr.bf16.mxu0 %v376
    %545 = vmatpush1.bf16.msra.mxu0 %v375
    %546 = vmatprep.subr.bf16.mxu0 %v382
    %547 = vmatpush1.bf16.msra.mxu0 %v381
    %548 = vmatprep.subr.bf16.mxu0 %v388
    %549 = vmatpush1.bf16.msra.mxu0 %v387
    %550 = vmatprep.subr.bf16.mxu0 %v394
    %551 = vmatpush1.bf16.msra.mxu0 %v393
    %552 = vmatprep.subr.bf16.mxu0 %v481
    %553 = vmatpush1.bf16.msra.mxu0 %v478
    %554 = vmatprep.subr.bf16.mxu0 0
    %555 = vmatpush1.bf16.msra.mxu0 0
    %556 = vmatprep.subr.bf16.mxu0 0
    %557 = vmatpush1.bf16.msra.mxu0 0
    %558 = vmatprep.subr.bf16.mxu0 0
    %559 = vmatpush1.bf16.msra.mxu0 0
    %560 = vmatprep.subr.bf16.mxu0 0
    %561 = vmatpush1.bf16.msra.mxu0 0
    %562 = vmatprep.subr.bf16.mxu0 0
    %563 = vmatpush1.bf16.msra.mxu0 0
    %564 = vmatprep.mubr.bf16.mxu0 %v465
    %565 = vmatmul.mubr.bf16.gmra.mrb[0].mxu0 %v71
    %v566 = vpop.f32.mrb[0].mxu0
    %v567 = vadd.f32 0.0, %v566
    %v568 = vpop.f32.mrb[0].mxu0
    %v569 = vadd.f32 0.0, %v568
    %v570 = vpop.f32.mrb[0].mxu0
    %v571 = vadd.f32 0.0, %v570
    %v572 = vpop.f32.mrb[0].mxu0
    %v573 = vadd.f32 0.0, %v572
    %574 = vdwg.mxu0
    %575 = vmatprep.subr.bf16.mxu0 %v342
    %576 = vmatpush1.bf16.msra.mxu0 %v341
    %577 = vmatprep.subr.bf16.mxu0 %v348
    %578 = vmatpush1.bf16.msra.mxu0 %v347
    %579 = vmatprep.subr.bf16.mxu0 %v354
    %580 = vmatpush1.bf16.msra.mxu0 %v353
    %581 = vmatprep.subr.bf16.mxu0 %v360
    %582 = vmatpush1.bf16.msra.mxu0 %v359
    %583 = vmatprep.subr.bf16.mxu0 %v366
    %584 = vmatpush1.bf16.msra.mxu0 %v365
    %585 = vmatprep.subr.bf16.mxu0 %v372
    %586 = vmatpush1.bf16.msra.mxu0 %v371
    %587 = vmatprep.subr.bf16.mxu0 %v378
    %588 = vmatpush1.bf16.msra.mxu0 %v377
    %589 = vmatprep.subr.bf16.mxu0 %v384
    %590 = vmatpush1.bf16.msra.mxu0 %v383
    %591 = vmatprep.subr.bf16.mxu0 %v390
    %592 = vmatpush1.bf16.msra.mxu0 %v389
    %593 = vmatprep.subr.bf16.mxu0 %v396
    %594 = vmatpush1.bf16.msra.mxu0 %v395
    %595 = vmatprep.subr.bf16.mxu0 %v487
    %596 = vmatpush1.bf16.msra.mxu0 %v484
    %597 = vmatprep.subr.bf16.mxu0 0
    %598 = vmatpush1.bf16.msra.mxu0 0
    %599 = vmatprep.subr.bf16.mxu0 0
    %600 = vmatpush1.bf16.msra.mxu0 0
    %601 = vmatprep.subr.bf16.mxu0 0
    %602 = vmatpush1.bf16.msra.mxu0 0
    %603 = vmatprep.subr.bf16.mxu0 0
    %604 = vmatpush1.bf16.msra.mxu0 0
    %605 = vmatprep.subr.bf16.mxu0 0
    %606 = vmatpush1.bf16.msra.mxu0 0
    %607 = vmatprep.mubr.bf16.mxu0 %v465
    %608 = vmatmul.mubr.bf16.gmra.mrb[0].mxu0 %v71
    %v609 = vpop.f32.mrb[0].mxu0
    %v610 = vadd.f32 0.0, %v609
    %v611 = vpop.f32.mrb[0].mxu0
    %v612 = vadd.f32 0.0, %v611
    %v613 = vpop.f32.mrb[0].mxu0
    %v614 = vadd.f32 0.0, %v613
    %v615 = vpop.f32.mrb[0].mxu0
    %v616 = vadd.f32 0.0, %v615
    %617 = vdwg.mxu0
    %v618 = vpack.c.bf16 %v528, %v524
    %v619 = vpack.c.bf16 %v530, %v526
    %v620 = vpack.c.bf16 %v571, %v567
    %v621 = vpack.c.bf16 %v573, %v569
    %v622 = vpack.c.bf16 %v614, %v610
    %v623 = vpack.c.bf16 %v616, %v612
    %v630 = vunpack.c.l.b16 %v618
    %v631 = vunpack.c.l.b16 %v619
    %v632 = vunpack.c.l.b16 %v620
    %v633 = vunpack.c.l.b16 %v621
    %v634 = vunpack.c.l.b16 %v622
    %v635 = vunpack.c.l.b16 %v623
    %v636 = vunpack.c.h.b16 %v618
    %v637 = vunpack.c.h.b16 %v619
    %v638 = vunpack.c.h.b16 %v620
    %v639 = vunpack.c.h.b16 %v621
    %v640 = vunpack.c.h.b16 %v622
    %v641 = vunpack.c.h.b16 %v623
    %v642 = vpack.c.b16 %v630, %v630
    %v643 = vpack.c.b16 %v631, %v631
    %646 = vxpose.xlu0.c.b16.start [1/8] %v642, 128
    %647 = vxpose.xlu0.c.b16.cont [2/8] 0, 128
    %648 = vxpose.xlu0.c.b16.cont [3/8] 0, 128
    %649 = vxpose.xlu0.c.b16.cont [4/8] 0, 128
    %650 = vxpose.xlu0.c.b16.cont [5/8] 0, 128
    %651 = vxpose.xlu0.c.b16.cont [6/8] 0, 128
    %652 = vxpose.xlu0.c.b16.cont [7/8] 0, 128
    %653 = vxpose.xlu0.c.b16.end [8/8] 0, 128
    %v654 = vpop.trf.xlu0
    %v655 = vpop.trf.xlu0
    %v656 = vpop.trf.xlu0
    %v657 = vpop.trf.xlu0
    %v658 = vpop.trf.xlu0
    %v659 = vpop.trf.xlu0
    %v660 = vpop.trf.xlu0
    %v661 = vpop.trf.xlu0
    %662 = vxpose.xlu0.c.b16.start [1/8] %v643, 128
    %663 = vxpose.xlu0.c.b16.cont [2/8] 0, 128
    %664 = vxpose.xlu0.c.b16.cont [3/8] 0, 128
    %665 = vxpose.xlu0.c.b16.cont [4/8] 0, 128
    %666 = vxpose.xlu0.c.b16.cont [5/8] 0, 128
    %667 = vxpose.xlu0.c.b16.cont [6/8] 0, 128
    %668 = vxpose.xlu0.c.b16.cont [7/8] 0, 128
    %669 = vxpose.xlu0.c.b16.end [8/8] 0, 128
    %v670 = vpop.trf.xlu0
    %v671 = vpop.trf.xlu0
    %v672 = vpop.trf.xlu0
    %v673 = vpop.trf.xlu0
    %v674 = vpop.trf.xlu0
    %v675 = vpop.trf.xlu0
    %v676 = vpop.trf.xlu0
    %v677 = vpop.trf.xlu0
    %v678 = vpack.c.b16 %v632, %v632
    %v679 = vpack.c.b16 %v633, %v633
    %vm680 = vcmask 64512
    %v682 = vsel %vm680, %v654, 0
    %v685 = vsel %vm680, %v655, 0
    %v688 = vsel %vm680, %v656, 0
    %v691 = vsel %vm680, %v657, 0
    %v694 = vsel %vm680, %v658, 0
    %v697 = vsel %vm680, %v659, 0
    %v700 = vsel %vm680, %v660, 0
    %v703 = vsel %vm680, %v661, 0
    %v706 = vsel %vm680, %v670, 0
    %v709 = vsel %vm680, %v671, 0
    %v712 = vsel %vm680, %v672, 0
    %v715 = vsel %vm467, %v678, 0
    %v718 = vsel %vm467, %v679, 0
    %720 = vmatprep.subr.bf16.mxu0 %v718
    %721 = vmatpush1.bf16.msra.mxu0 %v715
    %722 = vmatprep.subr.bf16.mxu0 0
    %723 = vmatpush1.bf16.msra.mxu0 0
    %724 = vmatprep.subr.bf16.mxu0 0
    %725 = vmatpush1.bf16.msra.mxu0 0
    %726 = vmatprep.subr.bf16.mxu0 0
    %727 = vmatpush1.bf16.msra.mxu0 0
    %728 = vmatprep.subr.bf16.mxu0 0
    %729 = vmatpush1.bf16.msra.mxu0 0
    %730 = vmatprep.subr.bf16.mxu0 0
    %731 = vmatpush1.bf16.msra.mxu0 0
    %732 = vmatprep.subr.bf16.mxu0 0
    %733 = vmatpush1.bf16.msra.mxu0 0
    %734 = vmatprep.subr.bf16.mxu0 0
    %735 = vmatpush1.bf16.msra.mxu0 0
    %736 = vmatprep.subr.bf16.mxu0 0
    %737 = vmatpush1.bf16.msra.mxu0 0
    %738 = vmatprep.subr.bf16.mxu0 0
    %739 = vmatpush1.bf16.msra.mxu0 0
    %740 = vmatprep.subr.bf16.mxu0 0
    %741 = vmatpush1.bf16.msra.mxu0 0
    %742 = vmatprep.subr.bf16.mxu0 0
    %743 = vmatpush1.bf16.msra.mxu0 0
    %744 = vmatprep.subr.bf16.mxu0 0
    %745 = vmatpush1.bf16.msra.mxu0 0
    %746 = vmatprep.subr.bf16.mxu0 0
    %747 = vmatpush1.bf16.msra.mxu0 0
    %748 = vmatprep.subr.bf16.mxu0 0
    %749 = vmatpush1.bf16.msra.mxu0 0
    %750 = vmatprep.subr.bf16.mxu0 0
    %751 = vmatpush1.bf16.msra.mxu0 0
    %752 = vmatprep.mubr.bf16.mxu0 0
    %753 = vmatmul.mubr.bf16.gmra.mrb[0].mxu0 %v682
    %v754 = vpop.f32.mrb[0].mxu0
    %v755 = vadd.f32 0.0, %v754
    %v756 = vpop.f32.mrb[0].mxu0
    %v757 = vadd.f32 0.0, %v756
    %v758 = vpop.f32.mrb[0].mxu0
    %v759 = vadd.f32 0.0, %v758
    %v760 = vpop.f32.mrb[0].mxu0
    %v761 = vadd.f32 0.0, %v760
    %762 = vmatprep.mubr.bf16.mxu0 0
    %763 = vmatmul.mubr.bf16.gmra.mrb[0].mxu0 %v685
    %v764 = vpop.f32.mrb[0].mxu0
    %v765 = vadd.f32 0.0, %v764
    %v766 = vpop.f32.mrb[0].mxu0
    %v767 = vadd.f32 0.0, %v766
    %v768 = vpop.f32.mrb[0].mxu0
    %v769 = vadd.f32 0.0, %v768
    %v770 = vpop.f32.mrb[0].mxu0
    %v771 = vadd.f32 0.0, %v770
    %772 = vmatprep.mubr.bf16.mxu0 0
    %773 = vmatmul.mubr.bf16.gmra.mrb[0].mxu0 %v688
    %v774 = vpop.f32.mrb[0].mxu0
    %v775 = vadd.f32 0.0, %v774
    %v776 = vpop.f32.mrb[0].mxu0
    %v777 = vadd.f32 0.0, %v776
    %v778 = vpop.f32.mrb[0].mxu0
    %v779 = vadd.f32 0.0, %v778
    %v780 = vpop.f32.mrb[0].mxu0
    %v781 = vadd.f32 0.0, %v780
    %782 = vmatprep.mubr.bf16.mxu0 0
    %783 = vmatmul.mubr.bf16.gmra.mrb[0].mxu0 %v691
    %v784 = vpop.f32.mrb[0].mxu0
    %v785 = vadd.f32 0.0, %v784
    %v786 = vpop.f32.mrb[0].mxu0
    %v787 = vadd.f32 0.0, %v786
    %v788 = vpop.f32.mrb[0].mxu0
    %v789 = vadd.f32 0.0, %v788
    %v790 = vpop.f32.mrb[0].mxu0
    %v791 = vadd.f32 0.0, %v790
    %792 = vmatprep.mubr.bf16.mxu0 0
    %793 = vmatmul.mubr.bf16.gmra.mrb[0].mxu0 %v694
    %v794 = vpop.f32.mrb[0].mxu0
    %v795 = vadd.f32 0.0, %v794
    %v796 = vpop.f32.mrb[0].mxu0
    %v797 = vadd.f32 0.0, %v796
    %v798 = vpop.f32.mrb[0].mxu0
    %v799 = vadd.f32 0.0, %v798
    %v800 = vpop.f32.mrb[0].mxu0
    %v801 = vadd.f32 0.0, %v800
    %802 = vmatprep.mubr.bf16.mxu0 0
    %803 = vmatmul.mubr.bf16.gmra.mrb[0].mxu0 %v697
    %v804 = vpop.f32.mrb[0].mxu0
    %v805 = vadd.f32 0.0, %v804
    %v806 = vpop.f32.mrb[0].mxu0
    %v807 = vadd.f32 0.0, %v806
    %v808 = vpop.f32.mrb[0].mxu0
    %v809 = vadd.f32 0.0, %v808
    %v810 = vpop.f32.mrb[0].mxu0
    %v811 = vadd.f32 0.0, %v810
    %812 = vmatprep.mubr.bf16.mxu0 0
    %813 = vmatmul.mubr.bf16.gmra.mrb[0].mxu0 %v700
    %v814 = vpop.f32.mrb[0].mxu0
    %v815 = vadd.f32 0.0, %v814
    %v816 = vpop.f32.mrb[0].mxu0
    %v817 = vadd.f32 0.0, %v816
    %v818 = vpop.f32.mrb[0].mxu0
    %v819 = vadd.f32 0.0, %v818
    %v820 = vpop.f32.mrb[0].mxu0
    %v821 = vadd.f32 0.0, %v820
    %822 = vmatprep.mubr.bf16.mxu0 0
    %823 = vmatmul.mubr.bf16.gmra.mrb[0].mxu0 %v703
    %v824 = vpop.f32.mrb[0].mxu0
    %v825 = vadd.f32 0.0, %v824
    %v826 = vpop.f32.mrb[0].mxu0
    %v827 = vadd.f32 0.0, %v826
    %v828 = vpop.f32.mrb[0].mxu0
    %v829 = vadd.f32 0.0, %v828
    %v830 = vpop.f32.mrb[0].mxu0
    %v831 = vadd.f32 0.0, %v830
    %832 = vmatprep.mubr.bf16.mxu0 0
    %833 = vmatmul.mubr.bf16.gmra.mrb[0].mxu0 %v706
    %v834 = vpop.f32.mrb[0].mxu0
    %v835 = vadd.f32 0.0, %v834
    %v836 = vpop.f32.mrb[0].mxu0
    %v837 = vadd.f32 0.0, %v836
    %v838 = vpop.f32.mrb[0].mxu0
    %v839 = vadd.f32 0.0, %v838
    %v840 = vpop.f32.mrb[0].mxu0
    %v841 = vadd.f32 0.0, %v840
    %842 = vmatprep.mubr.bf16.mxu0 0
    %843 = vmatmul.mubr.bf16.gmra.mrb[0].mxu0 %v709
    %v844 = vpop.f32.mrb[0].mxu0
    %v845 = vadd.f32 0.0, %v844
    %v846 = vpop.f32.mrb[0].mxu0
    %v847 = vadd.f32 0.0, %v846
    %v848 = vpop.f32.mrb[0].mxu0
    %v849 = vadd.f32 0.0, %v848
    %v850 = vpop.f32.mrb[0].mxu0
    %v851 = vadd.f32 0.0, %v850
    %852 = vmatprep.mubr.bf16.mxu0 0
    %853 = vmatmul.mubr.bf16.gmra.mrb[0].mxu0 %v712
    %v854 = vpop.f32.mrb[0].mxu0
    %v855 = vadd.f32 0.0, %v854
    %v856 = vpop.f32.mrb[0].mxu0
    %v857 = vadd.f32 0.0, %v856
    %v858 = vpop.f32.mrb[0].mxu0
    %v859 = vadd.f32 0.0, %v858
    %v860 = vpop.f32.mrb[0].mxu0
    %v861 = vadd.f32 0.0, %v860
    %862 = vdwg.mxu0
    %v863 = vpack.c.b16 %v636, %v636
    %v864 = vpack.c.b16 %v637, %v637
    %867 = vxpose.xlu0.c.b16.start [1/8] %v863, 128
    %868 = vxpose.xlu0.c.b16.cont [2/8] 0, 128
    %869 = vxpose.xlu0.c.b16.cont [3/8] 0, 128
    %870 = vxpose.xlu0.c.b16.cont [4/8] 0, 128
    %871 = vxpose.xlu0.c.b16.cont [5/8] 0, 128
    %872 = vxpose.xlu0.c.b16.cont [6/8] 0, 128
    %873 = vxpose.xlu0.c.b16.cont [7/8] 0, 128
    %874 = vxpose.xlu0.c.b16.end [8/8] 0, 128
    %v875 = vpop.trf.xlu0
    %v876 = vpop.trf.xlu0
    %v877 = vpop.trf.xlu0
    %v878 = vpop.trf.xlu0
    %v879 = vpop.trf.xlu0
    %v880 = vpop.trf.xlu0
    %v881 = vpop.trf.xlu0
    %v882 = vpop.trf.xlu0
    %883 = vxpose.xlu0.c.b16.start [1/8] %v864, 128
    %884 = vxpose.xlu0.c.b16.cont [2/8] 0, 128
    %885 = vxpose.xlu0.c.b16.cont [3/8] 0, 128
    %886 = vxpose.xlu0.c.b16.cont [4/8] 0, 128
    %887 = vxpose.xlu0.c.b16.cont [5/8] 0, 128
    %888 = vxpose.xlu0.c.b16.cont [6/8] 0, 128
    %889 = vxpose.xlu0.c.b16.cont [7/8] 0, 128
    %890 = vxpose.xlu0.c.b16.end [8/8] 0, 128
    %v891 = vpop.trf.xlu0
    %v892 = vpop.trf.xlu0
    %v893 = vpop.trf.xlu0
    %v894 = vpop.trf.xlu0
    %v895 = vpop.trf.xlu0
    %v896 = vpop.trf.xlu0
    %v897 = vpop.trf.xlu0
    %v898 = vpop.trf.xlu0
    %v899 = vpack.c.b16 %v638, %v638
    %v900 = vpack.c.b16 %v639, %v639
    %v902 = vsel %vm680, %v875, 0
    %v905 = vsel %vm680, %v876, 0
    %v908 = vsel %vm680, %v877, 0
    %v911 = vsel %vm680, %v878, 0
    %v914 = vsel %vm680, %v879, 0
    %v917 = vsel %vm680, %v880, 0
    %v920 = vsel %vm680, %v881, 0
    %v923 = vsel %vm680, %v882, 0
    %v926 = vsel %vm680, %v891, 0
    %v929 = vsel %vm680, %v892, 0
    %v932 = vsel %vm680, %v893, 0
    %v935 = vsel %vm467, %v899, 0
    %v938 = vsel %vm467, %v900, 0
    %940 = vmatprep.subr.bf16.mxu0 %v938
    %941 = vmatpush1.bf16.msra.mxu0 %v935
    %942 = vmatprep.subr.bf16.mxu0 0
    %943 = vmatpush1.bf16.msra.mxu0 0
    %944 = vmatprep.subr.bf16.mxu0 0
    %945 = vmatpush1.bf16.msra.mxu0 0
    %946 = vmatprep.subr.bf16.mxu0 0
    %947 = vmatpush1.bf16.msra.mxu0 0
    %948 = vmatprep.subr.bf16.mxu0 0
    %949 = vmatpush1.bf16.msra.mxu0 0
    %950 = vmatprep.subr.bf16.mxu0 0
    %951 = vmatpush1.bf16.msra.mxu0 0
    %952 = vmatprep.subr.bf16.mxu0 0
    %953 = vmatpush1.bf16.msra.mxu0 0
    %954 = vmatprep.subr.bf16.mxu0 0
    %955 = vmatpush1.bf16.msra.mxu0 0
    %956 = vmatprep.subr.bf16.mxu0 0
    %957 = vmatpush1.bf16.msra.mxu0 0
    %958 = vmatprep.subr.bf16.mxu0 0
    %959 = vmatpush1.bf16.msra.mxu0 0
    %960 = vmatprep.subr.bf16.mxu0 0
    %961 = vmatpush1.bf16.msra.mxu0 0
    %962 = vmatprep.subr.bf16.mxu0 0
    %963 = vmatpush1.bf16.msra.mxu0 0
    %964 = vmatprep.subr.bf16.mxu0 0
    %965 = vmatpush1.bf16.msra.mxu0 0
    %966 = vmatprep.subr.bf16.mxu0 0
    %967 = vmatpush1.bf16.msra.mxu0 0
    %968 = vmatprep.subr.bf16.mxu0 0
    %969 = vmatpush1.bf16.msra.mxu0 0
    %970 = vmatprep.subr.bf16.mxu0 0
    %971 = vmatpush1.bf16.msra.mxu0 0
    %972 = vmatprep.mubr.bf16.mxu0 0
    %973 = vmatmul.mubr.bf16.gmra.mrb[0].mxu0 %v902
    %v974 = vpop.f32.mrb[0].mxu0
    %v975 = vadd.f32 0.0, %v974
    %v976 = vpop.f32.mrb[0].mxu0
    %v977 = vadd.f32 0.0, %v976
    %v978 = vpop.f32.mrb[0].mxu0
    %v979 = vadd.f32 0.0, %v978
    %v980 = vpop.f32.mrb[0].mxu0
    %v981 = vadd.f32 0.0, %v980
    %982 = vmatprep.mubr.bf16.mxu0 0
    %983 = vmatmul.mubr.bf16.gmra.mrb[0].mxu0 %v905
    %v984 = vpop.f32.mrb[0].mxu0
    %v985 = vadd.f32 0.0, %v984
    %v986 = vpop.f32.mrb[0].mxu0
    %v987 = vadd.f32 0.0, %v986
    %v988 = vpop.f32.mrb[0].mxu0
    %v989 = vadd.f32 0.0, %v988
    %v990 = vpop.f32.mrb[0].mxu0
    %v991 = vadd.f32 0.0, %v990
    %992 = vmatprep.mubr.bf16.mxu0 0
    %993 = vmatmul.mubr.bf16.gmra.mrb[0].mxu0 %v908
    %v994 = vpop.f32.mrb[0].mxu0
    %v995 = vadd.f32 0.0, %v994
    %v996 = vpop.f32.mrb[0].mxu0
    %v997 = vadd.f32 0.0, %v996
    %v998 = vpop.f32.mrb[0].mxu0
    %v999 = vadd.f32 0.0, %v998
    %v1000 = vpop.f32.mrb[0].mxu0
    %v1001 = vadd.f32 0.0, %v1000
    %1002 = vmatprep.mubr.bf16.mxu0 0
    %1003 = vmatmul.mubr.bf16.gmra.mrb[0].mxu0 %v911
    %v1004 = vpop.f32.mrb[0].mxu0
    %v1005 = vadd.f32 0.0, %v1004
    %v1006 = vpop.f32.mrb[0].mxu0
    %v1007 = vadd.f32 0.0, %v1006
    %v1008 = vpop.f32.mrb[0].mxu0
    %v1009 = vadd.f32 0.0, %v1008
    %v1010 = vpop.f32.mrb[0].mxu0
    %v1011 = vadd.f32 0.0, %v1010
    %1012 = vmatprep.mubr.bf16.mxu0 0
    %1013 = vmatmul.mubr.bf16.gmra.mrb[0].mxu0 %v914
    %v1014 = vpop.f32.mrb[0].mxu0
    %v1015 = vadd.f32 0.0, %v1014
    %v1016 = vpop.f32.mrb[0].mxu0
    %v1017 = vadd.f32 0.0, %v1016
    %v1018 = vpop.f32.mrb[0].mxu0
    %v1019 = vadd.f32 0.0, %v1018
    %v1020 = vpop.f32.mrb[0].mxu0
    %v1021 = vadd.f32 0.0, %v1020
    %1022 = vmatprep.mubr.bf16.mxu0 0
    %1023 = vmatmul.mubr.bf16.gmra.mrb[0].mxu0 %v917
    %v1024 = vpop.f32.mrb[0].mxu0
    %v1025 = vadd.f32 0.0, %v1024
    %v1026 = vpop.f32.mrb[0].mxu0
    %v1027 = vadd.f32 0.0, %v1026
    %v1028 = vpop.f32.mrb[0].mxu0
    %v1029 = vadd.f32 0.0, %v1028
    %v1030 = vpop.f32.mrb[0].mxu0
    %v1031 = vadd.f32 0.0, %v1030
    %1032 = vmatprep.mubr.bf16.mxu0 0
    %1033 = vmatmul.mubr.bf16.gmra.mrb[0].mxu0 %v920
    %v1034 = vpop.f32.mrb[0].mxu0
    %v1035 = vadd.f32 0.0, %v1034
    %v1036 = vpop.f32.mrb[0].mxu0
    %v1037 = vadd.f32 0.0, %v1036
    %v1038 = vpop.f32.mrb[0].mxu0
    %v1039 = vadd.f32 0.0, %v1038
    %v1040 = vpop.f32.mrb[0].mxu0
    %v1041 = vadd.f32 0.0, %v1040
    %1042 = vmatprep.mubr.bf16.mxu0 0
    %1043 = vmatmul.mubr.bf16.gmra.mrb[0].mxu0 %v923
    %v1044 = vpop.f32.mrb[0].mxu0
    %v1045 = vadd.f32 0.0, %v1044
    %v1046 = vpop.f32.mrb[0].mxu0
    %v1047 = vadd.f32 0.0, %v1046
    %v1048 = vpop.f32.mrb[0].mxu0
    %v1049 = vadd.f32 0.0, %v1048
    %v1050 = vpop.f32.mrb[0].mxu0
    %v1051 = vadd.f32 0.0, %v1050
    %1052 = vmatprep.mubr.bf16.mxu0 0
    %1053 = vmatmul.mubr.bf16.gmra.mrb[0].mxu0 %v926
    %v1054 = vpop.f32.mrb[0].mxu0
    %v1055 = vadd.f32 0.0, %v1054
    %v1056 = vpop.f32.mrb[0].mxu0
    %v1057 = vadd.f32 0.0, %v1056
    %v1058 = vpop.f32.mrb[0].mxu0
    %v1059 = vadd.f32 0.0, %v1058
    %v1060 = vpop.f32.mrb[0].mxu0
    %v1061 = vadd.f32 0.0, %v1060
    %1062 = vmatprep.mubr.bf16.mxu0 0
    %1063 = vmatmul.mubr.bf16.gmra.mrb[0].mxu0 %v929
    %v1064 = vpop.f32.mrb[0].mxu0
    %v1065 = vadd.f32 0.0, %v1064
    %v1066 = vpop.f32.mrb[0].mxu0
    %v1067 = vadd.f32 0.0, %v1066
    %v1068 = vpop.f32.mrb[0].mxu0
    %v1069 = vadd.f32 0.0, %v1068
    %v1070 = vpop.f32.mrb[0].mxu0
    %v1071 = vadd.f32 0.0, %v1070
    %1072 = vmatprep.mubr.bf16.mxu0 0
    %1073 = vmatmul.mubr.bf16.gmra.mrb[0].mxu0 %v932
    %v1074 = vpop.f32.mrb[0].mxu0
    %v1075 = vadd.f32 0.0, %v1074
    %v1076 = vpop.f32.mrb[0].mxu0
    %v1077 = vadd.f32 0.0, %v1076
    %v1078 = vpop.f32.mrb[0].mxu0
    %v1079 = vadd.f32 0.0, %v1078
    %v1080 = vpop.f32.mrb[0].mxu0
    %v1081 = vadd.f32 0.0, %v1080
    %1082 = vdwg.mxu0
    %v1083 = vmul.f32 %v755, 0.07692308
    %v1084 = vmul.f32 %v757, 0.07692308
    %v1085 = vmul.f32 %v759, 0.07692308
    %v1086 = vmul.f32 %v761, 0.07692308
    %v1087 = vmul.f32 %v765, 0.07692308
    %v1088 = vmul.f32 %v767, 0.07692308
    %v1089 = vmul.f32 %v769, 0.07692308
    %v1090 = vmul.f32 %v771, 0.07692308
    %v1091 = vmul.f32 %v775, 0.07692308
    %v1092 = vmul.f32 %v777, 0.07692308
    %v1093 = vmul.f32 %v779, 0.07692308
    %v1094 = vmul.f32 %v781, 0.07692308
    %v1095 = vmul.f32 %v785, 0.07692308
    %v1096 = vmul.f32 %v787, 0.07692308
    %v1097 = vmul.f32 %v789, 0.07692308
    %v1098 = vmul.f32 %v791, 0.07692308
    %v1099 = vmul.f32 %v795, 0.07692308
    %v1100 = vmul.f32 %v797, 0.07692308
    %v1101 = vmul.f32 %v799, 0.07692308
    %v1102 = vmul.f32 %v801, 0.07692308
    %v1103 = vmul.f32 %v805, 0.07692308
    %v1104 = vmul.f32 %v807, 0.07692308
    %v1105 = vmul.f32 %v809, 0.07692308
    %v1106 = vmul.f32 %v811, 0.07692308
    %v1107 = vmul.f32 %v815, 0.07692308
    %v1108 = vmul.f32 %v817, 0.07692308
    %v1109 = vmul.f32 %v819, 0.07692308
    %v1110 = vmul.f32 %v821, 0.07692308
    %v1111 = vmul.f32 %v825, 0.07692308
    %v1112 = vmul.f32 %v827, 0.07692308
    %v1113 = vmul.f32 %v829, 0.07692308
    %v1114 = vmul.f32 %v831, 0.07692308
    %v1115 = vmul.f32 %v835, 0.07692308
    %v1116 = vmul.f32 %v837, 0.07692308
    %v1117 = vmul.f32 %v839, 0.07692308
    %v1118 = vmul.f32 %v841, 0.07692308
    %v1119 = vmul.f32 %v845, 0.07692308
    %v1120 = vmul.f32 %v847, 0.07692308
    %v1121 = vmul.f32 %v849, 0.07692308
    %v1122 = vmul.f32 %v851, 0.07692308
    %v1123 = vmul.f32 %v855, 0.07692308
    %v1124 = vmul.f32 %v857, 0.07692308
    %v1125 = vmul.f32 %v859, 0.07692308
    %v1126 = vmul.f32 %v861, 0.07692308
    %v1127 = vmul.f32 %v975, 0.07692308
    %v1128 = vmul.f32 %v977, 0.07692308
    %v1129 = vmul.f32 %v979, 0.07692308
    %v1130 = vmul.f32 %v981, 0.07692308
    %v1131 = vmul.f32 %v985, 0.07692308
    %v1132 = vmul.f32 %v987, 0.07692308
    %v1133 = vmul.f32 %v989, 0.07692308
    %v1134 = vmul.f32 %v991, 0.07692308
    %v1135 = vmul.f32 %v995, 0.07692308
    %v1136 = vmul.f32 %v997, 0.07692308
    %v1137 = vmul.f32 %v999, 0.07692308
    %v1138 = vmul.f32 %v1001, 0.07692308
    %v1139 = vmul.f32 %v1005, 0.07692308
    %v1140 = vmul.f32 %v1007, 0.07692308
    %v1141 = vmul.f32 %v1009, 0.07692308
    %v1142 = vmul.f32 %v1011, 0.07692308
    %v1143 = vmul.f32 %v1015, 0.07692308
    %v1144 = vmul.f32 %v1017, 0.07692308
    %v1145 = vmul.f32 %v1019, 0.07692308
    %v1146 = vmul.f32 %v1021, 0.07692308
    %v1147 = vmul.f32 %v1025, 0.07692308
    %v1148 = vmul.f32 %v1027, 0.07692308
    %v1149 = vmul.f32 %v1029, 0.07692308
    %v1150 = vmul.f32 %v1031, 0.07692308
    %v1151 = vmul.f32 %v1035, 0.07692308
    %v1152 = vmul.f32 %v1037, 0.07692308
    %v1153 = vmul.f32 %v1039, 0.07692308
    %v1154 = vmul.f32 %v1041, 0.07692308
    %v1155 = vmul.f32 %v1045, 0.07692308
    %v1156 = vmul.f32 %v1047, 0.07692308
    %v1157 = vmul.f32 %v1049, 0.07692308
    %v1158 = vmul.f32 %v1051, 0.07692308
    %v1159 = vmul.f32 %v1055, 0.07692308
    %v1160 = vmul.f32 %v1057, 0.07692308
    %v1161 = vmul.f32 %v1059, 0.07692308
    %v1162 = vmul.f32 %v1061, 0.07692308
    %v1163 = vmul.f32 %v1065, 0.07692308
    %v1164 = vmul.f32 %v1067, 0.07692308
    %v1165 = vmul.f32 %v1069, 0.07692308
    %v1166 = vmul.f32 %v1071, 0.07692308
    %v1167 = vmul.f32 %v1075, 0.07692308
    %v1168 = vmul.f32 %v1077, 0.07692308
    %v1169 = vmul.f32 %v1079, 0.07692308
    %v1170 = vmul.f32 %v1081, 0.07692308
    %v1171 = vlaneseq
    %v1172 = vshrl.u32 %v1171, 7
    %v1173 = vadd.s32 %v1172, 8
    %v1174 = vadd.s32 %v1172, 16
    %v1175 = vadd.s32 %v1172, 24
    %v1176 = vadd.s32 %v1172, 32
    %v1177 = vadd.s32 %v1172, 40
    %v1178 = vadd.s32 %v1172, 48
    %v1179 = vadd.s32 %v1172, 56
    %v1180 = vadd.s32 %v1172, 64
    %v1181 = vadd.s32 %v1172, 72
    %v1182 = vadd.s32 %v1172, 80
    %v1183 = vadd.s32 %v1172, 88
    %v1184 = vadd.s32 %v1172, 96
    %v1185 = vadd.s32 %v1172, 104
    %v1186 = vadd.s32 %v1172, 112
    %v1187 = vadd.s32 %v1172, 120
    %v1188 = vadd.s32 %v1172, 128
    %v1189 = vadd.s32 %v1172, 136
    %v1190 = vadd.s32 %v1172, 144
    %v1191 = vadd.s32 %v1172, 152
    %v1192 = vadd.s32 %v1172, 160
    %v1193 = vadd.s32 %v1172, 168
    %v1194 = vlaneseq
    %v1195 = vand.u32 %v1194, 127
    %v1196 = vadd.s32 %v1195, 128
    %vm1197 = vcmp.ge.s32.totalorder %v1172, 42
    %vm1198 = vcmp.ge.s32.totalorder %v1173, 42
    %vm1199 = vcmp.ge.s32.totalorder %v1174, 42
    %vm1200 = vcmp.ge.s32.totalorder %v1175, 42
    %vm1201 = vcmp.ge.s32.totalorder %v1176, 42
    %vm1202 = vcmp.ge.s32.totalorder %v1177, 42
    %vm1203 = vcmp.ge.s32.totalorder %v1178, 42
    %vm1204 = vcmp.ge.s32.totalorder %v1179, 42
    %vm1205 = vcmp.ge.s32.totalorder %v1180, 42
    %vm1206 = vcmp.ge.s32.totalorder %v1181, 42
    %vm1207 = vcmp.ge.s32.totalorder %v1182, 42
    %vm1208 = vcmp.ge.s32.totalorder %v1183, 42
    %vm1209 = vcmp.ge.s32.totalorder %v1184, 42
    %vm1210 = vcmp.ge.s32.totalorder %v1185, 42
    %vm1211 = vcmp.ge.s32.totalorder %v1186, 42
    %vm1212 = vcmp.ge.s32.totalorder %v1187, 42
    %vm1213 = vcmp.ge.s32.totalorder %v1188, 42
    %vm1214 = vcmp.ge.s32.totalorder %v1189, 42
    %vm1215 = vcmp.ge.s32.totalorder %v1190, 42
    %vm1216 = vcmp.ge.s32.totalorder %v1191, 42
    %vm1217 = vcmp.ge.s32.totalorder %v1192, 42
    %vm1218 = vcmp.ge.s32.totalorder %v1193, 42
    %v1219 = vsel %vm1197, 1, 0
    %v1220 = vsel %vm1198, 1, 0
    %v1221 = vsel %vm1199, 1, 0
    %v1222 = vsel %vm1200, 1, 0
    %v1223 = vsel %vm1201, 1, 0
    %v1224 = vsel %vm1202, 1, 0
    %v1225 = vsel %vm1203, 1, 0
    %v1226 = vsel %vm1204, 1, 0
    %v1227 = vsel %vm1205, 1, 0
    %v1228 = vsel %vm1206, 1, 0
    %v1229 = vsel %vm1207, 1, 0
    %v1230 = vsel %vm1208, 1, 0
    %v1231 = vsel %vm1209, 1, 0
    %v1232 = vsel %vm1210, 1, 0
    %v1233 = vsel %vm1211, 1, 0
    %v1234 = vsel %vm1212, 1, 0
    %v1235 = vsel %vm1213, 1, 0
    %v1236 = vsel %vm1214, 1, 0
    %v1237 = vsel %vm1215, 1, 0
    %v1238 = vsel %vm1216, 1, 0
    %v1239 = vsel %vm1217, 1, 0
    %v1240 = vsel %vm1218, 1, 0
    %vm1241 = vcmp.ge.s32.totalorder %v1172, 84
    %vm1242 = vcmp.ge.s32.totalorder %v1173, 84
    %vm1243 = vcmp.ge.s32.totalorder %v1174, 84
    %vm1244 = vcmp.ge.s32.totalorder %v1175, 84
    %vm1245 = vcmp.ge.s32.totalorder %v1176, 84
    %vm1246 = vcmp.ge.s32.totalorder %v1177, 84
    %vm1247 = vcmp.ge.s32.totalorder %v1178, 84
    %vm1248 = vcmp.ge.s32.totalorder %v1179, 84
    %vm1249 = vcmp.ge.s32.totalorder %v1180, 84
    %vm1250 = vcmp.ge.s32.totalorder %v1181, 84
    %vm1251 = vcmp.ge.s32.totalorder %v1182, 84
    %vm1252 = vcmp.ge.s32.totalorder %v1183, 84
    %vm1253 = vcmp.ge.s32.totalorder %v1184, 84
    %vm1254 = vcmp.ge.s32.totalorder %v1185, 84
    %vm1255 = vcmp.ge.s32.totalorder %v1186, 84
    %vm1256 = vcmp.ge.s32.totalorder %v1187, 84
    %vm1257 = vcmp.ge.s32.totalorder %v1188, 84
    %vm1258 = vcmp.ge.s32.totalorder %v1189, 84
    %vm1259 = vcmp.ge.s32.totalorder %v1190, 84
    %vm1260 = vcmp.ge.s32.totalorder %v1191, 84
    %vm1261 = vcmp.ge.s32.totalorder %v1192, 84
    %vm1262 = vcmp.ge.s32.totalorder %v1193, 84
    %v1263 = vsel %vm1241, 1, 0
    %v1264 = vsel %vm1242, 1, 0
    %v1265 = vsel %vm1243, 1, 0
    %v1266 = vsel %vm1244, 1, 0
    %v1267 = vsel %vm1245, 1, 0
    %v1268 = vsel %vm1246, 1, 0
    %v1269 = vsel %vm1247, 1, 0
    %v1270 = vsel %vm1248, 1, 0
    %v1271 = vsel %vm1249, 1, 0
    %v1272 = vsel %vm1250, 1, 0
    %v1273 = vsel %vm1251, 1, 0
    %v1274 = vsel %vm1252, 1, 0
    %v1275 = vsel %vm1253, 1, 0
    %v1276 = vsel %vm1254, 1, 0
    %v1277 = vsel %vm1255, 1, 0
    %v1278 = vsel %vm1256, 1, 0
    %v1279 = vsel %vm1257, 1, 0
    %v1280 = vsel %vm1258, 1, 0
    %v1281 = vsel %vm1259, 1, 0
    %v1282 = vsel %vm1260, 1, 0
    %v1283 = vsel %vm1261, 1, 0
    %v1284 = vsel %vm1262, 1, 0
    %v1285 = vadd.s32 %v1219, %v1263
    %v1286 = vadd.s32 %v1220, %v1264
    %v1287 = vadd.s32 %v1221, %v1265
    %v1288 = vadd.s32 %v1222, %v1266
    %v1289 = vadd.s32 %v1223, %v1267
    %v1290 = vadd.s32 %v1224, %v1268
    %v1291 = vadd.s32 %v1225, %v1269
    %v1292 = vadd.s32 %v1226, %v1270
    %v1293 = vadd.s32 %v1227, %v1271
    %v1294 = vadd.s32 %v1228, %v1272
    %v1295 = vadd.s32 %v1229, %v1273
    %v1296 = vadd.s32 %v1230, %v1274
    %v1297 = vadd.s32 %v1231, %v1275
    %v1298 = vadd.s32 %v1232, %v1276
    %v1299 = vadd.s32 %v1233, %v1277
    %v1300 = vadd.s32 %v1234, %v1278
    %v1301 = vadd.s32 %v1235, %v1279
    %v1302 = vadd.s32 %v1236, %v1280
    %v1303 = vadd.s32 %v1237, %v1281
    %v1304 = vadd.s32 %v1238, %v1282
    %v1305 = vadd.s32 %v1239, %v1283
    %v1306 = vadd.s32 %v1240, %v1284
    %vm1307 = vcmp.ge.s32.totalorder %v1172, 126
    %vm1308 = vcmp.ge.s32.totalorder %v1173, 126
    %vm1309 = vcmp.ge.s32.totalorder %v1174, 126
    %vm1310 = vcmp.ge.s32.totalorder %v1175, 126
    %vm1311 = vcmp.ge.s32.totalorder %v1176, 126
    %vm1312 = vcmp.ge.s32.totalorder %v1177, 126
    %vm1313 = vcmp.ge.s32.totalorder %v1178, 126
    %vm1314 = vcmp.ge.s32.totalorder %v1179, 126
    %vm1315 = vcmp.ge.s32.totalorder %v1180, 126
    %vm1316 = vcmp.ge.s32.totalorder %v1181, 126
    %vm1317 = vcmp.ge.s32.totalorder %v1182, 126
    %vm1318 = vcmp.ge.s32.totalorder %v1183, 126
    %vm1319 = vcmp.ge.s32.totalorder %v1184, 126
    %vm1320 = vcmp.ge.s32.totalorder %v1185, 126
    %vm1321 = vcmp.ge.s32.totalorder %v1186, 126
    %vm1322 = vcmp.ge.s32.totalorder %v1187, 126
    %vm1323 = vcmp.ge.s32.totalorder %v1188, 126
    %vm1324 = vcmp.ge.s32.totalorder %v1189, 126
    %vm1325 = vcmp.ge.s32.totalorder %v1190, 126
    %vm1326 = vcmp.ge.s32.totalorder %v1191, 126
    %vm1327 = vcmp.ge.s32.totalorder %v1192, 126
    %vm1328 = vcmp.ge.s32.totalorder %v1193, 126
    %v1329 = vsel %vm1307, 1, 0
    %v1330 = vsel %vm1308, 1, 0
    %v1331 = vsel %vm1309, 1, 0
    %v1332 = vsel %vm1310, 1, 0
    %v1333 = vsel %vm1311, 1, 0
    %v1334 = vsel %vm1312, 1, 0
    %v1335 = vsel %vm1313, 1, 0
    %v1336 = vsel %vm1314, 1, 0
    %v1337 = vsel %vm1315, 1, 0
    %v1338 = vsel %vm1316, 1, 0
    %v1339 = vsel %vm1317, 1, 0
    %v1340 = vsel %vm1318, 1, 0
    %v1341 = vsel %vm1319, 1, 0
    %v1342 = vsel %vm1320, 1, 0
    %v1343 = vsel %vm1321, 1, 0
    %v1344 = vsel %vm1322, 1, 0
    %v1345 = vsel %vm1323, 1, 0
    %v1346 = vsel %vm1324, 1, 0
    %v1347 = vsel %vm1325, 1, 0
    %v1348 = vsel %vm1326, 1, 0
    %v1349 = vsel %vm1327, 1, 0
    %v1350 = vsel %vm1328, 1, 0
    %v1351 = vadd.s32 %v1285, %v1329
    %v1352 = vadd.s32 %v1286, %v1330
    %v1353 = vadd.s32 %v1287, %v1331
    %v1354 = vadd.s32 %v1288, %v1332
    %v1355 = vadd.s32 %v1289, %v1333
    %v1356 = vadd.s32 %v1290, %v1334
    %v1357 = vadd.s32 %v1291, %v1335
    %v1358 = vadd.s32 %v1292, %v1336
    %v1359 = vadd.s32 %v1293, %v1337
    %v1360 = vadd.s32 %v1294, %v1338
    %v1361 = vadd.s32 %v1295, %v1339
    %v1362 = vadd.s32 %v1296, %v1340
    %v1363 = vadd.s32 %v1297, %v1341
    %v1364 = vadd.s32 %v1298, %v1342
    %v1365 = vadd.s32 %v1299, %v1343
    %v1366 = vadd.s32 %v1300, %v1344
    %v1367 = vadd.s32 %v1301, %v1345
    %v1368 = vadd.s32 %v1302, %v1346
    %v1369 = vadd.s32 %v1303, %v1347
    %v1370 = vadd.s32 %v1304, %v1348
    %v1371 = vadd.s32 %v1305, %v1349
    %v1372 = vadd.s32 %v1306, %v1350
    %vm1373 = vcmp.ge.s32.totalorder %v1195, 42
    %vm1374 = vcmp.ge.s32.totalorder %v1196, 42
    %v1375 = vsel %vm1373, 1, 0
    %v1376 = vsel %vm1374, 1, 0
    %vm1377 = vcmp.ge.s32.totalorder %v1195, 84
    %vm1378 = vcmp.ge.s32.totalorder %v1196, 84
    %v1379 = vsel %vm1377, 1, 0
    %v1380 = vsel %vm1378, 1, 0
    %v1381 = vadd.s32 %v1375, %v1379
    %v1382 = vadd.s32 %v1376, %v1380
    %vm1383 = vcmp.ge.s32.totalorder %v1195, 126
    %vm1384 = vcmp.ge.s32.totalorder %v1196, 126
    %v1385 = vsel %vm1383, 1, 0
    %v1386 = vsel %vm1384, 1, 0
    %v1387 = vadd.s32 %v1381, %v1385
    %v1388 = vadd.s32 %v1382, %v1386
    %vm1389 = vcmp.eq.s32.totalorder %v1351, %v1387
    %vm1390 = vcmp.eq.s32.totalorder %v1351, %v1388
    %vm1391 = vcmp.eq.s32.totalorder %v1352, %v1387
    %vm1392 = vcmp.eq.s32.totalorder %v1352, %v1388
    %vm1393 = vcmp.eq.s32.totalorder %v1353, %v1387
    %vm1394 = vcmp.eq.s32.totalorder %v1353, %v1388
    %vm1395 = vcmp.eq.s32.totalorder %v1354, %v1387
    %vm1396 = vcmp.eq.s32.totalorder %v1354, %v1388
    %vm1397 = vcmp.eq.s32.totalorder %v1355, %v1387
    %vm1398 = vcmp.eq.s32.totalorder %v1355, %v1388
    %vm1399 = vcmp.eq.s32.totalorder %v1356, %v1387
    %vm1400 = vcmp.eq.s32.totalorder %v1356, %v1388
    %vm1401 = vcmp.eq.s32.totalorder %v1357, %v1387
    %vm1402 = vcmp.eq.s32.totalorder %v1357, %v1388
    %vm1403 = vcmp.eq.s32.totalorder %v1358, %v1387
    %vm1404 = vcmp.eq.s32.totalorder %v1358, %v1388
    %vm1405 = vcmp.eq.s32.totalorder %v1359, %v1387
    %vm1406 = vcmp.eq.s32.totalorder %v1359, %v1388
    %vm1407 = vcmp.eq.s32.totalorder %v1360, %v1387
    %vm1408 = vcmp.eq.s32.totalorder %v1360, %v1388
    %vm1409 = vcmp.eq.s32.totalorder %v1361, %v1387
    %vm1410 = vcmp.eq.s32.totalorder %v1361, %v1388
    %vm1411 = vcmp.eq.s32.totalorder %v1362, %v1387
    %vm1412 = vcmp.eq.s32.totalorder %v1362, %v1388
    %vm1413 = vcmp.eq.s32.totalorder %v1363, %v1387
    %vm1414 = vcmp.eq.s32.totalorder %v1363, %v1388
    %vm1415 = vcmp.eq.s32.totalorder %v1364, %v1387
    %vm1416 = vcmp.eq.s32.totalorder %v1364, %v1388
    %vm1417 = vcmp.eq.s32.totalorder %v1365, %v1387
    %vm1418 = vcmp.eq.s32.totalorder %v1365, %v1388
    %vm1419 = vcmp.eq.s32.totalorder %v1366, %v1387
    %vm1420 = vcmp.eq.s32.totalorder %v1366, %v1388
    %vm1421 = vcmp.eq.s32.totalorder %v1367, %v1387
    %vm1422 = vcmp.eq.s32.totalorder %v1367, %v1388
    %vm1423 = vcmp.eq.s32.totalorder %v1368, %v1387
    %vm1424 = vcmp.eq.s32.totalorder %v1368, %v1388
    %vm1425 = vcmp.eq.s32.totalorder %v1369, %v1387
    %vm1426 = vcmp.eq.s32.totalorder %v1369, %v1388
    %vm1427 = vcmp.eq.s32.totalorder %v1370, %v1387
    %vm1428 = vcmp.eq.s32.totalorder %v1370, %v1388
    %vm1429 = vcmp.eq.s32.totalorder %v1371, %v1387
    %vm1430 = vcmp.eq.s32.totalorder %v1371, %v1388
    %vm1431 = vcmp.eq.s32.totalorder %v1372, %v1387
    %vm1432 = vcmp.eq.s32.totalorder %v1372, %v1388
    %v1433 = vsel %vm1389, 0.0, -1e+30
    %v1434 = vsel %vm1390, 0.0, -1e+30
    %v1435 = vsel %vm1391, 0.0, -1e+30
    %v1436 = vsel %vm1392, 0.0, -1e+30
    %v1437 = vsel %vm1393, 0.0, -1e+30
    %v1438 = vsel %vm1394, 0.0, -1e+30
    %v1439 = vsel %vm1395, 0.0, -1e+30
    %v1440 = vsel %vm1396, 0.0, -1e+30
    %v1441 = vsel %vm1397, 0.0, -1e+30
    %v1442 = vsel %vm1398, 0.0, -1e+30
    %v1443 = vsel %vm1399, 0.0, -1e+30
    %v1444 = vsel %vm1400, 0.0, -1e+30
    %v1445 = vsel %vm1401, 0.0, -1e+30
    %v1446 = vsel %vm1402, 0.0, -1e+30
    %v1447 = vsel %vm1403, 0.0, -1e+30
    %v1448 = vsel %vm1404, 0.0, -1e+30
    %v1449 = vsel %vm1405, 0.0, -1e+30
    %v1450 = vsel %vm1406, 0.0, -1e+30
    %v1451 = vsel %vm1407, 0.0, -1e+30
    %v1452 = vsel %vm1408, 0.0, -1e+30
    %v1453 = vsel %vm1409, 0.0, -1e+30
    %v1454 = vsel %vm1410, 0.0, -1e+30
    %v1455 = vsel %vm1411, 0.0, -1e+30
    %v1456 = vsel %vm1412, 0.0, -1e+30
    %v1457 = vsel %vm1413, 0.0, -1e+30
    %v1458 = vsel %vm1414, 0.0, -1e+30
    %v1459 = vsel %vm1415, 0.0, -1e+30
    %v1460 = vsel %vm1416, 0.0, -1e+30
    %v1461 = vsel %vm1417, 0.0, -1e+30
    %v1462 = vsel %vm1418, 0.0, -1e+30
    %v1463 = vsel %vm1419, 0.0, -1e+30
    %v1464 = vsel %vm1420, 0.0, -1e+30
    %v1465 = vsel %vm1421, 0.0, -1e+30
    %v1466 = vsel %vm1422, 0.0, -1e+30
    %v1467 = vsel %vm1423, 0.0, -1e+30
    %v1468 = vsel %vm1424, 0.0, -1e+30
    %v1469 = vsel %vm1425, 0.0, -1e+30
    %v1470 = vsel %vm1426, 0.0, -1e+30
    %v1471 = vsel %vm1427, 0.0, -1e+30
    %v1472 = vsel %vm1428, 0.0, -1e+30
    %v1473 = vsel %vm1429, 0.0, -1e+30
    %v1474 = vsel %vm1430, 0.0, -1e+30
    %v1475 = vsel %vm1431, 0.0, -1e+30
    %v1476 = vsel %vm1432, 0.0, -1e+30
    %v1477 = vadd.f32 %v1083, %v1433
    %v1478 = vadd.f32 %v1084, %v1434
    %v1479 = vadd.f32 %v1085, %v1435
    %v1480 = vadd.f32 %v1086, %v1436
    %v1481 = vadd.f32 %v1087, %v1437
    %v1482 = vadd.f32 %v1088, %v1438
    %v1483 = vadd.f32 %v1089, %v1439
    %v1484 = vadd.f32 %v1090, %v1440
    %v1485 = vadd.f32 %v1091, %v1441
    %v1486 = vadd.f32 %v1092, %v1442
    %v1487 = vadd.f32 %v1093, %v1443
    %v1488 = vadd.f32 %v1094, %v1444
    %v1489 = vadd.f32 %v1095, %v1445
    %v1490 = vadd.f32 %v1096, %v1446
    %v1491 = vadd.f32 %v1097, %v1447
    %v1492 = vadd.f32 %v1098, %v1448
    %v1493 = vadd.f32 %v1099, %v1449
    %v1494 = vadd.f32 %v1100, %v1450
    %v1495 = vadd.f32 %v1101, %v1451
    %v1496 = vadd.f32 %v1102, %v1452
    %v1497 = vadd.f32 %v1103, %v1453
    %v1498 = vadd.f32 %v1104, %v1454
    %v1499 = vadd.f32 %v1105, %v1455
    %v1500 = vadd.f32 %v1106, %v1456
    %v1501 = vadd.f32 %v1107, %v1457
    %v1502 = vadd.f32 %v1108, %v1458
    %v1503 = vadd.f32 %v1109, %v1459
    %v1504 = vadd.f32 %v1110, %v1460
    %v1505 = vadd.f32 %v1111, %v1461
    %v1506 = vadd.f32 %v1112, %v1462
    %v1507 = vadd.f32 %v1113, %v1463
    %v1508 = vadd.f32 %v1114, %v1464
    %v1509 = vadd.f32 %v1115, %v1465
    %v1510 = vadd.f32 %v1116, %v1466
    %v1511 = vadd.f32 %v1117, %v1467
    %v1512 = vadd.f32 %v1118, %v1468
    %v1513 = vadd.f32 %v1119, %v1469
    %v1514 = vadd.f32 %v1120, %v1470
    %v1515 = vadd.f32 %v1121, %v1471
    %v1516 = vadd.f32 %v1122, %v1472
    %v1517 = vadd.f32 %v1123, %v1473
    %v1518 = vadd.f32 %v1124, %v1474
    %v1519 = vadd.f32 %v1125, %v1475
    %v1520 = vadd.f32 %v1126, %v1476
    %v1521 = vadd.f32 %v1127, %v1433
    %v1522 = vadd.f32 %v1128, %v1434
    %v1523 = vadd.f32 %v1129, %v1435
    %v1524 = vadd.f32 %v1130, %v1436
    %v1525 = vadd.f32 %v1131, %v1437
    %v1526 = vadd.f32 %v1132, %v1438
    %v1527 = vadd.f32 %v1133, %v1439
    %v1528 = vadd.f32 %v1134, %v1440
    %v1529 = vadd.f32 %v1135, %v1441
    %v1530 = vadd.f32 %v1136, %v1442
    %v1531 = vadd.f32 %v1137, %v1443
    %v1532 = vadd.f32 %v1138, %v1444
    %v1533 = vadd.f32 %v1139, %v1445
    %v1534 = vadd.f32 %v1140, %v1446
    %v1535 = vadd.f32 %v1141, %v1447
    %v1536 = vadd.f32 %v1142, %v1448
    %v1537 = vadd.f32 %v1143, %v1449
    %v1538 = vadd.f32 %v1144, %v1450
    %v1539 = vadd.f32 %v1145, %v1451
    %v1540 = vadd.f32 %v1146, %v1452
    %v1541 = vadd.f32 %v1147, %v1453
    %v1542 = vadd.f32 %v1148, %v1454
    %v1543 = vadd.f32 %v1149, %v1455
    %v1544 = vadd.f32 %v1150, %v1456
    %v1545 = vadd.f32 %v1151, %v1457
    %v1546 = vadd.f32 %v1152, %v1458
    %v1547 = vadd.f32 %v1153, %v1459
    %v1548 = vadd.f32 %v1154, %v1460
    %v1549 = vadd.f32 %v1155, %v1461
    %v1550 = vadd.f32 %v1156, %v1462
    %v1551 = vadd.f32 %v1157, %v1463
    %v1552 = vadd.f32 %v1158, %v1464
    %v1553 = vadd.f32 %v1159, %v1465
    %v1554 = vadd.f32 %v1160, %v1466
    %v1555 = vadd.f32 %v1161, %v1467
    %v1556 = vadd.f32 %v1162, %v1468
    %v1557 = vadd.f32 %v1163, %v1469
    %v1558 = vadd.f32 %v1164, %v1470
    %v1559 = vadd.f32 %v1165, %v1471
    %v1560 = vadd.f32 %v1166, %v1472
    %v1561 = vadd.f32 %v1167, %v1473
    %v1562 = vadd.f32 %v1168, %v1474
    %v1563 = vadd.f32 %v1169, %v1475
    %v1564 = vadd.f32 %v1170, %v1476
    %v1565 = vsel %vm463, %v1478, -inf
    %v1566 = vmax.f32 %v1477, %v1565
    %1567 = vmax.xlane.f32.xlu0 %v1566
    %v1568 = vpop.xlane.xlu0 %1567
    %v1569 = vsel %vm463, %v1480, -inf
    %v1570 = vmax.f32 %v1479, %v1569
    %1571 = vmax.xlane.f32.xlu0 %v1570
    %v1572 = vpop.xlane.xlu0 %1571
    %v1573 = vsel %vm463, %v1482, -inf
    %v1574 = vmax.f32 %v1481, %v1573
    %1575 = vmax.xlane.f32.xlu0 %v1574
    %v1576 = vpop.xlane.xlu0 %1575
    %v1577 = vsel %vm463, %v1484, -inf
    %v1578 = vmax.f32 %v1483, %v1577
    %1579 = vmax.xlane.f32.xlu0 %v1578
    %v1580 = vpop.xlane.xlu0 %1579
    %v1581 = vsel %vm463, %v1486, -inf
    %v1582 = vmax.f32 %v1485, %v1581
    %1583 = vmax.xlane.f32.xlu0 %v1582
    %v1584 = vpop.xlane.xlu0 %1583
    %v1585 = vsel %vm463, %v1488, -inf
    %v1586 = vmax.f32 %v1487, %v1585
    %1587 = vmax.xlane.f32.xlu0 %v1586
    %v1588 = vpop.xlane.xlu0 %1587
    %v1589 = vsel %vm463, %v1490, -inf
    %v1590 = vmax.f32 %v1489, %v1589
    %1591 = vmax.xlane.f32.xlu0 %v1590
    %v1592 = vpop.xlane.xlu0 %1591
    %v1593 = vsel %vm463, %v1492, -inf
    %v1594 = vmax.f32 %v1491, %v1593
    %1595 = vmax.xlane.f32.xlu0 %v1594
    %v1596 = vpop.xlane.xlu0 %1595
    %v1597 = vsel %vm463, %v1494, -inf
    %v1598 = vmax.f32 %v1493, %v1597
    %1599 = vmax.xlane.f32.xlu0 %v1598
    %v1600 = vpop.xlane.xlu0 %1599
    %v1601 = vsel %vm463, %v1496, -inf
    %v1602 = vmax.f32 %v1495, %v1601
    %1603 = vmax.xlane.f32.xlu0 %v1602
    %v1604 = vpop.xlane.xlu0 %1603
    %v1605 = vsel %vm463, %v1498, -inf
    %v1606 = vmax.f32 %v1497, %v1605
    %1607 = vmax.xlane.f32.xlu0 %v1606
    %v1608 = vpop.xlane.xlu0 %1607
    %v1609 = vsel %vm463, %v1500, -inf
    %v1610 = vmax.f32 %v1499, %v1609
    %1611 = vmax.xlane.f32.xlu0 %v1610
    %v1612 = vpop.xlane.xlu0 %1611
    %v1613 = vsel %vm463, %v1502, -inf
    %v1614 = vmax.f32 %v1501, %v1613
    %1615 = vmax.xlane.f32.xlu0 %v1614
    %v1616 = vpop.xlane.xlu0 %1615
    %v1617 = vsel %vm463, %v1504, -inf
    %v1618 = vmax.f32 %v1503, %v1617
    %1619 = vmax.xlane.f32.xlu0 %v1618
    %v1620 = vpop.xlane.xlu0 %1619
    %v1621 = vsel %vm463, %v1506, -inf
    %v1622 = vmax.f32 %v1505, %v1621
    %1623 = vmax.xlane.f32.xlu0 %v1622
    %v1624 = vpop.xlane.xlu0 %1623
    %v1625 = vsel %vm463, %v1508, -inf
    %v1626 = vmax.f32 %v1507, %v1625
    %1627 = vmax.xlane.f32.xlu0 %v1626
    %v1628 = vpop.xlane.xlu0 %1627
    %v1629 = vsel %vm463, %v1510, -inf
    %v1630 = vmax.f32 %v1509, %v1629
    %1631 = vmax.xlane.f32.xlu0 %v1630
    %v1632 = vpop.xlane.xlu0 %1631
    %v1633 = vsel %vm463, %v1512, -inf
    %v1634 = vmax.f32 %v1511, %v1633
    %1635 = vmax.xlane.f32.xlu0 %v1634
    %v1636 = vpop.xlane.xlu0 %1635
    %v1637 = vsel %vm463, %v1514, -inf
    %v1638 = vmax.f32 %v1513, %v1637
    %1639 = vmax.xlane.f32.xlu0 %v1638
    %v1640 = vpop.xlane.xlu0 %1639
    %v1641 = vsel %vm463, %v1516, -inf
    %v1642 = vmax.f32 %v1515, %v1641
    %1643 = vmax.xlane.f32.xlu0 %v1642
    %v1644 = vpop.xlane.xlu0 %1643
    %v1645 = vsel %vm463, %v1518, -inf
    %v1646 = vmax.f32 %v1517, %v1645
    %1647 = vmax.xlane.f32.xlu0 %v1646
    %v1648 = vpop.xlane.xlu0 %1647
    %vm1649 = vcmask 1040384
    %v1650 = vsel %vm1649, %v1519, -inf
    %vm1651 = vcmask 327680
    %v1652 = vsel %vm1651, %v1520, -inf
    %v1653 = vmax.f32 %v1650, %v1652
    %1654 = vmax.xlane.f32.xlu0 %v1653
    %v1655 = vpop.xlane.xlu0 %1654
    %v1656 = vsel %vm463, %v1522, -inf
    %v1657 = vmax.f32 %v1521, %v1656
    %1658 = vmax.xlane.f32.xlu0 %v1657
    %v1659 = vpop.xlane.xlu0 %1658
    %v1660 = vsel %vm463, %v1524, -inf
    %v1661 = vmax.f32 %v1523, %v1660
    %1662 = vmax.xlane.f32.xlu0 %v1661
    %v1663 = vpop.xlane.xlu0 %1662
    %v1664 = vsel %vm463, %v1526, -inf
    %v1665 = vmax.f32 %v1525, %v1664
    %1666 = vmax.xlane.f32.xlu0 %v1665
    %v1667 = vpop.xlane.xlu0 %1666
    %v1668 = vsel %vm463, %v1528, -inf
    %v1669 = vmax.f32 %v1527, %v1668
    %1670 = vmax.xlane.f32.xlu0 %v1669
    %v1671 = vpop.xlane.xlu0 %1670
    %v1672 = vsel %vm463, %v1530, -inf
    %v1673 = vmax.f32 %v1529, %v1672
    %1674 = vmax.xlane.f32.xlu0 %v1673
    %v1675 = vpop.xlane.xlu0 %1674
    %v1676 = vsel %vm463, %v1532, -inf
    %v1677 = vmax.f32 %v1531, %v1676
    %1678 = vmax.xlane.f32.xlu0 %v1677
    %v1679 = vpop.xlane.xlu0 %1678
    %v1680 = vsel %vm463, %v1534, -inf
    %v1681 = vmax.f32 %v1533, %v1680
    %1682 = vmax.xlane.f32.xlu0 %v1681
    %v1683 = vpop.xlane.xlu0 %1682
    %v1684 = vsel %vm463, %v1536, -inf
    %v1685 = vmax.f32 %v1535, %v1684
    %1686 = vmax.xlane.f32.xlu0 %v1685
    %v1687 = vpop.xlane.xlu0 %1686
    %v1688 = vsel %vm463, %v1538, -inf
    %v1689 = vmax.f32 %v1537, %v1688
    %1690 = vmax.xlane.f32.xlu0 %v1689
    %v1691 = vpop.xlane.xlu0 %1690
    %v1692 = vsel %vm463, %v1540, -inf
    %v1693 = vmax.f32 %v1539, %v1692
    %1694 = vmax.xlane.f32.xlu0 %v1693
    %v1695 = vpop.xlane.xlu0 %1694
    %v1696 = vsel %vm463, %v1542, -inf
    %v1697 = vmax.f32 %v1541, %v1696
    %1698 = vmax.xlane.f32.xlu0 %v1697
    %v1699 = vpop.xlane.xlu0 %1698
    %v1700 = vsel %vm463, %v1544, -inf
    %v1701 = vmax.f32 %v1543, %v1700
    %1702 = vmax.xlane.f32.xlu0 %v1701
    %v1703 = vpop.xlane.xlu0 %1702
    %v1704 = vsel %vm463, %v1546, -inf
    %v1705 = vmax.f32 %v1545, %v1704
    %1706 = vmax.xlane.f32.xlu0 %v1705
    %v1707 = vpop.xlane.xlu0 %1706
    %v1708 = vsel %vm463, %v1548, -inf
    %v1709 = vmax.f32 %v1547, %v1708
    %1710 = vmax.xlane.f32.xlu0 %v1709
    %v1711 = vpop.xlane.xlu0 %1710
    %v1712 = vsel %vm463, %v1550, -inf
    %v1713 = vmax.f32 %v1549, %v1712
    %1714 = vmax.xlane.f32.xlu0 %v1713
    %v1715 = vpop.xlane.xlu0 %1714
    %v1716 = vsel %vm463, %v1552, -inf
    %v1717 = vmax.f32 %v1551, %v1716
    %1718 = vmax.xlane.f32.xlu0 %v1717
    %v1719 = vpop.xlane.xlu0 %1718
    %v1720 = vsel %vm463, %v1554, -inf
    %v1721 = vmax.f32 %v1553, %v1720
    %1722 = vmax.xlane.f32.xlu0 %v1721
    %v1723 = vpop.xlane.xlu0 %1722
    %v1724 = vsel %vm463, %v1556, -inf
    %v1725 = vmax.f32 %v1555, %v1724
    %1726 = vmax.xlane.f32.xlu0 %v1725
    %v1727 = vpop.xlane.xlu0 %1726
    %v1728 = vsel %vm463, %v1558, -inf
    %v1729 = vmax.f32 %v1557, %v1728
    %1730 = vmax.xlane.f32.xlu0 %v1729
    %v1731 = vpop.xlane.xlu0 %1730
    %v1732 = vsel %vm463, %v1560, -inf
    %v1733 = vmax.f32 %v1559, %v1732
    %1734 = vmax.xlane.f32.xlu0 %v1733
    %v1735 = vpop.xlane.xlu0 %1734
    %v1736 = vsel %vm463, %v1562, -inf
    %v1737 = vmax.f32 %v1561, %v1736
    %1738 = vmax.xlane.f32.xlu0 %v1737
    %v1739 = vpop.xlane.xlu0 %1738
    %v1740 = vsel %vm1649, %v1563, -inf
    %v1741 = vsel %vm1651, %v1564, -inf
    %v1742 = vmax.f32 %v1740, %v1741
    %1743 = vmax.xlane.f32.xlu0 %v1742
    %v1744 = vpop.xlane.xlu0 %1743
    %v1745 = vsub.f32 %v1477, %v1568
    %v1746 = vsub.f32 %v1478, %v1568
    %v1747 = vsub.f32 %v1479, %v1572
    %v1748 = vsub.f32 %v1480, %v1572
    %v1749 = vsub.f32 %v1481, %v1576
    %v1750 = vsub.f32 %v1482, %v1576
    %v1751 = vsub.f32 %v1483, %v1580
    %v1752 = vsub.f32 %v1484, %v1580
    %v1753 = vsub.f32 %v1485, %v1584
    %v1754 = vsub.f32 %v1486, %v1584
    %v1755 = vsub.f32 %v1487, %v1588
    %v1756 = vsub.f32 %v1488, %v1588
    %v1757 = vsub.f32 %v1489, %v1592
    %v1758 = vsub.f32 %v1490, %v1592
    %v1759 = vsub.f32 %v1491, %v1596
    %v1760 = vsub.f32 %v1492, %v1596
    %v1761 = vsub.f32 %v1493, %v1600
    %v1762 = vsub.f32 %v1494, %v1600
    %v1763 = vsub.f32 %v1495, %v1604
    %v1764 = vsub.f32 %v1496, %v1604
    %v1765 = vsub.f32 %v1497, %v1608
    %v1766 = vsub.f32 %v1498, %v1608
    %v1767 = vsub.f32 %v1499, %v1612
    %v1768 = vsub.f32 %v1500, %v1612
    %v1769 = vsub.f32 %v1501, %v1616
    %v1770 = vsub.f32 %v1502, %v1616
    %v1771 = vsub.f32 %v1503, %v1620
    %v1772 = vsub.f32 %v1504, %v1620
    %v1773 = vsub.f32 %v1505, %v1624
    %v1774 = vsub.f32 %v1506, %v1624
    %v1775 = vsub.f32 %v1507, %v1628
    %v1776 = vsub.f32 %v1508, %v1628
    %v1777 = vsub.f32 %v1509, %v1632
    %v1778 = vsub.f32 %v1510, %v1632
    %v1779 = vsub.f32 %v1511, %v1636
    %v1780 = vsub.f32 %v1512, %v1636
    %v1781 = vsub.f32 %v1513, %v1640
    %v1782 = vsub.f32 %v1514, %v1640
    %v1783 = vsub.f32 %v1515, %v1644
    %v1784 = vsub.f32 %v1516, %v1644
    %v1785 = vsub.f32 %v1517, %v1648
    %v1786 = vsub.f32 %v1518, %v1648
    %v1787 = vsub.f32 %v1519, %v1655
    %v1788 = vsub.f32 %v1520, %v1655
    %v1789 = vsub.f32 %v1521, %v1659
    %v1790 = vsub.f32 %v1522, %v1659
    %v1791 = vsub.f32 %v1523, %v1663
    %v1792 = vsub.f32 %v1524, %v1663
    %v1793 = vsub.f32 %v1525, %v1667
    %v1794 = vsub.f32 %v1526, %v1667
    %v1795 = vsub.f32 %v1527, %v1671
    %v1796 = vsub.f32 %v1528, %v1671
    %v1797 = vsub.f32 %v1529, %v1675
    %v1798 = vsub.f32 %v1530, %v1675
    %v1799 = vsub.f32 %v1531, %v1679
    %v1800 = vsub.f32 %v1532, %v1679
    %v1801 = vsub.f32 %v1533, %v1683
    %v1802 = vsub.f32 %v1534, %v1683
    %v1803 = vsub.f32 %v1535, %v1687
    %v1804 = vsub.f32 %v1536, %v1687
    %v1805 = vsub.f32 %v1537, %v1691
    %v1806 = vsub.f32 %v1538, %v1691
    %v1807 = vsub.f32 %v1539, %v1695
    %v1808 = vsub.f32 %v1540, %v1695
    %v1809 = vsub.f32 %v1541, %v1699
    %v1810 = vsub.f32 %v1542, %v1699
    %v1811 = vsub.f32 %v1543, %v1703
    %v1812 = vsub.f32 %v1544, %v1703
    %v1813 = vsub.f32 %v1545, %v1707
    %v1814 = vsub.f32 %v1546, %v1707
    %v1815 = vsub.f32 %v1547, %v1711
    %v1816 = vsub.f32 %v1548, %v1711
    %v1817 = vsub.f32 %v1549, %v1715
    %v1818 = vsub.f32 %v1550, %v1715
    %v1819 = vsub.f32 %v1551, %v1719
    %v1820 = vsub.f32 %v1552, %v1719
    %v1821 = vsub.f32 %v1553, %v1723
    %v1822 = vsub.f32 %v1554, %v1723
    %v1823 = vsub.f32 %v1555, %v1727
    %v1824 = vsub.f32 %v1556, %v1727
    %v1825 = vsub.f32 %v1557, %v1731
    %v1826 = vsub.f32 %v1558, %v1731
    %v1827 = vsub.f32 %v1559, %v1735
    %v1828 = vsub.f32 %v1560, %v1735
    %v1829 = vsub.f32 %v1561, %v1739
    %v1830 = vsub.f32 %v1562, %v1739
    %v1831 = vsub.f32 %v1563, %v1744
    %v1832 = vsub.f32 %v1564, %v1744
    %v1833 = vmul.f32 %v1745, 1.442695
    %v1834 = vpow.pop %v1833
    %v1835 = vmul.f32 %v1746, 1.442695
    %v1836 = vpow.pop %v1835
    %v1837 = vmul.f32 %v1747, 1.442695
    %v1838 = vpow.pop %v1837
    %v1839 = vmul.f32 %v1748, 1.442695
    %v1840 = vpow.pop %v1839
    %v1841 = vmul.f32 %v1749, 1.442695
    %v1842 = vpow.pop %v1841
    %v1843 = vmul.f32 %v1750, 1.442695
    %v1844 = vpow.pop %v1843
    %v1845 = vmul.f32 %v1751, 1.442695
    %v1846 = vpow.pop %v1845
    %v1847 = vmul.f32 %v1752, 1.442695
    %v1848 = vpow.pop %v1847
    %v1849 = vmul.f32 %v1753, 1.442695
    %v1850 = vpow.pop %v1849
    %v1851 = vmul.f32 %v1754, 1.442695
    %v1852 = vpow.pop %v1851
    %v1853 = vmul.f32 %v1755, 1.442695
    %v1854 = vpow.pop %v1853
    %v1855 = vmul.f32 %v1756, 1.442695
    %v1856 = vpow.pop %v1855
    %v1857 = vmul.f32 %v1757, 1.442695
    %v1858 = vpow.pop %v1857
    %v1859 = vmul.f32 %v1758, 1.442695
    %v1860 = vpow.pop %v1859
    %v1861 = vmul.f32 %v1759, 1.442695
    %v1862 = vpow.pop %v1861
    %v1863 = vmul.f32 %v1760, 1.442695
    %v1864 = vpow.pop %v1863
    %v1865 = vmul.f32 %v1761, 1.442695
    %v1866 = vpow.pop %v1865
    %v1867 = vmul.f32 %v1762, 1.442695
    %v1868 = vpow.pop %v1867
    %v1869 = vmul.f32 %v1763, 1.442695
    %v1870 = vpow.pop %v1869
    %v1871 = vmul.f32 %v1764, 1.442695
    %v1872 = vpow.pop %v1871
    %v1873 = vmul.f32 %v1765, 1.442695
    %v1874 = vpow.pop %v1873
    %v1875 = vmul.f32 %v1766, 1.442695
    %v1876 = vpow.pop %v1875
    %v1877 = vmul.f32 %v1767, 1.442695
    %v1878 = vpow.pop %v1877
    %v1879 = vmul.f32 %v1768, 1.442695
    %v1880 = vpow.pop %v1879
    %v1881 = vmul.f32 %v1769, 1.442695
    %v1882 = vpow.pop %v1881
    %v1883 = vmul.f32 %v1770, 1.442695
    %v1884 = vpow.pop %v1883
    %v1885 = vmul.f32 %v1771, 1.442695
    %v1886 = vpow.pop %v1885
    %v1887 = vmul.f32 %v1772, 1.442695
    %v1888 = vpow.pop %v1887
    %v1889 = vmul.f32 %v1773, 1.442695
    %v1890 = vpow.pop %v1889
    %v1891 = vmul.f32 %v1774, 1.442695
    %v1892 = vpow.pop %v1891
    %v1893 = vmul.f32 %v1775, 1.442695
    %v1894 = vpow.pop %v1893
    %v1895 = vmul.f32 %v1776, 1.442695
    %v1896 = vpow.pop %v1895
    %v1897 = vmul.f32 %v1777, 1.442695
    %v1898 = vpow.pop %v1897
    %v1899 = vmul.f32 %v1778, 1.442695
    %v1900 = vpow.pop %v1899
    %v1901 = vmul.f32 %v1779, 1.442695
    %v1902 = vpow.pop %v1901
    %v1903 = vmul.f32 %v1780, 1.442695
    %v1904 = vpow.pop %v1903
    %v1905 = vmul.f32 %v1781, 1.442695
    %v1906 = vpow.pop %v1905
    %v1907 = vmul.f32 %v1782, 1.442695
    %v1908 = vpow.pop %v1907
    %v1909 = vmul.f32 %v1783, 1.442695
    %v1910 = vpow.pop %v1909
    %v1911 = vmul.f32 %v1784, 1.442695
    %v1912 = vpow.pop %v1911
    %v1913 = vmul.f32 %v1785, 1.442695
    %v1914 = vpow.pop %v1913
    %v1915 = vmul.f32 %v1786, 1.442695
    %v1916 = vpow.pop %v1915
    %v1917 = vmul.f32 %v1787, 1.442695
    %v1918 = vpow.pop %v1917
    %v1919 = vmul.f32 %v1788, 1.442695
    %v1920 = vpow.pop %v1919
    %v1921 = vmul.f32 %v1789, 1.442695
    %v1922 = vpow.pop %v1921
    %v1923 = vmul.f32 %v1790, 1.442695
    %v1924 = vpow.pop %v1923
    %v1925 = vmul.f32 %v1791, 1.442695
    %v1926 = vpow.pop %v1925
    %v1927 = vmul.f32 %v1792, 1.442695
    %v1928 = vpow.pop %v1927
    %v1929 = vmul.f32 %v1793, 1.442695
    %v1930 = vpow.pop %v1929
    %v1931 = vmul.f32 %v1794, 1.442695
    %v1932 = vpow.pop %v1931
    %v1933 = vmul.f32 %v1795, 1.442695
    %v1934 = vpow.pop %v1933
    %v1935 = vmul.f32 %v1796, 1.442695
    %v1936 = vpow.pop %v1935
    %v1937 = vmul.f32 %v1797, 1.442695
    %v1938 = vpow.pop %v1937
    %v1939 = vmul.f32 %v1798, 1.442695
    %v1940 = vpow.pop %v1939
    %v1941 = vmul.f32 %v1799, 1.442695
    %v1942 = vpow.pop %v1941
    %v1943 = vmul.f32 %v1800, 1.442695
    %v1944 = vpow.pop %v1943
    %v1945 = vmul.f32 %v1801, 1.442695
    %v1946 = vpow.pop %v1945
    %v1947 = vmul.f32 %v1802, 1.442695
    %v1948 = vpow.pop %v1947
    %v1949 = vmul.f32 %v1803, 1.442695
    %v1950 = vpow.pop %v1949
    %v1951 = vmul.f32 %v1804, 1.442695
    %v1952 = vpow.pop %v1951
    %v1953 = vmul.f32 %v1805, 1.442695
    %v1954 = vpow.pop %v1953
    %v1955 = vmul.f32 %v1806, 1.442695
    %v1956 = vpow.pop %v1955
    %v1957 = vmul.f32 %v1807, 1.442695
    %v1958 = vpow.pop %v1957
    %v1959 = vmul.f32 %v1808, 1.442695
    %v1960 = vpow.pop %v1959
    %v1961 = vmul.f32 %v1809, 1.442695
    %v1962 = vpow.pop %v1961
    %v1963 = vmul.f32 %v1810, 1.442695
    %v1964 = vpow.pop %v1963
    %v1965 = vmul.f32 %v1811, 1.442695
    %v1966 = vpow.pop %v1965
    %v1967 = vmul.f32 %v1812, 1.442695
    %v1968 = vpow.pop %v1967
    %v1969 = vmul.f32 %v1813, 1.442695
    %v1970 = vpow.pop %v1969
    %v1971 = vmul.f32 %v1814, 1.442695
    %v1972 = vpow.pop %v1971
    %v1973 = vmul.f32 %v1815, 1.442695
    %v1974 = vpow.pop %v1973
    %v1975 = vmul.f32 %v1816, 1.442695
    %v1976 = vpow.pop %v1975
    %v1977 = vmul.f32 %v1817, 1.442695
    %v1978 = vpow.pop %v1977
    %v1979 = vmul.f32 %v1818, 1.442695
    %v1980 = vpow.pop %v1979
    %v1981 = vmul.f32 %v1819, 1.442695
    %v1982 = vpow.pop %v1981
    %v1983 = vmul.f32 %v1820, 1.442695
    %v1984 = vpow.pop %v1983
    %v1985 = vmul.f32 %v1821, 1.442695
    %v1986 = vpow.pop %v1985
    %v1987 = vmul.f32 %v1822, 1.442695
    %v1988 = vpow.pop %v1987
    %v1989 = vmul.f32 %v1823, 1.442695
    %v1990 = vpow.pop %v1989
    %v1991 = vmul.f32 %v1824, 1.442695
    %v1992 = vpow.pop %v1991
    %v1993 = vmul.f32 %v1825, 1.442695
    %v1994 = vpow.pop %v1993
    %v1995 = vmul.f32 %v1826, 1.442695
    %v1996 = vpow.pop %v1995
    %v1997 = vmul.f32 %v1827, 1.442695
    %v1998 = vpow.pop %v1997
    %v1999 = vmul.f32 %v1828, 1.442695
    %v2000 = vpow.pop %v1999
    %v2001 = vmul.f32 %v1829, 1.442695
    %v2002 = vpow.pop %v2001
    %v2003 = vmul.f32 %v1830, 1.442695
    %v2004 = vpow.pop %v2003
    %v2005 = vmul.f32 %v1831, 1.442695
    %v2006 = vpow.pop %v2005
    %v2007 = vmul.f32 %v1832, 1.442695
    %v2008 = vpow.pop %v2007
    %v2009 = vsel %vm463, %v1836, 0.0
    %v2010 = vadd.f32 %v1834, %v2009
    %2011 = vadd.xlane.f32.xlu0 %v2010
    %v2012 = vpop.xlane.xlu0 %2011
    %v2013 = vsel %vm463, %v1840, 0.0
    %v2014 = vadd.f32 %v1838, %v2013
    %2015 = vadd.xlane.f32.xlu0 %v2014
    %v2016 = vpop.xlane.xlu0 %2015
    %v2017 = vsel %vm463, %v1844, 0.0
    %v2018 = vadd.f32 %v1842, %v2017
    %2019 = vadd.xlane.f32.xlu0 %v2018
    %v2020 = vpop.xlane.xlu0 %2019
    %v2021 = vsel %vm463, %v1848, 0.0
    %v2022 = vadd.f32 %v1846, %v2021
    %2023 = vadd.xlane.f32.xlu0 %v2022
    %v2024 = vpop.xlane.xlu0 %2023
    %v2025 = vsel %vm463, %v1852, 0.0
    %v2026 = vadd.f32 %v1850, %v2025
    %2027 = vadd.xlane.f32.xlu0 %v2026
    %v2028 = vpop.xlane.xlu0 %2027
    %v2029 = vsel %vm463, %v1856, 0.0
    %v2030 = vadd.f32 %v1854, %v2029
    %2031 = vadd.xlane.f32.xlu0 %v2030
    %v2032 = vpop.xlane.xlu0 %2031
    %v2033 = vsel %vm463, %v1860, 0.0
    %v2034 = vadd.f32 %v1858, %v2033
    %2035 = vadd.xlane.f32.xlu0 %v2034
    %v2036 = vpop.xlane.xlu0 %2035
    %v2037 = vsel %vm463, %v1864, 0.0
    %v2038 = vadd.f32 %v1862, %v2037
    %2039 = vadd.xlane.f32.xlu0 %v2038
    %v2040 = vpop.xlane.xlu0 %2039
    %v2041 = vsel %vm463, %v1868, 0.0
    %v2042 = vadd.f32 %v1866, %v2041
    %2043 = vadd.xlane.f32.xlu0 %v2042
    %v2044 = vpop.xlane.xlu0 %2043
    %v2045 = vsel %vm463, %v1872, 0.0
    %v2046 = vadd.f32 %v1870, %v2045
    %2047 = vadd.xlane.f32.xlu0 %v2046
    %v2048 = vpop.xlane.xlu0 %2047
    %v2049 = vsel %vm463, %v1876, 0.0
    %v2050 = vadd.f32 %v1874, %v2049
    %2051 = vadd.xlane.f32.xlu0 %v2050
    %v2052 = vpop.xlane.xlu0 %2051
    %v2053 = vsel %vm463, %v1880, 0.0
    %v2054 = vadd.f32 %v1878, %v2053
    %2055 = vadd.xlane.f32.xlu0 %v2054
    %v2056 = vpop.xlane.xlu0 %2055
    %v2057 = vsel %vm463, %v1884, 0.0
    %v2058 = vadd.f32 %v1882, %v2057
    %2059 = vadd.xlane.f32.xlu0 %v2058
    %v2060 = vpop.xlane.xlu0 %2059
    %v2061 = vsel %vm463, %v1888, 0.0
    %v2062 = vadd.f32 %v1886, %v2061
    %2063 = vadd.xlane.f32.xlu0 %v2062
    %v2064 = vpop.xlane.xlu0 %2063
    %v2065 = vsel %vm463, %v1892, 0.0
    %v2066 = vadd.f32 %v1890, %v2065
    %2067 = vadd.xlane.f32.xlu0 %v2066
    %v2068 = vpop.xlane.xlu0 %2067
    %v2069 = vsel %vm463, %v1896, 0.0
    %v2070 = vadd.f32 %v1894, %v2069
    %2071 = vadd.xlane.f32.xlu0 %v2070
    %v2072 = vpop.xlane.xlu0 %2071
    %v2073 = vsel %vm463, %v1900, 0.0
    %v2074 = vadd.f32 %v1898, %v2073
    %2075 = vadd.xlane.f32.xlu0 %v2074
    %v2076 = vpop.xlane.xlu0 %2075
    %v2077 = vsel %vm463, %v1904, 0.0
    %v2078 = vadd.f32 %v1902, %v2077
    %2079 = vadd.xlane.f32.xlu0 %v2078
    %v2080 = vpop.xlane.xlu0 %2079
    %v2081 = vsel %vm463, %v1908, 0.0
    %v2082 = vadd.f32 %v1906, %v2081
    %2083 = vadd.xlane.f32.xlu0 %v2082
    %v2084 = vpop.xlane.xlu0 %2083
    %v2085 = vsel %vm463, %v1912, 0.0
    %v2086 = vadd.f32 %v1910, %v2085
    %2087 = vadd.xlane.f32.xlu0 %v2086
    %v2088 = vpop.xlane.xlu0 %2087
    %v2089 = vsel %vm463, %v1916, 0.0
    %v2090 = vadd.f32 %v1914, %v2089
    %2091 = vadd.xlane.f32.xlu0 %v2090
    %v2092 = vpop.xlane.xlu0 %2091
    %v2093 = vsel %vm1649, %v1918, 0.0
    %v2094 = vsel %vm1651, %v1920, 0.0
    %v2095 = vadd.f32 %v2093, %v2094
    %2096 = vadd.xlane.f32.xlu0 %v2095
    %v2097 = vpop.xlane.xlu0 %2096
    %v2098 = vsel %vm463, %v1924, 0.0
    %v2099 = vadd.f32 %v1922, %v2098
    %2100 = vadd.xlane.f32.xlu0 %v2099
    %v2101 = vpop.xlane.xlu0 %2100
    %v2102 = vsel %vm463, %v1928, 0.0
    %v2103 = vadd.f32 %v1926, %v2102
    %2104 = vadd.xlane.f32.xlu0 %v2103
    %v2105 = vpop.xlane.xlu0 %2104
    %v2106 = vsel %vm463, %v1932, 0.0
    %v2107 = vadd.f32 %v1930, %v2106
    %2108 = vadd.xlane.f32.xlu0 %v2107
    %v2109 = vpop.xlane.xlu0 %2108
    %v2110 = vsel %vm463, %v1936, 0.0
    %v2111 = vadd.f32 %v1934, %v2110
    %2112 = vadd.xlane.f32.xlu0 %v2111
    %v2113 = vpop.xlane.xlu0 %2112
    %v2114 = vsel %vm463, %v1940, 0.0
    %v2115 = vadd.f32 %v1938, %v2114
    %2116 = vadd.xlane.f32.xlu0 %v2115
    %v2117 = vpop.xlane.xlu0 %2116
    %v2118 = vsel %vm463, %v1944, 0.0
    %v2119 = vadd.f32 %v1942, %v2118
    %2120 = vadd.xlane.f32.xlu0 %v2119
    %v2121 = vpop.xlane.xlu0 %2120
    %v2122 = vsel %vm463, %v1948, 0.0
    %v2123 = vadd.f32 %v1946, %v2122
    %2124 = vadd.xlane.f32.xlu0 %v2123
    %v2125 = vpop.xlane.xlu0 %2124
    %v2126 = vsel %vm463, %v1952, 0.0
    %v2127 = vadd.f32 %v1950, %v2126
    %2128 = vadd.xlane.f32.xlu0 %v2127
    %v2129 = vpop.xlane.xlu0 %2128
    %v2130 = vsel %vm463, %v1956, 0.0
    %v2131 = vadd.f32 %v1954, %v2130
    %2132 = vadd.xlane.f32.xlu0 %v2131
    %v2133 = vpop.xlane.xlu0 %2132
    %v2134 = vsel %vm463, %v1960, 0.0
    %v2135 = vadd.f32 %v1958, %v2134
    %2136 = vadd.xlane.f32.xlu0 %v2135
    %v2137 = vpop.xlane.xlu0 %2136
    %v2138 = vsel %vm463, %v1964, 0.0
    %v2139 = vadd.f32 %v1962, %v2138
    %2140 = vadd.xlane.f32.xlu0 %v2139
    %v2141 = vpop.xlane.xlu0 %2140
    %v2142 = vsel %vm463, %v1968, 0.0
    %v2143 = vadd.f32 %v1966, %v2142
    %2144 = vadd.xlane.f32.xlu0 %v2143
    %v2145 = vpop.xlane.xlu0 %2144
    %v2146 = vsel %vm463, %v1972, 0.0
    %v2147 = vadd.f32 %v1970, %v2146
    %2148 = vadd.xlane.f32.xlu0 %v2147
    %v2149 = vpop.xlane.xlu0 %2148
    %v2150 = vsel %vm463, %v1976, 0.0
    %v2151 = vadd.f32 %v1974, %v2150
    %2152 = vadd.xlane.f32.xlu0 %v2151
    %v2153 = vpop.xlane.xlu0 %2152
    %v2154 = vsel %vm463, %v1980, 0.0
    %v2155 = vadd.f32 %v1978, %v2154
    %2156 = vadd.xlane.f32.xlu0 %v2155
    %v2157 = vpop.xlane.xlu0 %2156
    %v2158 = vsel %vm463, %v1984, 0.0
    %v2159 = vadd.f32 %v1982, %v2158
    %2160 = vadd.xlane.f32.xlu0 %v2159
    %v2161 = vpop.xlane.xlu0 %2160
    %v2162 = vsel %vm463, %v1988, 0.0
    %v2163 = vadd.f32 %v1986, %v2162
    %2164 = vadd.xlane.f32.xlu0 %v2163
    %v2165 = vpop.xlane.xlu0 %2164
    %v2166 = vsel %vm463, %v1992, 0.0
    %v2167 = vadd.f32 %v1990, %v2166
    %2168 = vadd.xlane.f32.xlu0 %v2167
    %v2169 = vpop.xlane.xlu0 %2168
    %v2170 = vsel %vm463, %v1996, 0.0
    %v2171 = vadd.f32 %v1994, %v2170
    %2172 = vadd.xlane.f32.xlu0 %v2171
    %v2173 = vpop.xlane.xlu0 %2172
    %v2174 = vsel %vm463, %v2000, 0.0
    %v2175 = vadd.f32 %v1998, %v2174
    %2176 = vadd.xlane.f32.xlu0 %v2175
    %v2177 = vpop.xlane.xlu0 %2176
    %v2178 = vsel %vm463, %v2004, 0.0
    %v2179 = vadd.f32 %v2002, %v2178
    %2180 = vadd.xlane.f32.xlu0 %v2179
    %v2181 = vpop.xlane.xlu0 %2180
    %v2182 = vsel %vm1649, %v2006, 0.0
    %v2183 = vsel %vm1651, %v2008, 0.0
    %v2184 = vadd.f32 %v2182, %v2183
    %2185 = vadd.xlane.f32.xlu0 %v2184
    %v2186 = vpop.xlane.xlu0 %2185
    %v2187 = vrcp.pop %v2012
    %v2188 = vrcp.pop %v2016
    %v2189 = vrcp.pop %v2020
    %v2190 = vrcp.pop %v2024
    %v2191 = vrcp.pop %v2028
    %v2192 = vrcp.pop %v2032
    %v2193 = vrcp.pop %v2036
    %v2194 = vrcp.pop %v2040
    %v2195 = vrcp.pop %v2044
    %v2196 = vrcp.pop %v2048
    %v2197 = vrcp.pop %v2052
    %v2198 = vrcp.pop %v2056
    %v2199 = vrcp.pop %v2060
    %v2200 = vrcp.pop %v2064
    %v2201 = vrcp.pop %v2068
    %v2202 = vrcp.pop %v2072
    %v2203 = vrcp.pop %v2076
    %v2204 = vrcp.pop %v2080
    %v2205 = vrcp.pop %v2084
    %v2206 = vrcp.pop %v2088
    %v2207 = vrcp.pop %v2092
    %v2208 = vrcp.pop %v2097
    %v2209 = vrcp.pop %v2101
    %v2210 = vrcp.pop %v2105
    %v2211 = vrcp.pop %v2109
    %v2212 = vrcp.pop %v2113
    %v2213 = vrcp.pop %v2117
    %v2214 = vrcp.pop %v2121
    %v2215 = vrcp.pop %v2125
    %v2216 = vrcp.pop %v2129
    %v2217 = vrcp.pop %v2133
    %v2218 = vrcp.pop %v2137
    %v2219 = vrcp.pop %v2141
    %v2220 = vrcp.pop %v2145
    %v2221 = vrcp.pop %v2149
    %v2222 = vrcp.pop %v2153
    %v2223 = vrcp.pop %v2157
    %v2224 = vrcp.pop %v2161
    %v2225 = vrcp.pop %v2165
    %v2226 = vrcp.pop %v2169
    %v2227 = vrcp.pop %v2173
    %v2228 = vrcp.pop %v2177
    %v2229 = vrcp.pop %v2181
    %v2230 = vrcp.pop %v2186
    %v2231 = vmul.f32 %v1834, %v2187
    %v2232 = vmul.f32 %v1836, %v2187
    %v2233 = vmul.f32 %v1838, %v2188
    %v2234 = vmul.f32 %v1840, %v2188
    %v2235 = vmul.f32 %v1842, %v2189
    %v2236 = vmul.f32 %v1844, %v2189
    %v2237 = vmul.f32 %v1846, %v2190
    %v2238 = vmul.f32 %v1848, %v2190
    %v2239 = vmul.f32 %v1850, %v2191
    %v2240 = vmul.f32 %v1852, %v2191
    %v2241 = vmul.f32 %v1854, %v2192
    %v2242 = vmul.f32 %v1856, %v2192
    %v2243 = vmul.f32 %v1858, %v2193
    %v2244 = vmul.f32 %v1860, %v2193
    %v2245 = vmul.f32 %v1862, %v2194
    %v2246 = vmul.f32 %v1864, %v2194
    %v2247 = vmul.f32 %v1866, %v2195
    %v2248 = vmul.f32 %v1868, %v2195
    %v2249 = vmul.f32 %v1870, %v2196
    %v2250 = vmul.f32 %v1872, %v2196
    %v2251 = vmul.f32 %v1874, %v2197
    %v2252 = vmul.f32 %v1876, %v2197
    %v2253 = vmul.f32 %v1878, %v2198
    %v2254 = vmul.f32 %v1880, %v2198
    %v2255 = vmul.f32 %v1882, %v2199
    %v2256 = vmul.f32 %v1884, %v2199
    %v2257 = vmul.f32 %v1886, %v2200
    %v2258 = vmul.f32 %v1888, %v2200
    %v2259 = vmul.f32 %v1890, %v2201
    %v2260 = vmul.f32 %v1892, %v2201
    %v2261 = vmul.f32 %v1894, %v2202
    %v2262 = vmul.f32 %v1896, %v2202
    %v2263 = vmul.f32 %v1898, %v2203
    %v2264 = vmul.f32 %v1900, %v2203
    %v2265 = vmul.f32 %v1902, %v2204
    %v2266 = vmul.f32 %v1904, %v2204
    %v2267 = vmul.f32 %v1906, %v2205
    %v2268 = vmul.f32 %v1908, %v2205
    %v2269 = vmul.f32 %v1910, %v2206
    %v2270 = vmul.f32 %v1912, %v2206
    %v2271 = vmul.f32 %v1914, %v2207
    %v2272 = vmul.f32 %v1916, %v2207
    %v2273 = vmul.f32 %v1918, %v2208
    %v2274 = vmul.f32 %v1920, %v2208
    %v2275 = vmul.f32 %v1922, %v2209
    %v2276 = vmul.f32 %v1924, %v2209
    %v2277 = vmul.f32 %v1926, %v2210
    %v2278 = vmul.f32 %v1928, %v2210
    %v2279 = vmul.f32 %v1930, %v2211
    %v2280 = vmul.f32 %v1932, %v2211
    %v2281 = vmul.f32 %v1934, %v2212
    %v2282 = vmul.f32 %v1936, %v2212
    %v2283 = vmul.f32 %v1938, %v2213
    %v2284 = vmul.f32 %v1940, %v2213
    %v2285 = vmul.f32 %v1942, %v2214
    %v2286 = vmul.f32 %v1944, %v2214
    %v2287 = vmul.f32 %v1946, %v2215
    %v2288 = vmul.f32 %v1948, %v2215
    %v2289 = vmul.f32 %v1950, %v2216
    %v2290 = vmul.f32 %v1952, %v2216
    %v2291 = vmul.f32 %v1954, %v2217
    %v2292 = vmul.f32 %v1956, %v2217
    %v2293 = vmul.f32 %v1958, %v2218
    %v2294 = vmul.f32 %v1960, %v2218
    %v2295 = vmul.f32 %v1962, %v2219
    %v2296 = vmul.f32 %v1964, %v2219
    %v2297 = vmul.f32 %v1966, %v2220
    %v2298 = vmul.f32 %v1968, %v2220
    %v2299 = vmul.f32 %v1970, %v2221
    %v2300 = vmul.f32 %v1972, %v2221
    %v2301 = vmul.f32 %v1974, %v2222
    %v2302 = vmul.f32 %v1976, %v2222
    %v2303 = vmul.f32 %v1978, %v2223
    %v2304 = vmul.f32 %v1980, %v2223
    %v2305 = vmul.f32 %v1982, %v2224
    %v2306 = vmul.f32 %v1984, %v2224
    %v2307 = vmul.f32 %v1986, %v2225
    %v2308 = vmul.f32 %v1988, %v2225
    %v2309 = vmul.f32 %v1990, %v2226
    %v2310 = vmul.f32 %v1992, %v2226
    %v2311 = vmul.f32 %v1994, %v2227
    %v2312 = vmul.f32 %v1996, %v2227
    %v2313 = vmul.f32 %v1998, %v2228
    %v2314 = vmul.f32 %v2000, %v2228
    %v2315 = vmul.f32 %v2002, %v2229
    %v2316 = vmul.f32 %v2004, %v2229
    %v2317 = vmul.f32 %v2006, %v2230
    %v2318 = vmul.f32 %v2008, %v2230
    %v2319 = vpack.c.bf16 %v2233, %v2231
    %v2320 = vpack.c.bf16 %v2234, %v2232
    %v2321 = vpack.c.bf16 %v2237, %v2235
    %v2322 = vpack.c.bf16 %v2238, %v2236
    %v2323 = vpack.c.bf16 %v2241, %v2239
    %v2324 = vpack.c.bf16 %v2242, %v2240
    %v2325 = vpack.c.bf16 %v2245, %v2243
    %v2326 = vpack.c.bf16 %v2246, %v2244
    %v2327 = vpack.c.bf16 %v2249, %v2247
    %v2328 = vpack.c.bf16 %v2250, %v2248
    %v2329 = vpack.c.bf16 %v2253, %v2251
    %v2330 = vpack.c.bf16 %v2254, %v2252
    %v2331 = vpack.c.bf16 %v2257, %v2255
    %v2332 = vpack.c.bf16 %v2258, %v2256
    %v2333 = vpack.c.bf16 %v2261, %v2259
    %v2334 = vpack.c.bf16 %v2262, %v2260
    %v2335 = vpack.c.bf16 %v2265, %v2263
    %v2336 = vpack.c.bf16 %v2266, %v2264
    %v2337 = vpack.c.bf16 %v2269, %v2267
    %v2338 = vpack.c.bf16 %v2270, %v2268
    %v2339 = vpack.c.bf16 %v2273, %v2271
    %v2340 = vpack.c.bf16 %v2274, %v2272
    %v2341 = vpack.c.bf16 %v2277, %v2275
    %v2342 = vpack.c.bf16 %v2278, %v2276
    %v2343 = vpack.c.bf16 %v2281, %v2279
    %v2344 = vpack.c.bf16 %v2282, %v2280
    %v2345 = vpack.c.bf16 %v2285, %v2283
    %v2346 = vpack.c.bf16 %v2286, %v2284
    %v2347 = vpack.c.bf16 %v2289, %v2287
    %v2348 = vpack.c.bf16 %v2290, %v2288
    %v2349 = vpack.c.bf16 %v2293, %v2291
    %v2350 = vpack.c.bf16 %v2294, %v2292
    %v2351 = vpack.c.bf16 %v2297, %v2295
    %v2352 = vpack.c.bf16 %v2298, %v2296
    %v2353 = vpack.c.bf16 %v2301, %v2299
    %v2354 = vpack.c.bf16 %v2302, %v2300
    %v2355 = vpack.c.bf16 %v2305, %v2303
    %v2356 = vpack.c.bf16 %v2306, %v2304
    %v2357 = vpack.c.bf16 %v2309, %v2307
    %v2358 = vpack.c.bf16 %v2310, %v2308
    %v2359 = vpack.c.bf16 %v2313, %v2311
    %v2360 = vpack.c.bf16 %v2314, %v2312
    %v2361 = vpack.c.bf16 %v2317, %v2315
    %v2362 = vpack.c.bf16 %v2318, %v2316
    %v2363 = vpack.c.b16 %v634, %v634
    %v2364 = vpack.c.b16 %v635, %v635
    %v2367 = vsel %vm463, %v2364, 0
    %v2370 = vand.u32 %v2339, %v470
    %v2373 = vand.u32 %v2340, %v470
    %2375 = vmatprep.subr.bf16.mxu0 %v2320
    %2376 = vmatpush1.bf16.msra.mxu0 %v2319
    %2377 = vmatprep.subr.bf16.mxu0 %v2322
    %2378 = vmatpush1.bf16.msra.mxu0 %v2321
    %2379 = vmatprep.subr.bf16.mxu0 %v2324
    %2380 = vmatpush1.bf16.msra.mxu0 %v2323
    %2381 = vmatprep.subr.bf16.mxu0 %v2326
    %2382 = vmatpush1.bf16.msra.mxu0 %v2325
    %2383 = vmatprep.subr.bf16.mxu0 %v2328
    %2384 = vmatpush1.bf16.msra.mxu0 %v2327
    %2385 = vmatprep.subr.bf16.mxu0 %v2330
    %2386 = vmatpush1.bf16.msra.mxu0 %v2329
    %2387 = vmatprep.subr.bf16.mxu0 %v2332
    %2388 = vmatpush1.bf16.msra.mxu0 %v2331
    %2389 = vmatprep.subr.bf16.mxu0 %v2334
    %2390 = vmatpush1.bf16.msra.mxu0 %v2333
    %2391 = vmatprep.subr.bf16.mxu0 %v2336
    %2392 = vmatpush1.bf16.msra.mxu0 %v2335
    %2393 = vmatprep.subr.bf16.mxu0 %v2338
    %2394 = vmatpush1.bf16.msra.mxu0 %v2337
    %2395 = vmatprep.subr.bf16.mxu0 %v2373
    %2396 = vmatpush1.bf16.msra.mxu0 %v2370
    %2397 = vmatprep.subr.bf16.mxu0 0
    %2398 = vmatpush1.bf16.msra.mxu0 0
    %2399 = vmatprep.subr.bf16.mxu0 0
    %2400 = vmatpush1.bf16.msra.mxu0 0
    %2401 = vmatprep.subr.bf16.mxu0 0
    %2402 = vmatpush1.bf16.msra.mxu0 0
    %2403 = vmatprep.subr.bf16.mxu0 0
    %2404 = vmatpush1.bf16.msra.mxu0 0
    %2405 = vmatprep.subr.bf16.mxu0 0
    %2406 = vmatpush1.bf16.msra.mxu0 0
    %2407 = vmatprep.mubr.bf16.mxu0 %v2367
    %2408 = vmatmul.mubr.bf16.gmra.mrb[0].mxu0 %v2363
    %v2409 = vpop.f32.mrb[0].mxu0
    %v2410 = vadd.f32 0.0, %v2409
    %v2411 = vpop.f32.mrb[0].mxu0
    %v2412 = vadd.f32 0.0, %v2411
    %v2413 = vpop.f32.mrb[0].mxu0
    %v2414 = vpop.f32.mrb[0].mxu0
    %2415 = vdwg.mxu0
    %v2416 = vpack.c.b16 %v640, %v640
    %v2417 = vpack.c.b16 %v641, %v641
    %v2420 = vsel %vm463, %v2417, 0
    %v2423 = vand.u32 %v2361, %v470
    %v2426 = vand.u32 %v2362, %v470
    %2428 = vmatprep.subr.bf16.mxu0 %v2342
    %2429 = vmatpush1.bf16.msra.mxu0 %v2341
    %2430 = vmatprep.subr.bf16.mxu0 %v2344
    %2431 = vmatpush1.bf16.msra.mxu0 %v2343
    %2432 = vmatprep.subr.bf16.mxu0 %v2346
    %2433 = vmatpush1.bf16.msra.mxu0 %v2345
    %2434 = vmatprep.subr.bf16.mxu0 %v2348
    %2435 = vmatpush1.bf16.msra.mxu0 %v2347
    %2436 = vmatprep.subr.bf16.mxu0 %v2350
    %2437 = vmatpush1.bf16.msra.mxu0 %v2349
    %2438 = vmatprep.subr.bf16.mxu0 %v2352
    %2439 = vmatpush1.bf16.msra.mxu0 %v2351
    %2440 = vmatprep.subr.bf16.mxu0 %v2354
    %2441 = vmatpush1.bf16.msra.mxu0 %v2353
    %2442 = vmatprep.subr.bf16.mxu0 %v2356
    %2443 = vmatpush1.bf16.msra.mxu0 %v2355
    %2444 = vmatprep.subr.bf16.mxu0 %v2358
    %2445 = vmatpush1.bf16.msra.mxu0 %v2357
    %2446 = vmatprep.subr.bf16.mxu0 %v2360
    %2447 = vmatpush1.bf16.msra.mxu0 %v2359
    %2448 = vmatprep.subr.bf16.mxu0 %v2426
    %2449 = vmatpush1.bf16.msra.mxu0 %v2423
    %2450 = vmatprep.subr.bf16.mxu0 0
    %2451 = vmatpush1.bf16.msra.mxu0 0
    %2452 = vmatprep.subr.bf16.mxu0 0
    %2453 = vmatpush1.bf16.msra.mxu0 0
    %2454 = vmatprep.subr.bf16.mxu0 0
    %2455 = vmatpush1.bf16.msra.mxu0 0
    %2456 = vmatprep.subr.bf16.mxu0 0
    %2457 = vmatpush1.bf16.msra.mxu0 0
    %2458 = vmatprep.subr.bf16.mxu0 0
    %2459 = vmatpush1.bf16.msra.mxu0 0
    %2460 = vmatprep.mubr.bf16.mxu0 %v2420
    %2461 = vmatmul.mubr.bf16.gmra.mrb[0].mxu0 %v2416
    %v2462 = vpop.f32.mrb[0].mxu0
    %v2463 = vadd.f32 0.0, %v2462
    %v2464 = vpop.f32.mrb[0].mxu0
    %v2465 = vadd.f32 0.0, %v2464
    %v2466 = vpop.f32.mrb[0].mxu0
    %v2467 = vpop.f32.mrb[0].mxu0
    %2468 = vdwg.mxu0
    %v2469 = vadd.f32 %v2410, %v67
    %v2470 = vadd.f32 %v2412, %v68
    %v2471 = vadd.f32 %v2463, %v69
    %v2472 = vadd.f32 %v2465, %v70
    %v2473 = vsel %vm463, %v2470, 0.0
    %v2474 = vadd.f32 %v2469, %v2473
    %2475 = vadd.xlane.f32.xlu0 %v2474
    %v2476 = vpop.xlane.xlu0 %2475
    %v2477 = vsel %vm463, %v2472, 0.0
    %v2478 = vadd.f32 %v2471, %v2477
    %2479 = vadd.xlane.f32.xlu0 %v2478
    %v2480 = vpop.xlane.xlu0 %2479
    %v2481 = vrcp.pop 169.0
    %v2482 = vmul.f32 %v2476, %v2481
    %v2483 = vmul.f32 %v2480, %v2481
    %v2484 = vsub.f32 %v2469, %v2482
    %v2485 = vsub.f32 %v2470, %v2482
    %v2486 = vsub.f32 %v2471, %v2483
    %v2487 = vsub.f32 %v2472, %v2483
    %v2488 = vmul.f32 %v2484, %v2484
    %v2489 = vmul.f32 %v2485, %v2485
    %v2490 = vmul.f32 %v2486, %v2486
    %v2491 = vmul.f32 %v2487, %v2487
    %v2492 = vsel %vm463, %v2489, 0.0
    %v2493 = vadd.f32 %v2488, %v2492
    %2494 = vadd.xlane.f32.xlu0 %v2493
    %v2495 = vpop.xlane.xlu0 %2494
    %v2496 = vsel %vm463, %v2491, 0.0
    %v2497 = vadd.f32 %v2490, %v2496
    %2498 = vadd.xlane.f32.xlu0 %v2497
    %v2499 = vpop.xlane.xlu0 %2498
    %v2500 = vmul.f32 %v2495, %v2481
    %v2501 = vmul.f32 %v2499, %v2481
    %v2502 = vadd.f32 %v2500, 1e-05
    %v2503 = vadd.f32 %v2501, 1e-05
    %v2504 = vrsqrt.pop %v2502
    %v2505 = vrsqrt.pop %v2503
    %v2506 = vmul.f32 %v2484, %v2504
    %v2507 = vmul.f32 %v2485, %v2504
    %v2508 = vmul.f32 %v2486, %v2505
    %v2509 = vmul.f32 %v2487, %v2505
    %v2511 = vlaneseq
    %v2512 = vshrl.u32 %v2511, 7
    %v2513 = vsub.s32 0, %v2512
    %v2514 = vrot.slane %v65, %v2513
    %v2515 = vlaneseq
    %v2516 = vshrl.u32 %v2515, 7
    %v2517 = vsub.s32 1, %v2516
    %v2518 = vrot.slane %v65, %v2517
    %v2521 = vmul.f32 %v2506, %v2514
    %v2522 = vmul.f32 %v2507, %v2518
    %v2523 = vmul.f32 %v2508, %v2514
    %v2524 = vmul.f32 %v2509, %v2518
    %v2526 = vlaneseq
    %v2527 = vshrl.u32 %v2526, 7
    %v2528 = vsub.s32 0, %v2527
    %v2529 = vrot.slane %v66, %v2528
    %v2530 = vlaneseq
    %v2531 = vshrl.u32 %v2530, 7
    %v2532 = vsub.s32 1, %v2531
    %v2533 = vrot.slane %v66, %v2532
    %v2536 = vadd.f32 %v2521, %v2529
    %v2537 = vadd.f32 %v2522, %v2533
    %v2538 = vadd.f32 %v2523, %v2529
    %v2539 = vadd.f32 %v2524, %v2533
    %v2540 = vpack.c.bf16 %v2538, %v2536
    %v2541 = vpack.c.bf16 %v2539, %v2537
    %v2542 = vld [vmem:[#allocation5] sm:$0xff]
    %v2543 = vld [vmem:[#allocation5 + $0x8] sm:$0xf]
    %v2544 = vld [vmem:[#allocation5 + $0xc] sm:$0xff]
    %v2545 = vld [vmem:[#allocation5 + $0x14] sm:$0xf]
    %v2546 = vld [vmem:[#allocation5 + $0x18] sm:$0xff]
    %v2547 = vld [vmem:[#allocation5 + $0x20] sm:$0xf]
    %v2548 = vld [vmem:[#allocation5 + $0x24] sm:$0xff]
    %v2549 = vld [vmem:[#allocation5 + $0x2c] sm:$0xf]
    %v2550 = vld [vmem:[#allocation5 + $0x30] sm:$0xff]
    %v2551 = vld [vmem:[#allocation5 + $0x38] sm:$0xf]
    %v2552 = vld [vmem:[#allocation5 + $0x3c] sm:$0xff]
    %v2553 = vld [vmem:[#allocation5 + $0x44] sm:$0xf]
    %v2554 = vld [vmem:[#allocation5 + $0x48] sm:$0xff]
    %v2555 = vld [vmem:[#allocation5 + $0x50] sm:$0xf]
    %v2556 = vld [vmem:[#allocation5 + $0x54] sm:$0xff]
    %v2557 = vld [vmem:[#allocation5 + $0x5c] sm:$0xf]
    %v2558 = vld [vmem:[#allocation5 + $0x60] sm:$0xff]
    %v2559 = vld [vmem:[#allocation5 + $0x68] sm:$0xf]
    %v2560 = vld [vmem:[#allocation5 + $0x6c] sm:$0xff]
    %v2561 = vld [vmem:[#allocation5 + $0x74] sm:$0xf]
    %v2562 = vld [vmem:[#allocation5 + $0x78] sm:$0xff]
    %v2563 = vld [vmem:[#allocation5 + $0x80] sm:$0xf]
    %v2564 = vld [vmem:[#allocation5 + $0x84] sm:$0xff]
    %v2565 = vld [vmem:[#allocation5 + $0x8c] sm:$0xf]
    %v2566 = vld [vmem:[#allocation5 + $0x90] sm:$0xff]
    %v2567 = vld [vmem:[#allocation5 + $0x98] sm:$0xf]
    %v2568 = vld [vmem:[#allocation5 + $0x9c] sm:$0xff]
    %v2569 = vld [vmem:[#allocation5 + $0xa4] sm:$0xf]
    %v2570 = vld [vmem:[#allocation5 + $0xa8] sm:$0xff]
    %v2571 = vld [vmem:[#allocation5 + $0xb0] sm:$0xf]
    %v2572 = vld [vmem:[#allocation5 + $0xb4] sm:$0xff]
    %v2573 = vld [vmem:[#allocation5 + $0xbc] sm:$0xf]
    %v2574 = vld [vmem:[#allocation5 + $0xc0] sm:$0xff]
    %v2575 = vld [vmem:[#allocation5 + $0xc8] sm:$0xf]
    %v2576 = vld [vmem:[#allocation5 + $0xcc] sm:$0xff]
    %v2577 = vld [vmem:[#allocation5 + $0xd4] sm:$0xf]
    %v2578 = vld [vmem:[#allocation5 + $0xd8] sm:$0xff]
    %v2579 = vld [vmem:[#allocation5 + $0xe0] sm:$0xf]
    %v2580 = vld [vmem:[#allocation5 + $0xe4] sm:$0xff]
    %v2581 = vld [vmem:[#allocation5 + $0xec] sm:$0xf]
    %v2582 = vld [vmem:[#allocation5 + $0xf0] sm:$0xff]
    %v2583 = vld [vmem:[#allocation5 + $0xf8] sm:$0xf]
    %v2584 = vld [vmem:[#allocation5 + $0xfc] sm:$0x11]
    %v2585 = vld [vmem:[#allocation5 + $0x104] sm:$0x1]
    %v2586 = vld [vmem:[%s3] sm:$0x7]
    %v2588 = vlaneseq
    %v2589 = vshrl.u32 %v2588, 7
    %v2590 = vsub.s32 0, %v2589
    %v2591 = vrot.slane %v2586, %v2590
    %v2592 = vlaneseq
    %v2593 = vshrl.u32 %v2592, 7
    %v2594 = vsub.s32 1, %v2593
    %v2595 = vrot.slane %v2586, %v2594
    %v2596 = vlaneseq
    %v2597 = vshrl.u32 %v2596, 7
    %v2598 = vsub.s32 2, %v2597
    %v2599 = vrot.slane %v2586, %v2598
    %v2647 = vunpack.c.l.b16 %v2542
    %v2648 = vunpack.c.h.b16 %v2542
    %v2649 = vunpack.c.l.b16 %v2543
    %v2650 = vunpack.c.l.b16 %v2544
    %v2651 = vunpack.c.h.b16 %v2544
    %v2652 = vunpack.c.l.b16 %v2545
    %v2653 = vunpack.c.l.b16 %v2546
    %v2654 = vunpack.c.h.b16 %v2546
    %v2655 = vunpack.c.l.b16 %v2547
    %v2656 = vunpack.c.l.b16 %v2548
    %v2657 = vunpack.c.h.b16 %v2548
    %v2658 = vunpack.c.l.b16 %v2549
    %v2659 = vunpack.c.l.b16 %v2550
    %v2660 = vunpack.c.h.b16 %v2550
    %v2661 = vunpack.c.l.b16 %v2551
    %v2662 = vunpack.c.l.b16 %v2552
    %v2663 = vunpack.c.h.b16 %v2552
    %v2664 = vunpack.c.l.b16 %v2553
    %v2665 = vunpack.c.l.b16 %v2554
    %v2666 = vunpack.c.h.b16 %v2554
    %v2667 = vunpack.c.l.b16 %v2555
    %v2668 = vunpack.c.l.b16 %v2556
    %v2669 = vunpack.c.h.b16 %v2556
    %v2670 = vunpack.c.l.b16 %v2557
    %v2671 = vunpack.c.l.b16 %v2558
    %v2672 = vunpack.c.h.b16 %v2558
    %v2673 = vunpack.c.l.b16 %v2559
    %v2674 = vunpack.c.l.b16 %v2560
    %v2675 = vunpack.c.h.b16 %v2560
    %v2676 = vunpack.c.l.b16 %v2561
    %v2677 = vunpack.c.l.b16 %v2562
    %v2678 = vunpack.c.h.b16 %v2562
    %v2679 = vunpack.c.l.b16 %v2563
    %v2680 = vunpack.c.l.b16 %v2564
    %v2681 = vunpack.c.h.b16 %v2564
    %v2682 = vunpack.c.l.b16 %v2565
    %v2683 = vunpack.c.l.b16 %v2566
    %v2684 = vunpack.c.h.b16 %v2566
    %v2685 = vunpack.c.l.b16 %v2567
    %v2686 = vunpack.c.l.b16 %v2568
    %v2687 = vunpack.c.h.b16 %v2568
    %v2688 = vunpack.c.l.b16 %v2569
    %v2689 = vunpack.c.l.b16 %v2570
    %v2690 = vunpack.c.h.b16 %v2570
    %v2691 = vunpack.c.l.b16 %v2571
    %v2692 = vunpack.c.l.b16 %v2572
    %v2693 = vunpack.c.h.b16 %v2572
    %v2694 = vunpack.c.l.b16 %v2573
    %v2695 = vunpack.c.l.b16 %v2574
    %v2696 = vunpack.c.h.b16 %v2574
    %v2697 = vunpack.c.l.b16 %v2575
    %v2698 = vunpack.c.l.b16 %v2576
    %v2699 = vunpack.c.h.b16 %v2576
    %v2700 = vunpack.c.l.b16 %v2577
    %v2701 = vunpack.c.l.b16 %v2578
    %v2702 = vunpack.c.h.b16 %v2578
    %v2703 = vunpack.c.l.b16 %v2579
    %v2704 = vunpack.c.l.b16 %v2580
    %v2705 = vunpack.c.h.b16 %v2580
    %v2706 = vunpack.c.l.b16 %v2581
    %v2707 = vunpack.c.l.b16 %v2582
    %v2708 = vunpack.c.h.b16 %v2582
    %v2709 = vunpack.c.l.b16 %v2583
    %v2710 = vunpack.c.l.b16 %v2584
    %v2711 = vunpack.c.h.b16 %v2584
    %v2712 = vunpack.c.l.b16 %v2585
    %v2713 = vpack.c.b16 %v2650, %v2647
    %v2714 = vpack.c.b16 %v2651, %v2648
    %v2715 = vpack.c.b16 %v2652, %v2649
    %v2716 = vpack.c.b16 %v2656, %v2653
    %v2717 = vpack.c.b16 %v2657, %v2654
    %v2718 = vpack.c.b16 %v2658, %v2655
    %v2719 = vpack.c.b16 %v2662, %v2659
    %v2720 = vpack.c.b16 %v2663, %v2660
    %v2721 = vpack.c.b16 %v2664, %v2661
    %v2722 = vpack.c.b16 %v2668, %v2665
    %v2723 = vpack.c.b16 %v2669, %v2666
    %v2724 = vpack.c.b16 %v2670, %v2667
    %v2725 = vpack.c.b16 %v2674, %v2671
    %v2726 = vpack.c.b16 %v2675, %v2672
    %v2727 = vpack.c.b16 %v2676, %v2673
    %v2728 = vpack.c.b16 %v2680, %v2677
    %v2729 = vpack.c.b16 %v2681, %v2678
    %v2730 = vpack.c.b16 %v2682, %v2679
    %v2731 = vpack.c.b16 %v2686, %v2683
    %v2732 = vpack.c.b16 %v2687, %v2684
    %v2733 = vpack.c.b16 %v2688, %v2685
    %v2734 = vpack.c.b16 %v2692, %v2689
    %v2735 = vpack.c.b16 %v2693, %v2690
    %v2736 = vpack.c.b16 %v2694, %v2691
    %v2737 = vpack.c.b16 %v2698, %v2695
    %v2738 = vpack.c.b16 %v2699, %v2696
    %v2739 = vpack.c.b16 %v2700, %v2697
    %v2740 = vpack.c.b16 %v2704, %v2701
    %v2741 = vpack.c.b16 %v2705, %v2702
    %v2742 = vpack.c.b16 %v2706, %v2703
    %v2743 = vpack.c.b16 %v2710, %v2707
    %v2744 = vpack.c.b16 %v2711, %v2708
    %v2745 = vpack.c.b16 %v2712, %v2709
    %v2777 = vsel %vm463, %v2541, 0
    %v2780 = vand.u32 %v2743, %v470
    %v2783 = vand.u32 %v2744, %v470
    %v2786 = vand.u32 %v2745, %v470
    %2788 = vmatprep.subr.bf16.mxu0 %v2714
    %2789 = vmatpush1.bf16.msra.mxu0 %v2713
    %2790 = vmatprep.subr.bf16.mxu0 %v2717
    %2791 = vmatpush1.bf16.msra.mxu0 %v2716
    %2792 = vmatprep.subr.bf16.mxu0 %v2720
    %2793 = vmatpush1.bf16.msra.mxu0 %v2719
    %2794 = vmatprep.subr.bf16.mxu0 %v2723
    %2795 = vmatpush1.bf16.msra.mxu0 %v2722
    %2796 = vmatprep.subr.bf16.mxu0 %v2726
    %2797 = vmatpush1.bf16.msra.mxu0 %v2725
    %2798 = vmatprep.subr.bf16.mxu0 %v2729
    %2799 = vmatpush1.bf16.msra.mxu0 %v2728
    %2800 = vmatprep.subr.bf16.mxu0 %v2732
    %2801 = vmatpush1.bf16.msra.mxu0 %v2731
    %2802 = vmatprep.subr.bf16.mxu0 %v2735
    %2803 = vmatpush1.bf16.msra.mxu0 %v2734
    %2804 = vmatprep.subr.bf16.mxu0 %v2738
    %2805 = vmatpush1.bf16.msra.mxu0 %v2737
    %2806 = vmatprep.subr.bf16.mxu0 %v2741
    %2807 = vmatpush1.bf16.msra.mxu0 %v2740
    %2808 = vmatprep.subr.bf16.mxu0 %v2783
    %2809 = vmatpush1.bf16.msra.mxu0 %v2780
    %2810 = vmatprep.subr.bf16.mxu0 0
    %2811 = vmatpush1.bf16.msra.mxu0 0
    %2812 = vmatprep.subr.bf16.mxu0 0
    %2813 = vmatpush1.bf16.msra.mxu0 0
    %2814 = vmatprep.subr.bf16.mxu0 0
    %2815 = vmatpush1.bf16.msra.mxu0 0
    %2816 = vmatprep.subr.bf16.mxu0 0
    %2817 = vmatpush1.bf16.msra.mxu0 0
    %2818 = vmatprep.subr.bf16.mxu0 0
    %2819 = vmatpush1.bf16.msra.mxu0 0
    %2820 = vmatprep.mubr.bf16.mxu0 %v2777
    %2821 = vmatmul.mubr.bf16.gmra.mrb[0].mxu0 %v2540
    %v2822 = vpop.f32.mrb[0].mxu0
    %v2823 = vadd.f32 %v2591, %v2822
    %v2824 = vpop.f32.mrb[0].mxu0
    %v2825 = vadd.f32 %v2595, %v2824
    %v2826 = vpop.f32.mrb[0].mxu0
    %v2827 = vadd.f32 %v2591, %v2826
    %v2828 = vpop.f32.mrb[0].mxu0
    %v2829 = vadd.f32 %v2595, %v2828
    %2830 = vdwg.mxu0
    %2831 = vmatprep.subr.bf16.mxu0 0
    %2832 = vmatpush1.bf16.msra.mxu0 %v2715
    %2833 = vmatprep.subr.bf16.mxu0 0
    %2834 = vmatpush1.bf16.msra.mxu0 %v2718
    %2835 = vmatprep.subr.bf16.mxu0 0
    %2836 = vmatpush1.bf16.msra.mxu0 %v2721
    %2837 = vmatprep.subr.bf16.mxu0 0
    %2838 = vmatpush1.bf16.msra.mxu0 %v2724
    %2839 = vmatprep.subr.bf16.mxu0 0
    %2840 = vmatpush1.bf16.msra.mxu0 %v2727
    %2841 = vmatprep.subr.bf16.mxu0 0
    %2842 = vmatpush1.bf16.msra.mxu0 %v2730
    %2843 = vmatprep.subr.bf16.mxu0 0
    %2844 = vmatpush1.bf16.msra.mxu0 %v2733
    %2845 = vmatprep.subr.bf16.mxu0 0
    %2846 = vmatpush1.bf16.msra.mxu0 %v2736
    %2847 = vmatprep.subr.bf16.mxu0 0
    %2848 = vmatpush1.bf16.msra.mxu0 %v2739
    %2849 = vmatprep.subr.bf16.mxu0 0
    %2850 = vmatpush1.bf16.msra.mxu0 %v2742
    %2851 = vmatprep.subr.bf16.mxu0 0
    %2852 = vmatpush1.bf16.msra.mxu0 %v2786
    %2853 = vmatprep.subr.bf16.mxu0 0
    %2854 = vmatpush1.bf16.msra.mxu0 0
    %2855 = vmatprep.subr.bf16.mxu0 0
    %2856 = vmatpush1.bf16.msra.mxu0 0
    %2857 = vmatprep.subr.bf16.mxu0 0
    %2858 = vmatpush1.bf16.msra.mxu0 0
    %2859 = vmatprep.subr.bf16.mxu0 0
    %2860 = vmatpush1.bf16.msra.mxu0 0
    %2861 = vmatprep.subr.bf16.mxu0 0
    %2862 = vmatpush1.bf16.msra.mxu0 0
    %2863 = vmatprep.mubr.bf16.mxu0 %v2777
    %2864 = vmatmul.mubr.bf16.gmra.mrb[0].mxu0 %v2540
    %v2865 = vpop.f32.mrb[0].mxu0
    %v2866 = vadd.f32 %v2599, %v2865
    %v2867 = vpop.f32.mrb[0].mxu0
    %v2868 = vpop.f32.mrb[0].mxu0
    %v2869 = vadd.f32 %v2599, %v2868
    %v2870 = vpop.f32.mrb[0].mxu0
    %2871 = vdwg.mxu0
    %v2872 = vmul.f32 %v2823, 0.5
    %v2873 = vmul.f32 %v2825, 0.5
    %v2874 = vmul.f32 %v2866, 0.5
    %v2875 = vmul.f32 %v2827, 0.5
    %v2876 = vmul.f32 %v2829, 0.5
    %v2877 = vmul.f32 %v2869, 0.5
    %v2878 = vmul.f32 %v2823, 0.70710677
    %v2879 = vmul.f32 %v2825, 0.70710677
    %v2880 = vmul.f32 %v2866, 0.70710677
    %v2881 = vmul.f32 %v2827, 0.70710677
    %v2882 = vmul.f32 %v2829, 0.70710677
    %v2883 = vmul.f32 %v2869, 0.70710677
    %v2884 = verf.f32.pop %v2878
    %v2885 = verf.f32.pop %v2879
    %v2886 = verf.f32.pop %v2880
    %v2887 = verf.f32.pop %v2881
    %v2888 = verf.f32.pop %v2882
    %v2889 = verf.f32.pop %v2883
    %v2890 = vadd.f32 %v2884, 1.0
    %v2891 = vadd.f32 %v2885, 1.0
    %v2892 = vadd.f32 %v2886, 1.0
    %v2893 = vadd.f32 %v2887, 1.0
    %v2894 = vadd.f32 %v2888, 1.0
    %v2895 = vadd.f32 %v2889, 1.0
    %v2896 = vmul.f32 %v2872, %v2890
    %v2897 = vmul.f32 %v2873, %v2891
    %v2898 = vmul.f32 %v2874, %v2892
    %v2899 = vmul.f32 %v2875, %v2893
    %v2900 = vmul.f32 %v2876, %v2894
    %v2901 = vmul.f32 %v2877, %v2895
    %v2902 = vpack.c.bf16 %v2899, %v2896
    %v2903 = vpack.c.bf16 %v2900, %v2897
    %v2904 = vpack.c.bf16 %v2901, %v2898
    %v2905 = vld [vmem:[%s4] sm:$0xff]
    %v2906 = vld [vmem:[%s4 + $0x8] sm:$0xff]
    %v2907 = vld [vmem:[%s4 + $0x10] sm:$0xff]
    %v2908 = vld [vmem:[%s4 + $0x18] sm:$0xff]
    %v2909 = vld [vmem:[%s4 + $0x20] sm:$0xff]
    %v2910 = vld [vmem:[%s4 + $0x28] sm:$0xff]
    %v2911 = vld [vmem:[%s4 + $0x30] sm:$0xff]
    %v2912 = vld [vmem:[%s4 + $0x38] sm:$0xff]
    %v2913 = vld [vmem:[%s4 + $0x40] sm:$0xff]
    %v2914 = vld [vmem:[%s4 + $0x48] sm:$0xff]
    %v2915 = vld [vmem:[%s4 + $0x50] sm:$0xff]
    %v2916 = vld [vmem:[%s4 + $0x58] sm:$0xff]
    %v2917 = vld [vmem:[%s4 + $0x60] sm:$0xff]
    %v2918 = vld [vmem:[%s4 + $0x68] sm:$0xff]
    %v2919 = vld [vmem:[%s4 + $0x70] sm:$0xff]
    %v2920 = vld [vmem:[%s4 + $0x78] sm:$0xff]
    %v2921 = vld [vmem:[%s4 + $0x80] sm:$0xff]
    %v2922 = vld [vmem:[%s4 + $0x88] sm:$0xff]
    %v2923 = vld [vmem:[%s4 + $0x90] sm:$0xff]
    %v2924 = vld [vmem:[%s4 + $0x98] sm:$0xff]
    %v2925 = vld [vmem:[%s4 + $0xa0] sm:$0xff]
    %v2926 = vld [vmem:[%s4 + $0xa8] sm:$0xff]
    %v2927 = vld [vmem:[%s4 + $0xb0] sm:$0xff]
    %v2928 = vld [vmem:[%s4 + $0xb8] sm:$0xff]
    %v2929 = vld [vmem:[%s4 + $0xc0] sm:$0xff]
    %v2930 = vld [vmem:[%s4 + $0xc8] sm:$0xff]
    %v2931 = vld [vmem:[%s4 + $0xd0] sm:$0xff]
    %v2932 = vld [vmem:[%s4 + $0xd8] sm:$0xff]
    %v2933 = vld [vmem:[%s4 + $0xe0] sm:$0xff]
    %v2934 = vld [vmem:[%s4 + $0xe8] sm:$0xff]
    %v2935 = vld [vmem:[%s4 + $0xf0] sm:$0xff]
    %v2936 = vld [vmem:[%s4 + $0xf8] sm:$0xff]
    %v2937 = vld [vmem:[%s4 + $0x100] sm:$0xff]
    %v2938 = vld [vmem:[%s4 + $0x108] sm:$0xff]
    %v2939 = vld [vmem:[%s4 + $0x110] sm:$0xff]
    %v2940 = vld [vmem:[%s4 + $0x118] sm:$0xff]
    %v2941 = vld [vmem:[%s4 + $0x120] sm:$0xff]
    %v2942 = vld [vmem:[%s4 + $0x128] sm:$0xff]
    %v2943 = vld [vmem:[%s4 + $0x130] sm:$0xff]
    %v2944 = vld [vmem:[%s4 + $0x138] sm:$0xff]
    %v2945 = vld [vmem:[%s4 + $0x140] sm:$0xff]
    %v2946 = vld [vmem:[%s4 + $0x148] sm:$0xff]
    %v2947 = vld [vmem:[%s4 + $0x150] sm:$0xff]
    %v2948 = vld [vmem:[%s4 + $0x158] sm:$0xff]
    %v2949 = vld [vmem:[%s4 + $0x160] sm:$0xff]
    %v2950 = vld [vmem:[%s4 + $0x168] sm:$0xff]
    %v2951 = vld [vmem:[%s4 + $0x170] sm:$0xff]
    %v2952 = vld [vmem:[%s4 + $0x178] sm:$0xff]
    %v2953 = vld [vmem:[%s4 + $0x180] sm:$0xff]
    %v2954 = vld [vmem:[%s4 + $0x188] sm:$0xff]
    %v2955 = vld [vmem:[%s4 + $0x190] sm:$0xff]
    %v2956 = vld [vmem:[%s4 + $0x198] sm:$0xff]
    %v2957 = vld [vmem:[%s4 + $0x1a0] sm:$0xff]
    %v2958 = vld [vmem:[%s4 + $0x1a8] sm:$0xff]
    %v2959 = vld [vmem:[%s4 + $0x1b0] sm:$0xff]
    %v2960 = vld [vmem:[%s4 + $0x1b8] sm:$0xff]
    %v2961 = vld [vmem:[%s4 + $0x1c0] sm:$0xff]
    %v2962 = vld [vmem:[%s4 + $0x1c8] sm:$0xff]
    %v2963 = vld [vmem:[%s4 + $0x1d0] sm:$0xff]
    %v2964 = vld [vmem:[%s4 + $0x1d8] sm:$0xff]
    %v2965 = vld [vmem:[%s4 + $0x1e0] sm:$0xff]
    %v2966 = vld [vmem:[%s4 + $0x1e8] sm:$0xff]
    %v2967 = vld [vmem:[%s4 + $0x1f0] sm:$0xff]
    %v2968 = vld [vmem:[%s4 + $0x1f8] sm:$0xff]
    %v2969 = vld [vmem:[%s4 + $0x200] sm:$0xff]
    %v2970 = vld [vmem:[%s4 + $0x208] sm:$0xff]
    %v2971 = vld [vmem:[%s4 + $0x210] sm:$0xff]
    %v2972 = vld [vmem:[%s4 + $0x218] sm:$0xff]
    %v2973 = vld [vmem:[%s4 + $0x220] sm:$0xff]
    %v2974 = vld [vmem:[%s4 + $0x228] sm:$0xff]
    %v2975 = vld [vmem:[%s4 + $0x230] sm:$0xff]
    %v2976 = vld [vmem:[%s4 + $0x238] sm:$0xff]
    %v2977 = vld [vmem:[%s4 + $0x240] sm:$0xff]
    %v2978 = vld [vmem:[%s4 + $0x248] sm:$0xff]
    %v2979 = vld [vmem:[%s4 + $0x250] sm:$0xff]
    %v2980 = vld [vmem:[%s4 + $0x258] sm:$0xff]
    %v2981 = vld [vmem:[%s4 + $0x260] sm:$0xff]
    %v2982 = vld [vmem:[%s4 + $0x268] sm:$0xff]
    %v2983 = vld [vmem:[%s4 + $0x270] sm:$0xff]
    %v2984 = vld [vmem:[%s4 + $0x278] sm:$0xff]
    %v2985 = vld [vmem:[%s4 + $0x280] sm:$0xff]
    %v2986 = vld [vmem:[%s4 + $0x288] sm:$0xff]
    %v2987 = vld [vmem:[%s4 + $0x290] sm:$0xff]
    %v2988 = vld [vmem:[%s4 + $0x298] sm:$0xff]
    %v2989 = vld [vmem:[%s4 + $0x2a0] sm:$0x11]
    %v2990 = vld [vmem:[%s4 + $0x2a8] sm:$0x11]
    %v2991 = vld [vmem:[%s5] sm:$0xf]
    %v2993 = vlaneseq
    %v2994 = vshrl.u32 %v2993, 7
    %v2995 = vsub.s32 0, %v2994
    %v2996 = vrot.slane %v2991, %v2995
    %v2997 = vlaneseq
    %v2998 = vshrl.u32 %v2997, 7
    %v2999 = vsub.s32 1, %v2998
    %v3000 = vrot.slane %v2991, %v2999
    %v3001 = vlaneseq
    %v3002 = vshrl.u32 %v3001, 7
    %v3003 = vsub.s32 2, %v3002
    %v3004 = vrot.slane %v2991, %v3003
    %v3005 = vlaneseq
    %v3006 = vshrl.u32 %v3005, 7
    %v3007 = vsub.s32 3, %v3006
    %v3008 = vrot.slane %v2991, %v3007
    %v3099 = vunpack.c.l.b16 %v2905
    %v3100 = vunpack.c.h.b16 %v2905
    %v3101 = vunpack.c.l.b16 %v2906
    %v3102 = vunpack.c.h.b16 %v2906
    %v3103 = vunpack.c.l.b16 %v2907
    %v3104 = vunpack.c.h.b16 %v2907
    %v3105 = vunpack.c.l.b16 %v2908
    %v3106 = vunpack.c.h.b16 %v2908
    %v3107 = vunpack.c.l.b16 %v2909
    %v3108 = vunpack.c.h.b16 %v2909
    %v3109 = vunpack.c.l.b16 %v2910
    %v3110 = vunpack.c.h.b16 %v2910
    %v3111 = vunpack.c.l.b16 %v2911
    %v3112 = vunpack.c.h.b16 %v2911
    %v3113 = vunpack.c.l.b16 %v2912
    %v3114 = vunpack.c.h.b16 %v2912
    %v3115 = vunpack.c.l.b16 %v2913
    %v3116 = vunpack.c.h.b16 %v2913
    %v3117 = vunpack.c.l.b16 %v2914
    %v3118 = vunpack.c.h.b16 %v2914
    %v3119 = vunpack.c.l.b16 %v2915
    %v3120 = vunpack.c.h.b16 %v2915
    %v3121 = vunpack.c.l.b16 %v2916
    %v3122 = vunpack.c.h.b16 %v2916
    %v3123 = vunpack.c.l.b16 %v2917
    %v3124 = vunpack.c.h.b16 %v2917
    %v3125 = vunpack.c.l.b16 %v2918
    %v3126 = vunpack.c.h.b16 %v2918
    %v3127 = vunpack.c.l.b16 %v2919
    %v3128 = vunpack.c.h.b16 %v2919
    %v3129 = vunpack.c.l.b16 %v2920
    %v3130 = vunpack.c.h.b16 %v2920
    %v3131 = vunpack.c.l.b16 %v2921
    %v3132 = vunpack.c.h.b16 %v2921
    %v3133 = vunpack.c.l.b16 %v2922
    %v3134 = vunpack.c.h.b16 %v2922
    %v3135 = vunpack.c.l.b16 %v2923
    %v3136 = vunpack.c.h.b16 %v2923
    %v3137 = vunpack.c.l.b16 %v2924
    %v3138 = vunpack.c.h.b16 %v2924
    %v3139 = vunpack.c.l.b16 %v2925
    %v3140 = vunpack.c.h.b16 %v2925
    %v3141 = vunpack.c.l.b16 %v2926
    %v3142 = vunpack.c.h.b16 %v2926
    %v3143 = vunpack.c.l.b16 %v2927
    %v3144 = vunpack.c.h.b16 %v2927
    %v3145 = vunpack.c.l.b16 %v2928
    %v3146 = vunpack.c.h.b16 %v2928
    %v3147 = vunpack.c.l.b16 %v2929
    %v3148 = vunpack.c.h.b16 %v2929
    %v3149 = vunpack.c.l.b16 %v2930
    %v3150 = vunpack.c.h.b16 %v2930
    %v3151 = vunpack.c.l.b16 %v2931
    %v3152 = vunpack.c.h.b16 %v2931
    %v3153 = vunpack.c.l.b16 %v2932
    %v3154 = vunpack.c.h.b16 %v2932
    %v3155 = vunpack.c.l.b16 %v2933
    %v3156 = vunpack.c.h.b16 %v2933
    %v3157 = vunpack.c.l.b16 %v2934
    %v3158 = vunpack.c.h.b16 %v2934
    %v3159 = vunpack.c.l.b16 %v2935
    %v3160 = vunpack.c.h.b16 %v2935
    %v3161 = vunpack.c.l.b16 %v2936
    %v3162 = vunpack.c.h.b16 %v2936
    %v3163 = vunpack.c.l.b16 %v2937
    %v3164 = vunpack.c.h.b16 %v2937
    %v3165 = vunpack.c.l.b16 %v2938
    %v3166 = vunpack.c.h.b16 %v2938
    %v3167 = vunpack.c.l.b16 %v2939
    %v3168 = vunpack.c.h.b16 %v2939
    %v3169 = vunpack.c.l.b16 %v2940
    %v3170 = vunpack.c.h.b16 %v2940
    %v3171 = vunpack.c.l.b16 %v2941
    %v3172 = vunpack.c.h.b16 %v2941
    %v3173 = vunpack.c.l.b16 %v2942
    %v3174 = vunpack.c.h.b16 %v2942
    %v3175 = vunpack.c.l.b16 %v2943
    %v3176 = vunpack.c.h.b16 %v2943
    %v3177 = vunpack.c.l.b16 %v2944
    %v3178 = vunpack.c.h.b16 %v2944
    %v3179 = vunpack.c.l.b16 %v2945
    %v3180 = vunpack.c.h.b16 %v2945
    %v3181 = vunpack.c.l.b16 %v2946
    %v3182 = vunpack.c.h.b16 %v2946
    %v3183 = vunpack.c.l.b16 %v2947
    %v3184 = vunpack.c.h.b16 %v2947
    %v3185 = vunpack.c.l.b16 %v2948
    %v3186 = vunpack.c.h.b16 %v2948
    %v3187 = vunpack.c.l.b16 %v2949
    %v3188 = vunpack.c.h.b16 %v2949
    %v3189 = vunpack.c.l.b16 %v2950
    %v3190 = vunpack.c.h.b16 %v2950
    %v3191 = vunpack.c.l.b16 %v2951
    %v3192 = vunpack.c.h.b16 %v2951
    %v3193 = vunpack.c.l.b16 %v2952
    %v3194 = vunpack.c.h.b16 %v2952
    %v3195 = vunpack.c.l.b16 %v2953
    %v3196 = vunpack.c.h.b16 %v2953
    %v3197 = vunpack.c.l.b16 %v2954
    %v3198 = vunpack.c.h.b16 %v2954
    %v3199 = vunpack.c.l.b16 %v2955
    %v3200 = vunpack.c.h.b16 %v2955
    %v3201 = vunpack.c.l.b16 %v2956
    %v3202 = vunpack.c.h.b16 %v2956
    %v3203 = vunpack.c.l.b16 %v2957
    %v3204 = vunpack.c.h.b16 %v2957
    %v3205 = vunpack.c.l.b16 %v2958
    %v3206 = vunpack.c.h.b16 %v2958
    %v3207 = vunpack.c.l.b16 %v2959
    %v3208 = vunpack.c.h.b16 %v2959
    %v3209 = vunpack.c.l.b16 %v2960
    %v3210 = vunpack.c.h.b16 %v2960
    %v3211 = vunpack.c.l.b16 %v2961
    %v3212 = vunpack.c.h.b16 %v2961
    %v3213 = vunpack.c.l.b16 %v2962
    %v3214 = vunpack.c.h.b16 %v2962
    %v3215 = vunpack.c.l.b16 %v2963
    %v3216 = vunpack.c.h.b16 %v2963
    %v3217 = vunpack.c.l.b16 %v2964
    %v3218 = vunpack.c.h.b16 %v2964
    %v3219 = vunpack.c.l.b16 %v2965
    %v3220 = vunpack.c.h.b16 %v2965
    %v3221 = vunpack.c.l.b16 %v2966
    %v3222 = vunpack.c.h.b16 %v2966
    %v3223 = vunpack.c.l.b16 %v2967
    %v3224 = vunpack.c.h.b16 %v2967
    %v3225 = vunpack.c.l.b16 %v2968
    %v3226 = vunpack.c.h.b16 %v2968
    %v3227 = vunpack.c.l.b16 %v2969
    %v3228 = vunpack.c.h.b16 %v2969
    %v3229 = vunpack.c.l.b16 %v2970
    %v3230 = vunpack.c.h.b16 %v2970
    %v3231 = vunpack.c.l.b16 %v2971
    %v3232 = vunpack.c.h.b16 %v2971
    %v3233 = vunpack.c.l.b16 %v2972
    %v3234 = vunpack.c.h.b16 %v2972
    %v3235 = vunpack.c.l.b16 %v2973
    %v3236 = vunpack.c.h.b16 %v2973
    %v3237 = vunpack.c.l.b16 %v2974
    %v3238 = vunpack.c.h.b16 %v2974
    %v3239 = vunpack.c.l.b16 %v2975
    %v3240 = vunpack.c.h.b16 %v2975
    %v3241 = vunpack.c.l.b16 %v2976
    %v3242 = vunpack.c.h.b16 %v2976
    %v3243 = vunpack.c.l.b16 %v2977
    %v3244 = vunpack.c.h.b16 %v2977
    %v3245 = vunpack.c.l.b16 %v2978
    %v3246 = vunpack.c.h.b16 %v2978
    %v3247 = vunpack.c.l.b16 %v2979
    %v3248 = vunpack.c.h.b16 %v2979
    %v3249 = vunpack.c.l.b16 %v2980
    %v3250 = vunpack.c.h.b16 %v2980
    %v3251 = vunpack.c.l.b16 %v2981
    %v3252 = vunpack.c.h.b16 %v2981
    %v3253 = vunpack.c.l.b16 %v2982
    %v3254 = vunpack.c.h.b16 %v2982
    %v3255 = vunpack.c.l.b16 %v2983
    %v3256 = vunpack.c.h.b16 %v2983
    %v3257 = vunpack.c.l.b16 %v2984
    %v3258 = vunpack.c.h.b16 %v2984
    %v3259 = vunpack.c.l.b16 %v2985
    %v3260 = vunpack.c.h.b16 %v2985
    %v3261 = vunpack.c.l.b16 %v2986
    %v3262 = vunpack.c.h.b16 %v2986
    %v3263 = vunpack.c.l.b16 %v2987
    %v3264 = vunpack.c.h.b16 %v2987
    %v3265 = vunpack.c.l.b16 %v2988
    %v3266 = vunpack.c.h.b16 %v2988
    %v3267 = vunpack.c.l.b16 %v2989
    %v3268 = vunpack.c.h.b16 %v2989
    %v3269 = vunpack.c.l.b16 %v2990
    %v3270 = vunpack.c.h.b16 %v2990
    %v3271 = vpack.c.b16 %v3103, %v3099
    %v3272 = vpack.c.b16 %v3104, %v3100
    %v3273 = vpack.c.b16 %v3105, %v3101
    %v3274 = vpack.c.b16 %v3106, %v3102
    %v3275 = vpack.c.b16 %v3111, %v3107
    %v3276 = vpack.c.b16 %v3112, %v3108
    %v3277 = vpack.c.b16 %v3113, %v3109
    %v3278 = vpack.c.b16 %v3114, %v3110
    %v3279 = vpack.c.b16 %v3119, %v3115
    %v3280 = vpack.c.b16 %v3120, %v3116
    %v3281 = vpack.c.b16 %v3121, %v3117
    %v3282 = vpack.c.b16 %v3122, %v3118
    %v3283 = vpack.c.b16 %v3127, %v3123
    %v3284 = vpack.c.b16 %v3128, %v3124
    %v3285 = vpack.c.b16 %v3129, %v3125
    %v3286 = vpack.c.b16 %v3130, %v3126
    %v3287 = vpack.c.b16 %v3135, %v3131
    %v3288 = vpack.c.b16 %v3136, %v3132
    %v3289 = vpack.c.b16 %v3137, %v3133
    %v3290 = vpack.c.b16 %v3138, %v3134
    %v3291 = vpack.c.b16 %v3143, %v3139
    %v3292 = vpack.c.b16 %v3144, %v3140
    %v3293 = vpack.c.b16 %v3145, %v3141
    %v3294 = vpack.c.b16 %v3146, %v3142
    %v3295 = vpack.c.b16 %v3151, %v3147
    %v3296 = vpack.c.b16 %v3152, %v3148
    %v3297 = vpack.c.b16 %v3153, %v3149
    %v3298 = vpack.c.b16 %v3154, %v3150
    %v3299 = vpack.c.b16 %v3159, %v3155
    %v3300 = vpack.c.b16 %v3160, %v3156
    %v3301 = vpack.c.b16 %v3161, %v3157
    %v3302 = vpack.c.b16 %v3162, %v3158
    %v3303 = vpack.c.b16 %v3167, %v3163
    %v3304 = vpack.c.b16 %v3168, %v3164
    %v3305 = vpack.c.b16 %v3169, %v3165
    %v3306 = vpack.c.b16 %v3170, %v3166
    %v3307 = vpack.c.b16 %v3175, %v3171
    %v3308 = vpack.c.b16 %v3176, %v3172
    %v3309 = vpack.c.b16 %v3177, %v3173
    %v3310 = vpack.c.b16 %v3178, %v3174
    %v3311 = vpack.c.b16 %v3183, %v3179
    %v3312 = vpack.c.b16 %v3184, %v3180
    %v3313 = vpack.c.b16 %v3185, %v3181
    %v3314 = vpack.c.b16 %v3186, %v3182
    %v3315 = vpack.c.b16 %v3191, %v3187
    %v3316 = vpack.c.b16 %v3192, %v3188
    %v3317 = vpack.c.b16 %v3193, %v3189
    %v3318 = vpack.c.b16 %v3194, %v3190
    %v3319 = vpack.c.b16 %v3199, %v3195
    %v3320 = vpack.c.b16 %v3200, %v3196
    %v3321 = vpack.c.b16 %v3201, %v3197
    %v3322 = vpack.c.b16 %v3202, %v3198
    %v3323 = vpack.c.b16 %v3207, %v3203
    %v3324 = vpack.c.b16 %v3208, %v3204
    %v3325 = vpack.c.b16 %v3209, %v3205
    %v3326 = vpack.c.b16 %v3210, %v3206
    %v3327 = vpack.c.b16 %v3215, %v3211
    %v3328 = vpack.c.b16 %v3216, %v3212
    %v3329 = vpack.c.b16 %v3217, %v3213
    %v3330 = vpack.c.b16 %v3218, %v3214
    %v3331 = vpack.c.b16 %v3223, %v3219
    %v3332 = vpack.c.b16 %v3224, %v3220
    %v3333 = vpack.c.b16 %v3225, %v3221
    %v3334 = vpack.c.b16 %v3226, %v3222
    %v3335 = vpack.c.b16 %v3231, %v3227
    %v3336 = vpack.c.b16 %v3232, %v3228
    %v3337 = vpack.c.b16 %v3233, %v3229
    %v3338 = vpack.c.b16 %v3234, %v3230
    %v3339 = vpack.c.b16 %v3239, %v3235
    %v3340 = vpack.c.b16 %v3240, %v3236
    %v3341 = vpack.c.b16 %v3241, %v3237
    %v3342 = vpack.c.b16 %v3242, %v3238
    %v3343 = vpack.c.b16 %v3247, %v3243
    %v3344 = vpack.c.b16 %v3248, %v3244
    %v3345 = vpack.c.b16 %v3249, %v3245
    %v3346 = vpack.c.b16 %v3250, %v3246
    %v3347 = vpack.c.b16 %v3255, %v3251
    %v3348 = vpack.c.b16 %v3256, %v3252
    %v3349 = vpack.c.b16 %v3257, %v3253
    %v3350 = vpack.c.b16 %v3258, %v3254
    %v3351 = vpack.c.b16 %v3263, %v3259
    %v3352 = vpack.c.b16 %v3264, %v3260
    %v3353 = vpack.c.b16 %v3265, %v3261
    %v3354 = vpack.c.b16 %v3266, %v3262
    %v3355 = vpack.c.b16 %v3267, %v3267
    %v3356 = vpack.c.b16 %v3268, %v3268
    %v3357 = vpack.c.b16 %v3269, %v3269
    %v3358 = vpack.c.b16 %v3270, %v3270
    %vm3443 = vcmask 670720
    %v3445 = vsel %vm3443, %v2904, 0
    %v3448 = vsel %vm1649, %v3355, 0
    %v3451 = vsel %vm1649, %v3356, 0
    %v3454 = vsel %vm1649, %v3357, 0
    %v3457 = vsel %vm1649, %v3358, 0
    %3459 = vmatprep.subr.bf16.mxu0 %v3272
    %3460 = vmatpush1.bf16.msra.mxu0 %v3271
    %3461 = vmatprep.subr.bf16.mxu0 %v3276
    %3462 = vmatpush1.bf16.msra.mxu0 %v3275
    %3463 = vmatprep.subr.bf16.mxu0 %v3280
    %3464 = vmatpush1.bf16.msra.mxu0 %v3279
    %3465 = vmatprep.subr.bf16.mxu0 %v3284
    %3466 = vmatpush1.bf16.msra.mxu0 %v3283
    %3467 = vmatprep.subr.bf16.mxu0 %v3288
    %3468 = vmatpush1.bf16.msra.mxu0 %v3287
    %3469 = vmatprep.subr.bf16.mxu0 %v3292
    %3470 = vmatpush1.bf16.msra.mxu0 %v3291
    %3471 = vmatprep.subr.bf16.mxu0 %v3296
    %3472 = vmatpush1.bf16.msra.mxu0 %v3295
    %3473 = vmatprep.subr.bf16.mxu0 %v3300
    %3474 = vmatpush1.bf16.msra.mxu0 %v3299
    %3475 = vmatprep.subr.bf16.mxu0 %v3304
    %3476 = vmatpush1.bf16.msra.mxu0 %v3303
    %3477 = vmatprep.subr.bf16.mxu0 %v3308
    %3478 = vmatpush1.bf16.msra.mxu0 %v3307
    %3479 = vmatprep.subr.bf16.mxu0 %v3312
    %3480 = vmatpush1.bf16.msra.mxu0 %v3311
    %3481 = vmatprep.subr.bf16.mxu0 %v3316
    %3482 = vmatpush1.bf16.msra.mxu0 %v3315
    %3483 = vmatprep.subr.bf16.mxu0 %v3320
    %3484 = vmatpush1.bf16.msra.mxu0 %v3319
    %3485 = vmatprep.subr.bf16.mxu0 %v3324
    %3486 = vmatpush1.bf16.msra.mxu0 %v3323
    %3487 = vmatprep.subr.bf16.mxu0 %v3328
    %3488 = vmatpush1.bf16.msra.mxu0 %v3327
    %3489 = vmatprep.subr.bf16.mxu0 %v3332
    %3490 = vmatpush1.bf16.msra.mxu0 %v3331
    %3491 = vmatprep.mubr.bf16.mxu0 %v2903
    %3492 = vmatmul.mubr.bf16.gmra.mrb[0].mxu0 %v2902
    %v3493 = vpop.f32.mrb[0].mxu0
    %v3494 = vadd.f32 %v2996, %v3493
    %v3495 = vpop.f32.mrb[0].mxu0
    %v3496 = vadd.f32 %v3000, %v3495
    %v3497 = vpop.f32.mrb[0].mxu0
    %v3498 = vadd.f32 %v2996, %v3497
    %v3499 = vpop.f32.mrb[0].mxu0
    %v3500 = vadd.f32 %v3000, %v3499
    %3501 = vdwg.mxu0
    %3502 = vmatprep.subr.bf16.mxu0 %v3336
    %3503 = vmatpush1.bf16.msra.mxu0 %v3335
    %3504 = vmatprep.subr.bf16.mxu0 %v3340
    %3505 = vmatpush1.bf16.msra.mxu0 %v3339
    %3506 = vmatprep.subr.bf16.mxu0 %v3344
    %3507 = vmatpush1.bf16.msra.mxu0 %v3343
    %3508 = vmatprep.subr.bf16.mxu0 %v3348
    %3509 = vmatpush1.bf16.msra.mxu0 %v3347
    %3510 = vmatprep.subr.bf16.mxu0 %v3352
    %3511 = vmatpush1.bf16.msra.mxu0 %v3351
    %3512 = vmatprep.subr.bf16.mxu0 %v3451
    %3513 = vmatpush1.bf16.msra.mxu0 %v3448
    %3514 = vmatprep.subr.bf16.mxu0 0
    %3515 = vmatpush1.bf16.msra.mxu0 0
    %3516 = vmatprep.subr.bf16.mxu0 0
    %3517 = vmatpush1.bf16.msra.mxu0 0
    %3518 = vmatprep.subr.bf16.mxu0 0
    %3519 = vmatpush1.bf16.msra.mxu0 0
    %3520 = vmatprep.subr.bf16.mxu0 0
    %3521 = vmatpush1.bf16.msra.mxu0 0
    %3522 = vmatprep.subr.bf16.mxu0 0
    %3523 = vmatpush1.bf16.msra.mxu0 0
    %3524 = vmatprep.subr.bf16.mxu0 0
    %3525 = vmatpush1.bf16.msra.mxu0 0
    %3526 = vmatprep.subr.bf16.mxu0 0
    %3527 = vmatpush1.bf16.msra.mxu0 0
    %3528 = vmatprep.subr.bf16.mxu0 0
    %3529 = vmatpush1.bf16.msra.mxu0 0
    %3530 = vmatprep.subr.bf16.mxu0 0
    %3531 = vmatpush1.bf16.msra.mxu0 0
    %3532 = vmatprep.subr.bf16.mxu0 0
    %3533 = vmatpush1.bf16.msra.mxu0 0
    %3534 = vmatprep.mubr.bf16.mxu0 0
    %3535 = vmatmul.mubr.bf16.gmra.mrb[0].mxu0 %v3445
    %v3536 = vpop.f32.mrb[0].mxu0
    %v3537 = vadd.f32 %v3494, %v3536
    %v3538 = vpop.f32.mrb[0].mxu0
    %v3539 = vadd.f32 %v3496, %v3538
    %v3540 = vpop.f32.mrb[0].mxu0
    %v3541 = vadd.f32 %v3498, %v3540
    %v3542 = vpop.f32.mrb[0].mxu0
    %v3543 = vadd.f32 %v3500, %v3542
    %3544 = vdwg.mxu0
    %3545 = vmatprep.subr.bf16.mxu0 %v3274
    %3546 = vmatpush1.bf16.msra.mxu0 %v3273
    %3547 = vmatprep.subr.bf16.mxu0 %v3278
    %3548 = vmatpush1.bf16.msra.mxu0 %v3277
    %3549 = vmatprep.subr.bf16.mxu0 %v3282
    %3550 = vmatpush1.bf16.msra.mxu0 %v3281
    %3551 = vmatprep.subr.bf16.mxu0 %v3286
    %3552 = vmatpush1.bf16.msra.mxu0 %v3285
    %3553 = vmatprep.subr.bf16.mxu0 %v3290
    %3554 = vmatpush1.bf16.msra.mxu0 %v3289
    %3555 = vmatprep.subr.bf16.mxu0 %v3294
    %3556 = vmatpush1.bf16.msra.mxu0 %v3293
    %3557 = vmatprep.subr.bf16.mxu0 %v3298
    %3558 = vmatpush1.bf16.msra.mxu0 %v3297
    %3559 = vmatprep.subr.bf16.mxu0 %v3302
    %3560 = vmatpush1.bf16.msra.mxu0 %v3301
    %3561 = vmatprep.subr.bf16.mxu0 %v3306
    %3562 = vmatpush1.bf16.msra.mxu0 %v3305
    %3563 = vmatprep.subr.bf16.mxu0 %v3310
    %3564 = vmatpush1.bf16.msra.mxu0 %v3309
    %3565 = vmatprep.subr.bf16.mxu0 %v3314
    %3566 = vmatpush1.bf16.msra.mxu0 %v3313
    %3567 = vmatprep.subr.bf16.mxu0 %v3318
    %3568 = vmatpush1.bf16.msra.mxu0 %v3317
    %3569 = vmatprep.subr.bf16.mxu0 %v3322
    %3570 = vmatpush1.bf16.msra.mxu0 %v3321
    %3571 = vmatprep.subr.bf16.mxu0 %v3326
    %3572 = vmatpush1.bf16.msra.mxu0 %v3325
    %3573 = vmatprep.subr.bf16.mxu0 %v3330
    %3574 = vmatpush1.bf16.msra.mxu0 %v3329
    %3575 = vmatprep.subr.bf16.mxu0 %v3334
    %3576 = vmatpush1.bf16.msra.mxu0 %v3333
    %3577 = vmatprep.mubr.bf16.mxu0 %v2903
    %3578 = vmatmul.mubr.bf16.gmra.mrb[0].mxu0 %v2902
    %v3579 = vpop.f32.mrb[0].mxu0
    %v3580 = vadd.f32 %v3004, %v3579
    %v3581 = vpop.f32.mrb[0].mxu0
    %v3582 = vadd.f32 %v3008, %v3581
    %v3583 = vpop.f32.mrb[0].mxu0
    %v3584 = vadd.f32 %v3004, %v3583
    %v3585 = vpop.f32.mrb[0].mxu0
    %v3586 = vadd.f32 %v3008, %v3585
    %3587 = vdwg.mxu0
    %3588 = vmatprep.subr.bf16.mxu0 %v3338
    %3589 = vmatpush1.bf16.msra.mxu0 %v3337
    %3590 = vmatprep.subr.bf16.mxu0 %v3342
    %3591 = vmatpush1.bf16.msra.mxu0 %v3341
    %3592 = vmatprep.subr.bf16.mxu0 %v3346
    %3593 = vmatpush1.bf16.msra.mxu0 %v3345
    %3594 = vmatprep.subr.bf16.mxu0 %v3350
    %3595 = vmatpush1.bf16.msra.mxu0 %v3349
    %3596 = vmatprep.subr.bf16.mxu0 %v3354
    %3597 = vmatpush1.bf16.msra.mxu0 %v3353
    %3598 = vmatprep.subr.bf16.mxu0 %v3457
    %3599 = vmatpush1.bf16.msra.mxu0 %v3454
    %3600 = vmatprep.subr.bf16.mxu0 0
    %3601 = vmatpush1.bf16.msra.mxu0 0
    %3602 = vmatprep.subr.bf16.mxu0 0
    %3603 = vmatpush1.bf16.msra.mxu0 0
    %3604 = vmatprep.subr.bf16.mxu0 0
    %3605 = vmatpush1.bf16.msra.mxu0 0
    %3606 = vmatprep.subr.bf16.mxu0 0
    %3607 = vmatpush1.bf16.msra.mxu0 0
    %3608 = vmatprep.subr.bf16.mxu0 0
    %3609 = vmatpush1.bf16.msra.mxu0 0
    %3610 = vmatprep.subr.bf16.mxu0 0
    %3611 = vmatpush1.bf16.msra.mxu0 0
    %3612 = vmatprep.subr.bf16.mxu0 0
    %3613 = vmatpush1.bf16.msra.mxu0 0
    %3614 = vmatprep.subr.bf16.mxu0 0
    %3615 = vmatpush1.bf16.msra.mxu0 0
    %3616 = vmatprep.subr.bf16.mxu0 0
    %3617 = vmatpush1.bf16.msra.mxu0 0
    %3618 = vmatprep.subr.bf16.mxu0 0
    %3619 = vmatpush1.bf16.msra.mxu0 0
    %3620 = vmatprep.mubr.bf16.mxu0 0
    %3621 = vmatmul.mubr.bf16.gmra.mrb[0].mxu0 %v3445
    %v3622 = vpop.f32.mrb[0].mxu0
    %v3623 = vadd.f32 %v3580, %v3622
    %v3624 = vpop.f32.mrb[0].mxu0
    %v3625 = vadd.f32 %v3582, %v3624
    %v3626 = vpop.f32.mrb[0].mxu0
    %v3627 = vadd.f32 %v3584, %v3626
    %v3628 = vpop.f32.mrb[0].mxu0
    %v3629 = vadd.f32 %v3586, %v3628
    %3630 = vdwg.mxu0
    %v3631 = vmul.f32 %v3537, 0.5
    %v3632 = vmul.f32 %v3539, 0.5
    %v3633 = vmul.f32 %v3623, 0.5
    %v3634 = vmul.f32 %v3625, 0.5
    %v3635 = vmul.f32 %v3541, 0.5
    %v3636 = vmul.f32 %v3543, 0.5
    %v3637 = vmul.f32 %v3627, 0.5
    %v3638 = vmul.f32 %v3629, 0.5
    %v3639 = vmul.f32 %v3537, 0.70710677
    %v3640 = vmul.f32 %v3539, 0.70710677
    %v3641 = vmul.f32 %v3623, 0.70710677
    %v3642 = vmul.f32 %v3625, 0.70710677
    %v3643 = vmul.f32 %v3541, 0.70710677
    %v3644 = vmul.f32 %v3543, 0.70710677
    %v3645 = vmul.f32 %v3627, 0.70710677
    %v3646 = vmul.f32 %v3629, 0.70710677
    %v3647 = verf.f32.pop %v3639
    %v3648 = verf.f32.pop %v3640
    %v3649 = verf.f32.pop %v3641
    %v3650 = verf.f32.pop %v3642
    %v3651 = verf.f32.pop %v3643
    %v3652 = verf.f32.pop %v3644
    %v3653 = verf.f32.pop %v3645
    %v3654 = verf.f32.pop %v3646
    %v3655 = vadd.f32 %v3647, 1.0
    %v3656 = vadd.f32 %v3648, 1.0
    %v3657 = vadd.f32 %v3649, 1.0
    %v3658 = vadd.f32 %v3650, 1.0
    %v3659 = vadd.f32 %v3651, 1.0
    %v3660 = vadd.f32 %v3652, 1.0
    %v3661 = vadd.f32 %v3653, 1.0
    %v3662 = vadd.f32 %v3654, 1.0
    %v3663 = vmul.f32 %v3631, %v3655
    %v3664 = vmul.f32 %v3632, %v3656
    %v3665 = vmul.f32 %v3633, %v3657
    %v3666 = vmul.f32 %v3634, %v3658
    %v3667 = vmul.f32 %v3635, %v3659
    %v3668 = vmul.f32 %v3636, %v3660
    %v3669 = vmul.f32 %v3637, %v3661
    %v3670 = vmul.f32 %v3638, %v3662
    %v3671 = vpack.c.bf16 %v3667, %v3663
    %v3672 = vpack.c.bf16 %v3668, %v3664
    %v3673 = vpack.c.bf16 %v3669, %v3665
    %v3674 = vpack.c.bf16 %v3670, %v3666
    %v3675 = vld [vmem:[%s6] sm:$0xff]
    %v3676 = vld [vmem:[%s6 + $0x8] sm:$0xff]
    %v3677 = vld [vmem:[%s6 + $0x10] sm:$0xff]
    %v3678 = vld [vmem:[%s6 + $0x18] sm:$0xff]
    %v3679 = vld [vmem:[%s6 + $0x20] sm:$0xff]
    %v3680 = vld [vmem:[%s6 + $0x28] sm:$0xff]
    %v3681 = vld [vmem:[%s6 + $0x30] sm:$0xff]
    %v3682 = vld [vmem:[%s6 + $0x38] sm:$0xff]
    %v3683 = vld [vmem:[%s6 + $0x40] sm:$0xff]
    %v3684 = vld [vmem:[%s6 + $0x48] sm:$0xff]
    %v3685 = vld [vmem:[%s6 + $0x50] sm:$0xff]
    %v3686 = vld [vmem:[%s6 + $0x58] sm:$0xff]
    %v3687 = vld [vmem:[%s6 + $0x60] sm:$0xff]
    %v3688 = vld [vmem:[%s6 + $0x68] sm:$0xff]
    %v3689 = vld [vmem:[%s6 + $0x70] sm:$0xff]
    %v3690 = vld [vmem:[%s6 + $0x78] sm:$0xff]
    %v3691 = vld [vmem:[%s6 + $0x80] sm:$0xff]
    %v3692 = vld [vmem:[%s6 + $0x88] sm:$0xff]
    %v3693 = vld [vmem:[%s6 + $0x90] sm:$0xff]
    %v3694 = vld [vmem:[%s6 + $0x98] sm:$0xff]
    %v3695 = vld [vmem:[%s6 + $0xa0] sm:$0xff]
    %v3696 = vld [vmem:[%s6 + $0xa8] sm:$0xff]
    %v3697 = vld [vmem:[%s6 + $0xb0] sm:$0xff]
    %v3698 = vld [vmem:[%s6 + $0xb8] sm:$0xff]
    %v3699 = vld [vmem:[%s6 + $0xc0] sm:$0xff]
    %v3700 = vld [vmem:[%s6 + $0xc8] sm:$0xff]
    %v3701 = vld [vmem:[%s6 + $0xd0] sm:$0xff]
    %v3702 = vld [vmem:[%s6 + $0xd8] sm:$0xff]
    %v3703 = vld [vmem:[%s6 + $0xe0] sm:$0xff]
    %v3704 = vld [vmem:[%s6 + $0xe8] sm:$0xff]
    %v3705 = vld [vmem:[%s6 + $0xf0] sm:$0xff]
    %v3706 = vld [vmem:[%s6 + $0xf8] sm:$0xff]
    %v3707 = vld [vmem:[%s6 + $0x100] sm:$0xff]
    %v3708 = vld [vmem:[%s6 + $0x108] sm:$0xff]
    %v3709 = vld [vmem:[%s6 + $0x110] sm:$0xff]
    %v3710 = vld [vmem:[%s6 + $0x118] sm:$0xff]
    %v3711 = vld [vmem:[%s6 + $0x120] sm:$0xff]
    %v3712 = vld [vmem:[%s6 + $0x128] sm:$0xff]
    %v3713 = vld [vmem:[%s6 + $0x130] sm:$0xff]
    %v3714 = vld [vmem:[%s6 + $0x138] sm:$0xff]
    %v3715 = vld [vmem:[%s6 + $0x140] sm:$0xff]
    %v3716 = vld [vmem:[%s6 + $0x148] sm:$0xff]
    %v3717 = vld [vmem:[%s6 + $0x150] sm:$0xff]
    %v3718 = vld [vmem:[%s6 + $0x158] sm:$0xff]
    %v3719 = vld [vmem:[%s6 + $0x160] sm:$0xff]
    %v3720 = vld [vmem:[%s6 + $0x168] sm:$0xff]
    %v3721 = vld [vmem:[%s6 + $0x170] sm:$0xff]
    %v3722 = vld [vmem:[%s6 + $0x178] sm:$0xff]
    %v3723 = vld [vmem:[%s6 + $0x180] sm:$0xff]
    %v3724 = vld [vmem:[%s6 + $0x188] sm:$0xff]
    %v3725 = vld [vmem:[%s6 + $0x190] sm:$0xff]
    %v3726 = vld [vmem:[%s6 + $0x198] sm:$0xff]
    %v3727 = vld [vmem:[%s6 + $0x1a0] sm:$0xff]
    %v3728 = vld [vmem:[%s6 + $0x1a8] sm:$0xff]
    %v3729 = vld [vmem:[%s6 + $0x1b0] sm:$0xff]
    %v3730 = vld [vmem:[%s6 + $0x1b8] sm:$0xff]
    %v3731 = vld [vmem:[%s6 + $0x1c0] sm:$0xff]
    %v3732 = vld [vmem:[%s6 + $0x1c8] sm:$0xff]
    %v3733 = vld [vmem:[%s6 + $0x1d0] sm:$0xff]
    %v3734 = vld [vmem:[%s6 + $0x1d8] sm:$0xff]
    %v3735 = vld [vmem:[%s6 + $0x1e0] sm:$0xff]
    %v3736 = vld [vmem:[%s6 + $0x1e8] sm:$0xff]
    %v3737 = vld [vmem:[%s6 + $0x1f0] sm:$0xff]
    %v3738 = vld [vmem:[%s6 + $0x1f8] sm:$0x33]
    %v3739 = vld [vmem:[%s7] sm:$0x3]
    %v3741 = vlaneseq
    %v3742 = vshrl.u32 %v3741, 7
    %v3743 = vsub.s32 0, %v3742
    %v3744 = vrot.slane %v3739, %v3743
    %v3745 = vlaneseq
    %v3746 = vshrl.u32 %v3745, 7
    %v3747 = vsub.s32 1, %v3746
    %v3748 = vrot.slane %v3739, %v3747
    %v3815 = vunpack.c.l.b16 %v3675
    %v3816 = vunpack.c.h.b16 %v3675
    %v3817 = vunpack.c.l.b16 %v3676
    %v3818 = vunpack.c.h.b16 %v3676
    %v3819 = vunpack.c.l.b16 %v3677
    %v3820 = vunpack.c.h.b16 %v3677
    %v3821 = vunpack.c.l.b16 %v3678
    %v3822 = vunpack.c.h.b16 %v3678
    %v3823 = vunpack.c.l.b16 %v3679
    %v3824 = vunpack.c.h.b16 %v3679
    %v3825 = vunpack.c.l.b16 %v3680
    %v3826 = vunpack.c.h.b16 %v3680
    %v3827 = vunpack.c.l.b16 %v3681
    %v3828 = vunpack.c.h.b16 %v3681
    %v3829 = vunpack.c.l.b16 %v3682
    %v3830 = vunpack.c.h.b16 %v3682
    %v3831 = vunpack.c.l.b16 %v3683
    %v3832 = vunpack.c.h.b16 %v3683
    %v3833 = vunpack.c.l.b16 %v3684
    %v3834 = vunpack.c.h.b16 %v3684
    %v3835 = vunpack.c.l.b16 %v3685
    %v3836 = vunpack.c.h.b16 %v3685
    %v3837 = vunpack.c.l.b16 %v3686
    %v3838 = vunpack.c.h.b16 %v3686
    %v3839 = vunpack.c.l.b16 %v3687
    %v3840 = vunpack.c.h.b16 %v3687
    %v3841 = vunpack.c.l.b16 %v3688
    %v3842 = vunpack.c.h.b16 %v3688
    %v3843 = vunpack.c.l.b16 %v3689
    %v3844 = vunpack.c.h.b16 %v3689
    %v3845 = vunpack.c.l.b16 %v3690
    %v3846 = vunpack.c.h.b16 %v3690
    %v3847 = vunpack.c.l.b16 %v3691
    %v3848 = vunpack.c.h.b16 %v3691
    %v3849 = vunpack.c.l.b16 %v3692
    %v3850 = vunpack.c.h.b16 %v3692
    %v3851 = vunpack.c.l.b16 %v3693
    %v3852 = vunpack.c.h.b16 %v3693
    %v3853 = vunpack.c.l.b16 %v3694
    %v3854 = vunpack.c.h.b16 %v3694
    %v3855 = vunpack.c.l.b16 %v3695
    %v3856 = vunpack.c.h.b16 %v3695
    %v3857 = vunpack.c.l.b16 %v3696
    %v3858 = vunpack.c.h.b16 %v3696
    %v3859 = vunpack.c.l.b16 %v3697
    %v3860 = vunpack.c.h.b16 %v3697
    %v3861 = vunpack.c.l.b16 %v3698
    %v3862 = vunpack.c.h.b16 %v3698
    %v3863 = vunpack.c.l.b16 %v3699
    %v3864 = vunpack.c.h.b16 %v3699
    %v3865 = vunpack.c.l.b16 %v3700
    %v3866 = vunpack.c.h.b16 %v3700
    %v3867 = vunpack.c.l.b16 %v3701
    %v3868 = vunpack.c.h.b16 %v3701
    %v3869 = vunpack.c.l.b16 %v3702
    %v3870 = vunpack.c.h.b16 %v3702
    %v3871 = vunpack.c.l.b16 %v3703
    %v3872 = vunpack.c.h.b16 %v3703
    %v3873 = vunpack.c.l.b16 %v3704
    %v3874 = vunpack.c.h.b16 %v3704
    %v3875 = vunpack.c.l.b16 %v3705
    %v3876 = vunpack.c.h.b16 %v3705
    %v3877 = vunpack.c.l.b16 %v3706
    %v3878 = vunpack.c.h.b16 %v3706
    %v3879 = vunpack.c.l.b16 %v3707
    %v3880 = vunpack.c.h.b16 %v3707
    %v3881 = vunpack.c.l.b16 %v3708
    %v3882 = vunpack.c.h.b16 %v3708
    %v3883 = vunpack.c.l.b16 %v3709
    %v3884 = vunpack.c.h.b16 %v3709
    %v3885 = vunpack.c.l.b16 %v3710
    %v3886 = vunpack.c.h.b16 %v3710
    %v3887 = vunpack.c.l.b16 %v3711
    %v3888 = vunpack.c.h.b16 %v3711
    %v3889 = vunpack.c.l.b16 %v3712
    %v3890 = vunpack.c.h.b16 %v3712
    %v3891 = vunpack.c.l.b16 %v3713
    %v3892 = vunpack.c.h.b16 %v3713
    %v3893 = vunpack.c.l.b16 %v3714
    %v3894 = vunpack.c.h.b16 %v3714
    %v3895 = vunpack.c.l.b16 %v3715
    %v3896 = vunpack.c.h.b16 %v3715
    %v3897 = vunpack.c.l.b16 %v3716
    %v3898 = vunpack.c.h.b16 %v3716
    %v3899 = vunpack.c.l.b16 %v3717
    %v3900 = vunpack.c.h.b16 %v3717
    %v3901 = vunpack.c.l.b16 %v3718
    %v3902 = vunpack.c.h.b16 %v3718
    %v3903 = vunpack.c.l.b16 %v3719
    %v3904 = vunpack.c.h.b16 %v3719
    %v3905 = vunpack.c.l.b16 %v3720
    %v3906 = vunpack.c.h.b16 %v3720
    %v3907 = vunpack.c.l.b16 %v3721
    %v3908 = vunpack.c.h.b16 %v3721
    %v3909 = vunpack.c.l.b16 %v3722
    %v3910 = vunpack.c.h.b16 %v3722
    %v3911 = vunpack.c.l.b16 %v3723
    %v3912 = vunpack.c.h.b16 %v3723
    %v3913 = vunpack.c.l.b16 %v3724
    %v3914 = vunpack.c.h.b16 %v3724
    %v3915 = vunpack.c.l.b16 %v3725
    %v3916 = vunpack.c.h.b16 %v3725
    %v3917 = vunpack.c.l.b16 %v3726
    %v3918 = vunpack.c.h.b16 %v3726
    %v3919 = vunpack.c.l.b16 %v3727
    %v3920 = vunpack.c.h.b16 %v3727
    %v3921 = vunpack.c.l.b16 %v3728
    %v3922 = vunpack.c.h.b16 %v3728
    %v3923 = vunpack.c.l.b16 %v3729
    %v3924 = vunpack.c.h.b16 %v3729
    %v3925 = vunpack.c.l.b16 %v3730
    %v3926 = vunpack.c.h.b16 %v3730
    %v3927 = vunpack.c.l.b16 %v3731
    %v3928 = vunpack.c.h.b16 %v3731
    %v3929 = vunpack.c.l.b16 %v3732
    %v3930 = vunpack.c.h.b16 %v3732
    %v3931 = vunpack.c.l.b16 %v3733
    %v3932 = vunpack.c.h.b16 %v3733
    %v3933 = vunpack.c.l.b16 %v3734
    %v3934 = vunpack.c.h.b16 %v3734
    %v3935 = vunpack.c.l.b16 %v3735
    %v3936 = vunpack.c.h.b16 %v3735
    %v3937 = vunpack.c.l.b16 %v3736
    %v3938 = vunpack.c.h.b16 %v3736
    %v3939 = vunpack.c.l.b16 %v3737
    %v3940 = vunpack.c.h.b16 %v3737
    %v3941 = vunpack.c.l.b16 %v3738
    %v3942 = vunpack.c.h.b16 %v3738
    %v3943 = vpack.c.b16 %v3817, %v3815
    %v3944 = vpack.c.b16 %v3818, %v3816
    %v3945 = vpack.c.b16 %v3821, %v3819
    %v3946 = vpack.c.b16 %v3822, %v3820
    %v3947 = vpack.c.b16 %v3825, %v3823
    %v3948 = vpack.c.b16 %v3826, %v3824
    %v3949 = vpack.c.b16 %v3829, %v3827
    %v3950 = vpack.c.b16 %v3830, %v3828
    %v3951 = vpack.c.b16 %v3833, %v3831
    %v3952 = vpack.c.b16 %v3834, %v3832
    %v3953 = vpack.c.b16 %v3837, %v3835
    %v3954 = vpack.c.b16 %v3838, %v3836
    %v3955 = vpack.c.b16 %v3841, %v3839
    %v3956 = vpack.c.b16 %v3842, %v3840
    %v3957 = vpack.c.b16 %v3845, %v3843
    %v3958 = vpack.c.b16 %v3846, %v3844
    %v3959 = vpack.c.b16 %v3849, %v3847
    %v3960 = vpack.c.b16 %v3850, %v3848
    %v3961 = vpack.c.b16 %v3853, %v3851
    %v3962 = vpack.c.b16 %v3854, %v3852
    %v3963 = vpack.c.b16 %v3857, %v3855
    %v3964 = vpack.c.b16 %v3858, %v3856
    %v3965 = vpack.c.b16 %v3861, %v3859
    %v3966 = vpack.c.b16 %v3862, %v3860
    %v3967 = vpack.c.b16 %v3865, %v3863
    %v3968 = vpack.c.b16 %v3866, %v3864
    %v3969 = vpack.c.b16 %v3869, %v3867
    %v3970 = vpack.c.b16 %v3870, %v3868
    %v3971 = vpack.c.b16 %v3873, %v3871
    %v3972 = vpack.c.b16 %v3874, %v3872
    %v3973 = vpack.c.b16 %v3877, %v3875
    %v3974 = vpack.c.b16 %v3878, %v3876
    %v3975 = vpack.c.b16 %v3881, %v3879
    %v3976 = vpack.c.b16 %v3882, %v3880
    %v3977 = vpack.c.b16 %v3885, %v3883
    %v3978 = vpack.c.b16 %v3886, %v3884
    %v3979 = vpack.c.b16 %v3889, %v3887
    %v3980 = vpack.c.b16 %v3890, %v3888
    %v3981 = vpack.c.b16 %v3893, %v3891
    %v3982 = vpack.c.b16 %v3894, %v3892
    %v3983 = vpack.c.b16 %v3897, %v3895
    %v3984 = vpack.c.b16 %v3898, %v3896
    %v3985 = vpack.c.b16 %v3901, %v3899
    %v3986 = vpack.c.b16 %v3902, %v3900
    %v3987 = vpack.c.b16 %v3905, %v3903
    %v3988 = vpack.c.b16 %v3906, %v3904
    %v3989 = vpack.c.b16 %v3909, %v3907
    %v3990 = vpack.c.b16 %v3910, %v3908
    %v3991 = vpack.c.b16 %v3913, %v3911
    %v3992 = vpack.c.b16 %v3914, %v3912
    %v3993 = vpack.c.b16 %v3917, %v3915
    %v3994 = vpack.c.b16 %v3918, %v3916
    %v3995 = vpack.c.b16 %v3921, %v3919
    %v3996 = vpack.c.b16 %v3922, %v3920
    %v3997 = vpack.c.b16 %v3925, %v3923
    %v3998 = vpack.c.b16 %v3926, %v3924
    %v3999 = vpack.c.b16 %v3929, %v3927
    %v4000 = vpack.c.b16 %v3930, %v3928
    %v4001 = vpack.c.b16 %v3933, %v3931
    %v4002 = vpack.c.b16 %v3934, %v3932
    %v4003 = vpack.c.b16 %v3937, %v3935
    %v4004 = vpack.c.b16 %v3938, %v3936
    %v4005 = vpack.c.b16 %v3941, %v3939
    %v4006 = vpack.c.b16 %v3942, %v3940
    %vm4069 = vcmask 1006592
    %v4071 = vsel %vm4069, %v3674, 0
    %vm4073 = vcmask 1045504
    %v4074 = vsel %vm468, 4294967295, 65535
    %v4075 = vsel %vm4073, %v4074, 0
    %v4077 = vand.u32 %v4005, %v4075
    %v4080 = vand.u32 %v4006, %v4075
    %4082 = vmatprep.subr.bf16.mxu0 %v3944
    %4083 = vmatpush1.bf16.msra.mxu0 %v3943
    %4084 = vmatprep.subr.bf16.mxu0 %v3946
    %4085 = vmatpush1.bf16.msra.mxu0 %v3945
    %4086 = vmatprep.subr.bf16.mxu0 %v3948
    %4087 = vmatpush1.bf16.msra.mxu0 %v3947
    %4088 = vmatprep.subr.bf16.mxu0 %v3950
    %4089 = vmatpush1.bf16.msra.mxu0 %v3949
    %4090 = vmatprep.subr.bf16.mxu0 %v3952
    %4091 = vmatpush1.bf16.msra.mxu0 %v3951
    %4092 = vmatprep.subr.bf16.mxu0 %v3954
    %4093 = vmatpush1.bf16.msra.mxu0 %v3953
    %4094 = vmatprep.subr.bf16.mxu0 %v3956
    %4095 = vmatpush1.bf16.msra.mxu0 %v3955
    %4096 = vmatprep.subr.bf16.mxu0 %v3958
    %4097 = vmatpush1.bf16.msra.mxu0 %v3957
    %4098 = vmatprep.subr.bf16.mxu0 %v3960
    %4099 = vmatpush1.bf16.msra.mxu0 %v3959
    %4100 = vmatprep.subr.bf16.mxu0 %v3962
    %4101 = vmatpush1.bf16.msra.mxu0 %v3961
    %4102 = vmatprep.subr.bf16.mxu0 %v3964
    %4103 = vmatpush1.bf16.msra.mxu0 %v3963
    %4104 = vmatprep.subr.bf16.mxu0 %v3966
    %4105 = vmatpush1.bf16.msra.mxu0 %v3965
    %4106 = vmatprep.subr.bf16.mxu0 %v3968
    %4107 = vmatpush1.bf16.msra.mxu0 %v3967
    %4108 = vmatprep.subr.bf16.mxu0 %v3970
    %4109 = vmatpush1.bf16.msra.mxu0 %v3969
    %4110 = vmatprep.subr.bf16.mxu0 %v3972
    %4111 = vmatpush1.bf16.msra.mxu0 %v3971
    %4112 = vmatprep.subr.bf16.mxu0 %v3974
    %4113 = vmatpush1.bf16.msra.mxu0 %v3973
    %4114 = vmatprep.mubr.bf16.mxu0 %v3672
    %4115 = vmatmul.mubr.bf16.gmra.mrb[0].mxu0 %v3671
    %v4116 = vpop.f32.mrb[0].mxu0
    %v4117 = vadd.f32 %v3744, %v4116
    %v4118 = vpop.f32.mrb[0].mxu0
    %v4119 = vadd.f32 %v3748, %v4118
    %v4120 = vpop.f32.mrb[0].mxu0
    %v4121 = vadd.f32 %v3744, %v4120
    %v4122 = vpop.f32.mrb[0].mxu0
    %v4123 = vadd.f32 %v3748, %v4122
    %4124 = vdwg.mxu0
    %4125 = vmatprep.subr.bf16.mxu0 %v3976
    %4126 = vmatpush1.bf16.msra.mxu0 %v3975
    %4127 = vmatprep.subr.bf16.mxu0 %v3978
    %4128 = vmatpush1.bf16.msra.mxu0 %v3977
    %4129 = vmatprep.subr.bf16.mxu0 %v3980
    %4130 = vmatpush1.bf16.msra.mxu0 %v3979
    %4131 = vmatprep.subr.bf16.mxu0 %v3982
    %4132 = vmatpush1.bf16.msra.mxu0 %v3981
    %4133 = vmatprep.subr.bf16.mxu0 %v3984
    %4134 = vmatpush1.bf16.msra.mxu0 %v3983
    %4135 = vmatprep.subr.bf16.mxu0 %v3986
    %4136 = vmatpush1.bf16.msra.mxu0 %v3985
    %4137 = vmatprep.subr.bf16.mxu0 %v3988
    %4138 = vmatpush1.bf16.msra.mxu0 %v3987
    %4139 = vmatprep.subr.bf16.mxu0 %v3990
    %4140 = vmatpush1.bf16.msra.mxu0 %v3989
    %4141 = vmatprep.subr.bf16.mxu0 %v3992
    %4142 = vmatpush1.bf16.msra.mxu0 %v3991
    %4143 = vmatprep.subr.bf16.mxu0 %v3994
    %4144 = vmatpush1.bf16.msra.mxu0 %v3993
    %4145 = vmatprep.subr.bf16.mxu0 %v3996
    %4146 = vmatpush1.bf16.msra.mxu0 %v3995
    %4147 = vmatprep.subr.bf16.mxu0 %v3998
    %4148 = vmatpush1.bf16.msra.mxu0 %v3997
    %4149 = vmatprep.subr.bf16.mxu0 %v4000
    %4150 = vmatpush1.bf16.msra.mxu0 %v3999
    %4151 = vmatprep.subr.bf16.mxu0 %v4002
    %4152 = vmatpush1.bf16.msra.mxu0 %v4001
    %4153 = vmatprep.subr.bf16.mxu0 %v4004
    %4154 = vmatpush1.bf16.msra.mxu0 %v4003
    %4155 = vmatprep.subr.bf16.mxu0 %v4080
    %4156 = vmatpush1.bf16.msra.mxu0 %v4077
    %4157 = vmatprep.mubr.bf16.mxu0 %v4071
    %4158 = vmatmul.mubr.bf16.gmra.mrb[0].mxu0 %v3673
    %v4159 = vpop.f32.mrb[0].mxu0
    %v4160 = vadd.f32 %v4117, %v4159
    %v4161 = vpop.f32.mrb[0].mxu0
    %v4162 = vadd.f32 %v4119, %v4161
    %v4163 = vpop.f32.mrb[0].mxu0
    %v4164 = vadd.f32 %v4121, %v4163
    %v4165 = vpop.f32.mrb[0].mxu0
    %v4166 = vadd.f32 %v4123, %v4165
    %4167 = vdwg.mxu0
    %v4168 = vadd.f32 %v4160, %v2536
    %v4169 = vadd.f32 %v4162, %v2537
    %v4170 = vadd.f32 %v4164, %v2538
    %v4171 = vadd.f32 %v4166, %v2539
    %v4172 = vsel %vm463, %v4169, 0.0
    %v4173 = vadd.f32 %v4168, %v4172
    %4174 = vadd.xlane.f32.xlu0 %v4173
    %v4175 = vpop.xlane.xlu0 %4174
    %v4176 = vsel %vm463, %v4171, 0.0
    %v4177 = vadd.f32 %v4170, %v4176
    %4178 = vadd.xlane.f32.xlu0 %v4177
    %v4179 = vpop.xlane.xlu0 %4178
    %v4180 = vmul.f32 %v4175, %v2481
    %v4181 = vmul.f32 %v4179, %v2481
    %v4182 = vsub.f32 %v4168, %v4180
    %v4183 = vsub.f32 %v4169, %v4180
    %v4184 = vsub.f32 %v4170, %v4181
    %v4185 = vsub.f32 %v4171, %v4181
    %v4186 = vmul.f32 %v4182, %v4182
    %v4187 = vmul.f32 %v4183, %v4183
    %v4188 = vmul.f32 %v4184, %v4184
    %v4189 = vmul.f32 %v4185, %v4185
    %v4190 = vsel %vm463, %v4187, 0.0
    %v4191 = vadd.f32 %v4186, %v4190
    %4192 = vadd.xlane.f32.xlu0 %v4191
    %v4193 = vpop.xlane.xlu0 %4192
    %v4194 = vsel %vm463, %v4189, 0.0
    %v4195 = vadd.f32 %v4188, %v4194
    %4196 = vadd.xlane.f32.xlu0 %v4195
    %v4197 = vpop.xlane.xlu0 %4196
    %v4198 = vmul.f32 %v4193, %v2481
    %v4199 = vmul.f32 %v4197, %v2481
    %v4200 = vadd.f32 %v4198, 1e-05
    %v4201 = vadd.f32 %v4199, 1e-05
    %v4202 = vrsqrt.pop %v4200
    %v4203 = vrsqrt.pop %v4201
    %v4204 = vmul.f32 %v4182, %v4202
    %v4205 = vmul.f32 %v4183, %v4202
    %v4206 = vmul.f32 %v4184, %v4203
    %v4207 = vmul.f32 %v4185, %v4203
    %v4208 = vmul.f32 %v4204, %v2514
    %v4209 = vmul.f32 %v4205, %v2518
    %v4210 = vmul.f32 %v4206, %v2514
    %v4211 = vmul.f32 %v4207, %v2518
    %v4212 = vadd.f32 %v4208, %v2529
    %v4213 = vadd.f32 %v4209, %v2533
    %v4214 = vadd.f32 %v4210, %v2529
    %v4215 = vadd.f32 %v4211, %v2533
    %4216 = vst [vmem:[#allocation7] sm:$0xff] %v4212
    %4217 = vst.msk [vmem:[#allocation7 + $0x8] sm:$0xff] %vm463, %v4213
    %4218 = vst [vmem:[#allocation7 + $0x10] sm:$0xff] %v4214
    %4219 = vst.msk [vmem:[#allocation7 + $0x18] sm:$0xff] %vm463, %v4215
    // Predicated region
    $region50: #{tpu_custom_call.1} parent=1 // pred_check
      _
    $region51: #{tpu_custom_call.1} parent=1 // pred_check_branch
      %4221 = sbr.rel (0) target = $region53
    $region52: #{tpu_custom_call.1} parent=1 // pred_region
      %s4223 = ssub.s32 512, 512
      %4224 = vsyncadd [#allocation4], %s4223
      %s4225 = sshll.u32 [#allocation7], 4
      %s4226 = int_to_ptr.vmem [resolvable:$true] %s4225
      %4231 = dma.vmem_to_hbm [thread:$0]  %s4226, 512, %s10, [#allocation4], 256, 256, 16
    $region53: #{tpu_custom_call.1} parent=1 // pred_fallthru
      _
    // Predicated region
    $region54: #{tpu_custom_call.1} parent=1 // pred_check
      _
    $region55: #{tpu_custom_call.1} parent=1 // pred_check_branch
      %4233 = sbr.rel (0) target = $region57
    $region56: #{tpu_custom_call.1} parent=1 // pred_region
      %4234 = dma.done [#allocation4], 512
    $region57: #{tpu_custom_call.1} parent=1 // pred_fallthru
      _
    %4235 = vsyncpa [#allocation3], 1
    %4236 = vsyncpa [#allocation6], 1
    %4237 = vsyncpa [#allocation4], 1

</llo_original>
